<compile_context>
chip_gen: v7x
topology: tpu7x:2x2x1
jax: 0.10.0
libtpu: 0.0.40
codegen_flags: <defaults>
</compile_context>

<pallas_src>
import functools

import jax
import jax.numpy as jnp
import numpy as np
from jax.experimental import pallas as pl
from jax.experimental.pallas import tpu as pltpu

EPS = 1e-5

_PAIRS = ((0, 1), (0, 2), (0, 3), (1, 2), (1, 3), (2, 3))
_TRIPLES = ((0, 1, 2), (0, 1, 3), (0, 2, 3), (1, 2, 3))


# ------------------------------ Pallas kernel -------------------------------

def _um3_kernel(xb_ref, w1_ref, b1_ref, wbd_ref, bbd_ref, wbig_ref, bbig_ref,
                mask_ref, o_ref, ybuf, *, wp, lout, sw, front):
    """Whole UM3 block for one image, in W-padded flat layout.

    xb_ref  : (1, Lp, Cin)       zero-padded input rows
    w1_ref  : (9*Cin, P)   bf16  conv1 weights, BN-folded, im2col row layout
    b1_ref  : (1, P)             folded bn1 bias
    wbd_ref : (9*P, P)     bf16  four stage-1 convs as one block-diag conv
    bbd_ref : (1, P)
    wbig_ref: (9*P, 3*sw)  bf16  stages 2/3/4 folded ([out2 | out3 | out4])
    bbig_ref: (1, 3*sw)
    mask_ref: (lout, 1)          1.0 on real pixels, 0.0 on W-pad columns
    o_ref   : (1, lout, P)       final output rows (pad cols dropped outside)
    ybuf    : (Lp, P)      bf16  VMEM scratch: padded y, then padded relu(o1)
    """
    planes = 4 * sw
    top = wp + 1 + front                      # aligned interior start row
    bot = ybuf.shape[0] - (top + lout)        # bottom halo rows (static)

    def tap_slab(read):
        # im2col slab (lout, 9*C): 9 statically shifted slices, lane-concat.
        return jnp.concatenate(
            [read(front + (t // 3) * wp + (t % 3)) for t in range(9)], axis=-1)

    # ---- conv1 + bn1 + relu (Cin -> planes) --------------------------------
    slab0 = tap_slab(lambda o: xb_ref[0, o:o + lout, :]).astype(jnp.bfloat16)
    acc1 = jnp.dot(slab0, w1_ref[...], preferred_element_type=jnp.float32)
    y = jnp.maximum((acc1 + b1_ref[...]) * mask_ref[...], 0.0)

    # padded y buffer in VMEM: zero the halo rows, write the interior once
    ybuf[0:top, :] = jnp.zeros((top, planes), ybuf.dtype)
    if bot:
        ybuf[top + lout:, :] = jnp.zeros((bot, planes), ybuf.dtype)
    ybuf[top:top + lout, :] = y.astype(ybuf.dtype)

    # ---- stage 1: four convs as one block-diagonal conv (pre-ReLU o1) ------
    slab1 = tap_slab(lambda o: ybuf[o:o + lout, :])
    acc2 = jnp.dot(slab1, wbd_ref[...], preferred_element_type=jnp.float32)
    o1 = (acc2 + bbd_ref[...]) * mask_ref[...]
    out1 = (o1[:, 0:sw] + o1[:, sw:2 * sw]
            + o1[:, 2 * sw:3 * sw] + o1[:, 3 * sw:4 * sw])

    # relu(o1) computed ONCE, written back into the reused padded scratch
    # (halo rows are already zero, and relu(0) == 0).
    ybuf[top:top + lout, :] = jnp.maximum(o1, 0.0).astype(ybuf.dtype)

    # ---- stages 2/3/4 folded into ONE conv of relu(o1) (planes -> 3*sw) ----
    slab2 = tap_slab(lambda o: ybuf[o:o + lout, :])
    acc3 = jnp.dot(slab2, wbig_ref[...], preferred_element_type=jnp.float32)
    out234 = acc3 + bbig_ref[...]

    # ---- residual + final ReLU, single full-width store --------------------
    res = xb_ref[0, top:top + lout, :]
    full = jnp.concatenate([out1, out234], axis=-1) + res
    o_ref[0] = jnp.maximum(full, 0.0).astype(o_ref.dtype)


# ------------------------------ UM3 forward ---------------------------------

def _fold_bn(w, gamma, beta, mean, var):
    scale = gamma / jnp.sqrt(var + EPS)
    return w * scale, beta - mean * scale


@jax.jit
def um3_forward(x_nhwc, params):
    n, h, w, c = x_nhwc.shape
    planes = params["conv1"][0].shape[-1]
    assert planes == c, "residual path requires inplanes == planes"
    sw = planes // 4
    wp = w + 2
    lout = h * wp                               # W-padded flat rows per image
    front = (-(wp + 1)) % 16                    # align interior start row
    lp = -(-(front + (h + 2) * wp + 3) // 8) * 8  # padded buffer row count

    # ---- fold eval-mode BN into weights / bias (trace-time, tiny) ----------
    w1, b1 = _fold_bn(*params["conv1"])
    s1 = [_fold_bn(*params[f"conv1_{i + 1}"]) for i in range(4)]
    s2 = [_fold_bn(*params[f"conv2_{k + 1}"]) for k in range(6)]
    s3 = [_fold_bn(*params[f"conv3_{k + 1}"]) for k in range(4)]
    w4, b4 = _fold_bn(*params["conv4_1"])

    # stage 1 as ONE block-diagonal conv (planes -> planes)
    wbd = jnp.zeros((3, 3, planes, planes), jnp.float32)
    for i in range(4):
        wbd = wbd.at[:, :, i * sw:(i + 1) * sw, i * sw:(i + 1) * sw].set(s1[i][0])
    bbd = jnp.concatenate([s1[i][1] for i in range(4)])

    # stages 2/3/4, linear in relu(o1_i), folded into ONE conv (planes -> 3*sw)
    wbig = jnp.zeros((3, 3, planes, 3 * sw), jnp.float32)
    for i in range(4):
        a2 = sum(s2[k][0] for k in range(6) if i in _PAIRS[k])
        a3 = sum(s3[k][0] for k in range(4) if i in _TRIPLES[k])
        wbig = wbig.at[:, :, i * sw:(i + 1) * sw, :].set(
            jnp.concatenate([a2, a3, w4], axis=-1))
    bbig = jnp.concatenate([sum(s2[k][1] for k in range(6)),
                            sum(s3[k][1] for k in range(4)), b4])

    # im2col-row weight layout, bf16 MXU operands
    w1s = w1.reshape(9 * c, planes).astype(jnp.bfloat16)
    wbds = wbd.reshape(9 * planes, planes).astype(jnp.bfloat16)
    wbigs = wbig.reshape(9 * planes, 3 * sw).astype(jnp.bfloat16)

    col = jnp.arange(lout) % wp
    mask = ((col >= 1) & (col <= w)).astype(jnp.float32).reshape(lout, 1)

    # single zero-pad of the input into W-padded flat layout (n, Lp, C)
    xp = jnp.pad(x_nhwc, ((0, 0), (1, 1), (1, 1), (0, 0)))
    xb = jnp.pad(xp.reshape(n, (h + 2) * wp, c),
                 ((0, 0), (1 + front, lp - (h + 2) * wp - 1 - front), (0, 0)))

    kern = functools.partial(_um3_kernel, wp=wp, lout=lout, sw=sw, front=front)
    out = pl.pallas_call(
        kern,
        out_shape=jax.ShapeDtypeStruct((n, lout, planes), jnp.float32),
        grid=(n,),
        in_specs=[
            pl.BlockSpec((1, lp, c), lambda i: (i, 0, 0)),
            pl.BlockSpec((9 * c, planes), lambda i: (0, 0)),
            pl.BlockSpec((1, planes), lambda i: (0, 0)),
            pl.BlockSpec((9 * planes, planes), lambda i: (0, 0)),
            pl.BlockSpec((1, planes), lambda i: (0, 0)),
            pl.BlockSpec((9 * planes, 3 * sw), lambda i: (0, 0)),
            pl.BlockSpec((1, 3 * sw), lambda i: (0, 0)),
            pl.BlockSpec((lout, 1), lambda i: (0, 0)),
        ],
        out_specs=pl.BlockSpec((1, lout, planes), lambda i: (i, 0, 0)),
        scratch_shapes=[pltpu.VMEM((lp, planes), jnp.bfloat16)],
        compiler_params=pltpu.CompilerParams(
            dimension_semantics=("parallel",)),
    )(xb, w1s, b1.reshape(1, planes), wbds, bbd.reshape(1, planes),
      wbigs, bbig.reshape(1, 3 * sw), mask)

    # drop the W-pad columns -> NHWC
    return out.reshape(n, h, wp, planes)[:, :, 1:w + 1, :]


# ---------------------------- pure-JAX reference ----------------------------

def _conv_bn_ref(x, w, gamma, beta, mean, var, relu=False):
    y = jax.lax.conv_general_dilated(
        x, w, (1, 1), "SAME", dimension_numbers=("NHWC", "HWIO", "NHWC"),
        precision=jax.lax.Precision.HIGHEST)
    scale = gamma / jnp.sqrt(var + EPS)
    y = y * scale + (beta - mean * scale)
    if relu:
        y = jnp.maximum(y, 0.0)
    return y


def um3_ref(x, params):
    sw = params["conv1_1"][0].shape[-1]
    out = _conv_bn_ref(x, *params["conv1"], relu=True)
    sp = [out[..., i * sw:(i + 1) * sw] for i in range(4)]
    o1 = [_conv_bn_ref(sp[i], *params[f"conv1_{i + 1}"]) for i in range(4)]
    out1 = o1[0] + o1[1] + o1[2] + o1[3]
    r = [jnp.maximum(o, 0.0) for o in o1]
    o2 = [_conv_bn_ref(r[a] + r[b], *params[f"conv2_{k + 1}"])
          for k, (a, b) in enumerate(_PAIRS)]
    out2 = sum(o2[1:], o2[0])
    o3 = [_conv_bn_ref(r[a] + r[b] + r[c], *params[f"conv3_{k + 1}"])
          for k, (a, b, c) in enumerate(_TRIPLES)]
    out3 = sum(o3[1:], o3[0])
    out4 = _conv_bn_ref(r[0] + r[1] + r[2] + r[3], *params["conv4_1"])
    out = jnp.concatenate([out1, out2, out3, out4], axis=-1) + x
    return jnp.maximum(out, 0.0)


# ------------------------------- param init ---------------------------------

def init_params(key, inplanes, planes):
    sw = planes // 4
    names = (["conv1"]
             + [f"conv1_{i}" for i in range(1, 5)]
             + [f"conv2_{i}" for i in range(1, 7)]
             + [f"conv3_{i}" for i in range(1, 5)]
             + ["conv4_1"])
    params = {}
    for name in names:
        cin = inplanes if name == "conv1" else sw
        cout = planes if name == "conv1" else sw
        key, kw, kg, kb, km, kv = jax.random.split(key, 6)
        w = jax.random.normal(kw, (3, 3, cin, cout), jnp.float32) * 0.1
        gamma = jax.random.uniform(kg, (cout,), jnp.float32, 0.5, 1.5)
        beta = jax.random.normal(kb, (cout,), jnp.float32) * 0.1
        mean = jax.random.normal(km, (cout,), jnp.float32) * 0.1
        var = jax.random.uniform(kv, (cout,), jnp.float32, 0.5, 1.5)
        params[name] = (w, gamma, beta, mean, var)
    return params


# ---------------------------------- main -------------------------------------

if __name__ == "__main__":
    N, inplanes, H, W = 2, 16, 16, 16   # residual path requires inplanes == planes
    planes = inplanes

    key = jax.random.PRNGKey(0)
    key, kx = jax.random.split(key)
    x_nchw = jax.random.normal(kx, (N, inplanes, H, W), jnp.float32)
    x_nhwc = jnp.transpose(x_nchw, (0, 2, 3, 1))

    params = init_params(key, inplanes, planes)

    out = jax.block_until_ready(um3_forward(x_nhwc, params))
    ref = jax.block_until_ready(um3_ref(x_nhwc, params))
    # bf16 MXU operands (f32 accumulation) need a slightly looser atol.
    np.testing.assert_allclose(np.asarray(out), np.asarray(ref),
                               rtol=2e-2, atol=3e-2)
    print("KERNEL_OK")
</pallas_src>

<mosaic_0001>
module attributes {stable_mosaic.version = 11 : i64} {
  func.func @_um3_kernel(%arg0: i32, %arg1: memref<1x344x16xf32, #tpu.memory_space<vmem>>, %arg2: memref<144x16xbf16, #tpu.memory_space<vmem>>, %arg3: memref<1x16xf32, #tpu.memory_space<vmem>>, %arg4: memref<144x16xbf16, #tpu.memory_space<vmem>>, %arg5: memref<1x16xf32, #tpu.memory_space<vmem>>, %arg6: memref<144x12xbf16, #tpu.memory_space<vmem>>, %arg7: memref<1x12xf32, #tpu.memory_space<vmem>>, %arg8: memref<288x1xf32, #tpu.memory_space<vmem>>, %arg9: memref<1x288x16xf32, #tpu.memory_space<vmem>>, %arg10: memref<344x16xbf16, #tpu.memory_space<vmem>>) attributes {dimension_semantics = [#tpu.dimension_semantics<parallel>], iteration_bounds = array<i64: 2>, scalar_prefetch = 0 : i64, scratch_operands = 1 : i64, tpu.core_type = #tpu.core_type<tc>, window_params = [{transform_indices = @transform_0, window_bounds = array<i64: 1, 344, 16>}, {pipeline_mode = #tpu.pipeline_mode<synchronous>, transform_indices = @transform_1, window_bounds = array<i64: 144, 16>}, {pipeline_mode = #tpu.pipeline_mode<synchronous>, transform_indices = @transform_2, window_bounds = array<i64: 1, 16>}, {pipeline_mode = #tpu.pipeline_mode<synchronous>, transform_indices = @transform_3, window_bounds = array<i64: 144, 16>}, {pipeline_mode = #tpu.pipeline_mode<synchronous>, transform_indices = @transform_4, window_bounds = array<i64: 1, 16>}, {pipeline_mode = #tpu.pipeline_mode<synchronous>, transform_indices = @transform_5, window_bounds = array<i64: 144, 12>}, {pipeline_mode = #tpu.pipeline_mode<synchronous>, transform_indices = @transform_6, window_bounds = array<i64: 1, 12>}, {pipeline_mode = #tpu.pipeline_mode<synchronous>, transform_indices = @transform_7, window_bounds = array<i64: 288, 1>}, {transform_indices = @transform_8, window_bounds = array<i64: 1, 288, 16>}]} {
    %c0 = arith.constant 0 : index
    %c13 = arith.constant 13 : index
    %c0_0 = arith.constant 0 : index
    %0 = vector.load %arg1[%c0, %c13, %c0_0] : memref<1x344x16xf32, #tpu.memory_space<vmem>>, vector<1x288x16xf32>
    %1 = vector.shape_cast %0 : vector<1x288x16xf32> to vector<288x16xf32>
    %c0_1 = arith.constant 0 : index
    %c14 = arith.constant 14 : index
    %c0_2 = arith.constant 0 : index
    %2 = vector.load %arg1[%c0_1, %c14, %c0_2] : memref<1x344x16xf32, #tpu.memory_space<vmem>>, vector<1x288x16xf32>
    %3 = vector.shape_cast %2 : vector<1x288x16xf32> to vector<288x16xf32>
    %c0_3 = arith.constant 0 : index
    %c15 = arith.constant 15 : index
    %c0_4 = arith.constant 0 : index
    %4 = vector.load %arg1[%c0_3, %c15, %c0_4] : memref<1x344x16xf32, #tpu.memory_space<vmem>>, vector<1x288x16xf32>
    %5 = vector.shape_cast %4 : vector<1x288x16xf32> to vector<288x16xf32>
    %c0_5 = arith.constant 0 : index
    %c31 = arith.constant 31 : index
    %c0_6 = arith.constant 0 : index
    %6 = vector.load %arg1[%c0_5, %c31, %c0_6] : memref<1x344x16xf32, #tpu.memory_space<vmem>>, vector<1x288x16xf32>
    %7 = vector.shape_cast %6 : vector<1x288x16xf32> to vector<288x16xf32>
    %c0_7 = arith.constant 0 : index
    %c32 = arith.constant 32 : index
    %c0_8 = arith.constant 0 : index
    %8 = vector.load %arg1[%c0_7, %c32, %c0_8] : memref<1x344x16xf32, #tpu.memory_space<vmem>>, vector<1x288x16xf32>
    %9 = vector.shape_cast %8 : vector<1x288x16xf32> to vector<288x16xf32>
    %c0_9 = arith.constant 0 : index
    %c33 = arith.constant 33 : index
    %c0_10 = arith.constant 0 : index
    %10 = vector.load %arg1[%c0_9, %c33, %c0_10] : memref<1x344x16xf32, #tpu.memory_space<vmem>>, vector<1x288x16xf32>
    %11 = vector.shape_cast %10 : vector<1x288x16xf32> to vector<288x16xf32>
    %c0_11 = arith.constant 0 : index
    %c49 = arith.constant 49 : index
    %c0_12 = arith.constant 0 : index
    %12 = vector.load %arg1[%c0_11, %c49, %c0_12] : memref<1x344x16xf32, #tpu.memory_space<vmem>>, vector<1x288x16xf32>
    %13 = vector.shape_cast %12 : vector<1x288x16xf32> to vector<288x16xf32>
    %c0_13 = arith.constant 0 : index
    %c50 = arith.constant 50 : index
    %c0_14 = arith.constant 0 : index
    %14 = vector.load %arg1[%c0_13, %c50, %c0_14] : memref<1x344x16xf32, #tpu.memory_space<vmem>>, vector<1x288x16xf32>
    %15 = vector.shape_cast %14 : vector<1x288x16xf32> to vector<288x16xf32>
    %c0_15 = arith.constant 0 : index
    %c51 = arith.constant 51 : index
    %c0_16 = arith.constant 0 : index
    %16 = vector.load %arg1[%c0_15, %c51, %c0_16] : memref<1x344x16xf32, #tpu.memory_space<vmem>>, vector<1x288x16xf32>
    %17 = vector.shape_cast %16 : vector<1x288x16xf32> to vector<288x16xf32>
    %18 = tpu.concatenate %1, %3, %5, %7, %9, %11, %13, %15, %17 in 1 : vector<288x16xf32>, vector<288x16xf32>, vector<288x16xf32>, vector<288x16xf32>, vector<288x16xf32>, vector<288x16xf32>, vector<288x16xf32>, vector<288x16xf32>, vector<288x16xf32> -> vector<288x144xf32>
    %19 = arith.truncf %18 : vector<288x144xf32> to vector<288x144xbf16>
    %c0_17 = arith.constant 0 : index
    %c0_18 = arith.constant 0 : index
    %20 = vector.load %arg2[%c0_17, %c0_18] : memref<144x16xbf16, #tpu.memory_space<vmem>>, vector<144x16xbf16>
    %cst = arith.constant dense<0.000000e+00> : vector<288x16xf32>
    %21 = tpu.matmul %19, %20, %cst {dimension_numbers = #tpu.dot_dimension_numbers<[1], [0], [0], [1], [0, 0, 1, 1], [], []>} : vector<288x144xbf16>, vector<144x16xbf16>, vector<288x16xf32> -> vector<288x16xf32>
    %c0_19 = arith.constant 0 : index
    %c0_20 = arith.constant 0 : index
    %22 = vector.load %arg3[%c0_19, %c0_20] : memref<1x16xf32, #tpu.memory_space<vmem>>, vector<1x16xf32>
    %23 = vector.broadcast %22 : vector<1x16xf32> to vector<288x16xf32>
    %24 = arith.addf %21, %23 : vector<288x16xf32>
    %c0_21 = arith.constant 0 : index
    %c0_22 = arith.constant 0 : index
    %25 = vector.load %arg8[%c0_21, %c0_22] : memref<288x1xf32, #tpu.memory_space<vmem>>, vector<288x1xf32>
    %26 = vector.broadcast %25 : vector<288x1xf32> to vector<288x16xf32>
    %27 = arith.mulf %24, %26 : vector<288x16xf32>
    %cst_23 = arith.constant 0.000000e+00 : f32
    %28 = vector.broadcast %cst_23 : f32 to vector<288x16xf32>
    %29 = arith.maximumf %27, %28 : vector<288x16xf32>
    %cst_24 = arith.constant 0.000000e+00 : bf16
    %30 = vector.broadcast %cst_24 : bf16 to vector<32x16xbf16>
    %c0_25 = arith.constant 0 : index
    %c0_26 = arith.constant 0 : index
    %31 = vector.load %arg10[%c0_25, %c0_26] : memref<344x16xbf16, #tpu.memory_space<vmem>>, vector<32x16xbf16>
    tpu.vector_store %arg10[%c0_25, %c0_26], %30 {strides = array<i32>} : memref<344x16xbf16, #tpu.memory_space<vmem>>, vector<32x16xbf16>,
    %cst_27 = arith.constant 0.000000e+00 : bf16
    %32 = vector.broadcast %cst_27 : bf16 to vector<24x16xbf16>
    %c320 = arith.constant 320 : index
    %c0_28 = arith.constant 0 : index
    %33 = vector.load %arg10[%c320, %c0_28] : memref<344x16xbf16, #tpu.memory_space<vmem>>, vector<24x16xbf16>
    tpu.vector_store %arg10[%c320, %c0_28], %32 {strides = array<i32>} : memref<344x16xbf16, #tpu.memory_space<vmem>>, vector<24x16xbf16>,
    %34 = arith.truncf %29 : vector<288x16xf32> to vector<288x16xbf16>
    %c32_29 = arith.constant 32 : index
    %c0_30 = arith.constant 0 : index
    %35 = vector.load %arg10[%c32_29, %c0_30] : memref<344x16xbf16, #tpu.memory_space<vmem>>, vector<288x16xbf16>
    tpu.vector_store %arg10[%c32_29, %c0_30], %34 {strides = array<i32>} : memref<344x16xbf16, #tpu.memory_space<vmem>>, vector<288x16xbf16>,
    %c13_31 = arith.constant 13 : index
    %c0_32 = arith.constant 0 : index
    %36 = vector.load %arg10[%c13_31, %c0_32] : memref<344x16xbf16, #tpu.memory_space<vmem>>, vector<288x16xbf16>
    %c14_33 = arith.constant 14 : index
    %c0_34 = arith.constant 0 : index
    %37 = vector.load %arg10[%c14_33, %c0_34] : memref<344x16xbf16, #tpu.memory_space<vmem>>, vector<288x16xbf16>
    %c15_35 = arith.constant 15 : index
    %c0_36 = arith.constant 0 : index
    %38 = vector.load %arg10[%c15_35, %c0_36] : memref<344x16xbf16, #tpu.memory_space<vmem>>, vector<288x16xbf16>
    %c31_37 = arith.constant 31 : index
    %c0_38 = arith.constant 0 : index
    %39 = vector.load %arg10[%c31_37, %c0_38] : memref<344x16xbf16, #tpu.memory_space<vmem>>, vector<288x16xbf16>
    %c32_39 = arith.constant 32 : index
    %c0_40 = arith.constant 0 : index
    %40 = vector.load %arg10[%c32_39, %c0_40] : memref<344x16xbf16, #tpu.memory_space<vmem>>, vector<288x16xbf16>
    %c33_41 = arith.constant 33 : index
    %c0_42 = arith.constant 0 : index
    %41 = vector.load %arg10[%c33_41, %c0_42] : memref<344x16xbf16, #tpu.memory_space<vmem>>, vector<288x16xbf16>
    %c49_43 = arith.constant 49 : index
    %c0_44 = arith.constant 0 : index
    %42 = vector.load %arg10[%c49_43, %c0_44] : memref<344x16xbf16, #tpu.memory_space<vmem>>, vector<288x16xbf16>
    %c50_45 = arith.constant 50 : index
    %c0_46 = arith.constant 0 : index
    %43 = vector.load %arg10[%c50_45, %c0_46] : memref<344x16xbf16, #tpu.memory_space<vmem>>, vector<288x16xbf16>
    %c51_47 = arith.constant 51 : index
    %c0_48 = arith.constant 0 : index
    %44 = vector.load %arg10[%c51_47, %c0_48] : memref<344x16xbf16, #tpu.memory_space<vmem>>, vector<288x16xbf16>
    %45 = tpu.concatenate %36, %37, %38, %39, %40, %41, %42, %43, %44 in 1 : vector<288x16xbf16>, vector<288x16xbf16>, vector<288x16xbf16>, vector<288x16xbf16>, vector<288x16xbf16>, vector<288x16xbf16>, vector<288x16xbf16>, vector<288x16xbf16>, vector<288x16xbf16> -> vector<288x144xbf16>
    %c0_49 = arith.constant 0 : index
    %c0_50 = arith.constant 0 : index
    %46 = vector.load %arg4[%c0_49, %c0_50] : memref<144x16xbf16, #tpu.memory_space<vmem>>, vector<144x16xbf16>
    %cst_51 = arith.constant dense<0.000000e+00> : vector<288x16xf32>
    %47 = tpu.matmul %45, %46, %cst_51 {dimension_numbers = #tpu.dot_dimension_numbers<[1], [0], [0], [1], [0, 0, 1, 1], [], []>} : vector<288x144xbf16>, vector<144x16xbf16>, vector<288x16xf32> -> vector<288x16xf32>
    %c0_52 = arith.constant 0 : index
    %c0_53 = arith.constant 0 : index
    %48 = vector.load %arg5[%c0_52, %c0_53] : memref<1x16xf32, #tpu.memory_space<vmem>>, vector<1x16xf32>
    %49 = vector.broadcast %48 : vector<1x16xf32> to vector<288x16xf32>
    %50 = arith.addf %47, %49 : vector<288x16xf32>
    %c0_54 = arith.constant 0 : index
    %c0_55 = arith.constant 0 : index
    %51 = vector.load %arg8[%c0_54, %c0_55] : memref<288x1xf32, #tpu.memory_space<vmem>>, vector<288x1xf32>
    %52 = vector.broadcast %51 : vector<288x1xf32> to vector<288x16xf32>
    %53 = arith.mulf %50, %52 : vector<288x16xf32>
    %54 = vector.extract_strided_slice %53 {offsets = [0, 0], sizes = [288, 4], strides = [1, 1]} : vector<288x16xf32> to vector<288x4xf32>
    %55 = vector.extract_strided_slice %53 {offsets = [0, 4], sizes = [288, 4], strides = [1, 1]} : vector<288x16xf32> to vector<288x4xf32>
    %56 = arith.addf %54, %55 : vector<288x4xf32>
    %57 = vector.extract_strided_slice %53 {offsets = [0, 8], sizes = [288, 4], strides = [1, 1]} : vector<288x16xf32> to vector<288x4xf32>
    %58 = arith.addf %56, %57 : vector<288x4xf32>
    %59 = vector.extract_strided_slice %53 {offsets = [0, 12], sizes = [288, 4], strides = [1, 1]} : vector<288x16xf32> to vector<288x4xf32>
    %60 = arith.addf %58, %59 : vector<288x4xf32>
    %cst_56 = arith.constant 0.000000e+00 : f32
    %61 = vector.broadcast %cst_56 : f32 to vector<288x16xf32>
    %62 = arith.maximumf %53, %61 : vector<288x16xf32>
    %63 = arith.truncf %62 : vector<288x16xf32> to vector<288x16xbf16>
    %c32_57 = arith.constant 32 : index
    %c0_58 = arith.constant 0 : index
    %64 = vector.load %arg10[%c32_57, %c0_58] : memref<344x16xbf16, #tpu.memory_space<vmem>>, vector<288x16xbf16>
    tpu.vector_store %arg10[%c32_57, %c0_58], %63 {strides = array<i32>} : memref<344x16xbf16, #tpu.memory_space<vmem>>, vector<288x16xbf16>,
    %c13_59 = arith.constant 13 : index
    %c0_60 = arith.constant 0 : index
    %65 = vector.load %arg10[%c13_59, %c0_60] : memref<344x16xbf16, #tpu.memory_space<vmem>>, vector<288x16xbf16>
    %c14_61 = arith.constant 14 : index
    %c0_62 = arith.constant 0 : index
    %66 = vector.load %arg10[%c14_61, %c0_62] : memref<344x16xbf16, #tpu.memory_space<vmem>>, vector<288x16xbf16>
    %c15_63 = arith.constant 15 : index
    %c0_64 = arith.constant 0 : index
    %67 = vector.load %arg10[%c15_63, %c0_64] : memref<344x16xbf16, #tpu.memory_space<vmem>>, vector<288x16xbf16>
    %c31_65 = arith.constant 31 : index
    %c0_66 = arith.constant 0 : index
    %68 = vector.load %arg10[%c31_65, %c0_66] : memref<344x16xbf16, #tpu.memory_space<vmem>>, vector<288x16xbf16>
    %c32_67 = arith.constant 32 : index
    %c0_68 = arith.constant 0 : index
    %69 = vector.load %arg10[%c32_67, %c0_68] : memref<344x16xbf16, #tpu.memory_space<vmem>>, vector<288x16xbf16>
    %c33_69 = arith.constant 33 : index
    %c0_70 = arith.constant 0 : index
    %70 = vector.load %arg10[%c33_69, %c0_70] : memref<344x16xbf16, #tpu.memory_space<vmem>>, vector<288x16xbf16>
    %c49_71 = arith.constant 49 : index
    %c0_72 = arith.constant 0 : index
    %71 = vector.load %arg10[%c49_71, %c0_72] : memref<344x16xbf16, #tpu.memory_space<vmem>>, vector<288x16xbf16>
    %c50_73 = arith.constant 50 : index
    %c0_74 = arith.constant 0 : index
    %72 = vector.load %arg10[%c50_73, %c0_74] : memref<344x16xbf16, #tpu.memory_space<vmem>>, vector<288x16xbf16>
    %c51_75 = arith.constant 51 : index
    %c0_76 = arith.constant 0 : index
    %73 = vector.load %arg10[%c51_75, %c0_76] : memref<344x16xbf16, #tpu.memory_space<vmem>>, vector<288x16xbf16>
    %74 = tpu.concatenate %65, %66, %67, %68, %69, %70, %71, %72, %73 in 1 : vector<288x16xbf16>, vector<288x16xbf16>, vector<288x16xbf16>, vector<288x16xbf16>, vector<288x16xbf16>, vector<288x16xbf16>, vector<288x16xbf16>, vector<288x16xbf16>, vector<288x16xbf16> -> vector<288x144xbf16>
    %c0_77 = arith.constant 0 : index
    %c0_78 = arith.constant 0 : index
    %75 = vector.load %arg6[%c0_77, %c0_78] : memref<144x12xbf16, #tpu.memory_space<vmem>>, vector<144x12xbf16>
    %cst_79 = arith.constant dense<0.000000e+00> : vector<288x12xf32>
    %76 = tpu.matmul %74, %75, %cst_79 {dimension_numbers = #tpu.dot_dimension_numbers<[1], [0], [0], [1], [0, 0, 1, 1], [], []>} : vector<288x144xbf16>, vector<144x12xbf16>, vector<288x12xf32> -> vector<288x12xf32>
    %c0_80 = arith.constant 0 : index
    %c0_81 = arith.constant 0 : index
    %77 = vector.load %arg7[%c0_80, %c0_81] : memref<1x12xf32, #tpu.memory_space<vmem>>, vector<1x12xf32>
    %78 = vector.broadcast %77 : vector<1x12xf32> to vector<288x12xf32>
    %79 = arith.addf %76, %78 : vector<288x12xf32>
    %c0_82 = arith.constant 0 : index
    %c32_83 = arith.constant 32 : index
    %c0_84 = arith.constant 0 : index
    %80 = vector.load %arg1[%c0_82, %c32_83, %c0_84] : memref<1x344x16xf32, #tpu.memory_space<vmem>>, vector<1x288x16xf32>
    %81 = vector.shape_cast %80 : vector<1x288x16xf32> to vector<288x16xf32>
    %82 = tpu.concatenate %60, %79 in 1 : vector<288x4xf32>, vector<288x12xf32> -> vector<288x16xf32>
    %83 = arith.addf %82, %81 : vector<288x16xf32>
    %cst_85 = arith.constant 0.000000e+00 : f32
    %84 = vector.broadcast %cst_85 : f32 to vector<288x16xf32>
    %85 = arith.maximumf %83, %84 : vector<288x16xf32>
    %c0_86 = arith.constant 0 : index
    %c0_87 = arith.constant 0 : index
    %c0_88 = arith.constant 0 : index
    %86 = vector.load %arg9[%c0_86, %c0_87, %c0_88] : memref<1x288x16xf32, #tpu.memory_space<vmem>>, vector<1x288x16xf32>
    %87 = vector.shape_cast %86 : vector<1x288x16xf32> to vector<288x16xf32>
    %88 = vector.shape_cast %85 : vector<288x16xf32> to vector<1x288x16xf32>
    tpu.vector_store %arg9[%c0_86, %c0_87, %c0_88], %88 {strides = array<i32>} : memref<1x288x16xf32, #tpu.memory_space<vmem>>, vector<1x288x16xf32>,
    return
  }
  func.func @transform_0(%arg0: i32) -> (i32, i32, i32) {
    %c0_i32 = arith.constant 0 : i32
    %c0_i32_0 = arith.constant 0 : i32
    %c0_i32_1 = arith.constant 0 : i32
    return %arg0, %c0_i32, %c0_i32_0 : i32, i32, i32
  }
  func.func @transform_1(%arg0: i32) -> (i32, i32) {
    %c0_i32 = arith.constant 0 : i32
    %c0_i32_0 = arith.constant 0 : i32
    %c0_i32_1 = arith.constant 0 : i32
    return %c0_i32, %c0_i32_0 : i32, i32
  }
  func.func @transform_2(%arg0: i32) -> (i32, i32) {
    %c0_i32 = arith.constant 0 : i32
    %c0_i32_0 = arith.constant 0 : i32
    %c0_i32_1 = arith.constant 0 : i32
    return %c0_i32, %c0_i32_0 : i32, i32
  }
  func.func @transform_3(%arg0: i32) -> (i32, i32) {
    %c0_i32 = arith.constant 0 : i32
    %c0_i32_0 = arith.constant 0 : i32
    %c0_i32_1 = arith.constant 0 : i32
    return %c0_i32, %c0_i32_0 : i32, i32
  }
  func.func @transform_4(%arg0: i32) -> (i32, i32) {
    %c0_i32 = arith.constant 0 : i32
    %c0_i32_0 = arith.constant 0 : i32
    %c0_i32_1 = arith.constant 0 : i32
    return %c0_i32, %c0_i32_0 : i32, i32
  }
  func.func @transform_5(%arg0: i32) -> (i32, i32) {
    %c0_i32 = arith.constant 0 : i32
    %c0_i32_0 = arith.constant 0 : i32
    %c0_i32_1 = arith.constant 0 : i32
    return %c0_i32, %c0_i32_0 : i32, i32
  }
  func.func @transform_6(%arg0: i32) -> (i32, i32) {
    %c0_i32 = arith.constant 0 : i32
    %c0_i32_0 = arith.constant 0 : i32
    %c0_i32_1 = arith.constant 0 : i32
    return %c0_i32, %c0_i32_0 : i32, i32
  }
  func.func @transform_7(%arg0: i32) -> (i32, i32) {
    %c0_i32 = arith.constant 0 : i32
    %c0_i32_0 = arith.constant 0 : i32
    %c0_i32_1 = arith.constant 0 : i32
    return %c0_i32, %c0_i32_0 : i32, i32
  }
  func.func @transform_8(%arg0: i32) -> (i32, i32, i32) {
    %c0_i32 = arith.constant 0 : i32
    %c0_i32_0 = arith.constant 0 : i32
    %c0_i32_1 = arith.constant 0 : i32
    return %arg0, %c0_i32, %c0_i32_0 : i32, i32, i32
  }
}

</mosaic_0001>

<llo_original>
// kernel: um3_forward.1
$region0: #{um3_forward.1}
  #allocation0 [shape = 'u32[]', space=smem, size = 0x4, offset = 0x4, fixed_abs, tag = 'smem constant byte address 0x4 - core index']
  #allocation1 [shape = 'u32[144,128]{1,0:T(1,128)}', space=vmem, size = 0x12000, scoped, tag = 'internal scratch']
  #allocation2 [shape = 'bf16[344,16]{1,0:T(8,128)(2,1)}', space=vmem, size = 0x15800, scoped, tag = 'scratch operand']
  %s0 = inlined_call_operand.vmem [shape: f32[2,344,16], index: 0, kind: input, shape index: {}]
  %s1 = inlined_call_operand.vmem [shape: bf16[144,16], index: 1, kind: input, shape index: {}]
  %s2 = inlined_call_operand.vmem [shape: f32[1,16], index: 2, kind: input, shape index: {}]
  %s3 = inlined_call_operand.vmem [shape: bf16[144,16], index: 3, kind: input, shape index: {}]
  %s4 = inlined_call_operand.vmem [shape: f32[1,16], index: 4, kind: input, shape index: {}]
  %s5 = inlined_call_operand.vmem [shape: bf16[144,12], index: 5, kind: input, shape index: {}]
  %s6 = inlined_call_operand.vmem [shape: f32[1,12], index: 6, kind: input, shape index: {}]
  %s7 = inlined_call_operand.vmem [shape: f32[288,1], index: 7, kind: input, shape index: {}]
  %s8 = inlined_call_operand.vmem [shape: f32[2,288,16], index: 8, kind: output, shape index: {}]
  %s9 = sld [smem:[#allocation0]]
  $region65: #{um3_forward.1} parent=0
    _
  %s11 = ssub.s32 1, %s9
  %s12 = scalar_select 0, %s11, %s9
  loop: start=0, step=1, limit=4
  $region2: #{um3_forward.1} parent=0 // loop_pre_header
    _
  $region3: #{um3_forward.1} parent=0 // loop_header
    %s14 = sphi 0, %s18
    %p15 = scmp.ge.s32.totalorder %s14, 4
    %s24 = sphi 0, %s26
    %s27 = sphi 0, %s24
    %s28 = sphi 0, %s27
    %s44 = sphi 0, %s28
    %s48 = sphi 0, %s48
    %s50 = sphi 0, %s48
    %s51 = sphi 0, %s50
    %s65 = sphi 0, %s51
    %s69 = sphi 0, %s69
    %s71 = sphi 0, %s69
    %s72 = sphi 0, %s71
    %s86 = sphi 0, %s72
    %s90 = sphi 0, %s90
    %s92 = sphi 0, %s90
    %s93 = sphi 0, %s92
    %s107 = sphi 0, %s93
    %s111 = sphi 0, %s111
    %s113 = sphi 0, %s111
    %s114 = sphi 0, %s113
    %s128 = sphi 0, %s114
    %s132 = sphi 0, %s132
    %s134 = sphi 0, %s132
    %s135 = sphi 0, %s134
    %s149 = sphi 0, %s135
    %s153 = sphi 0, %s153
    %s155 = sphi 0, %s153
    %s156 = sphi 0, %s155
    %s170 = sphi 0, %s156
    %s174 = sphi 0, %s174
    %s176 = sphi 0, %s174
    %s177 = sphi 0, %s176
    %s191 = sphi 0, %s177
    %s197 = sphi 0, %s199
    %s200 = sphi 0, %s197
    %s201 = sphi 0, %s200
    %s217 = sphi 0, %s201
  $region4: #{um3_forward.1} parent=0 // loop_header_branch
    %17 = sbr.rel (%p15) target = $region8
  $region5: #{um3_forward.1} parent=0 // loop_body
    %s19 = ssub.s32 %s14, 1
    %s20 = ssub.s32 %s14, 2
    %s21 = sadd.s32 %s14, 1
    %s22 = ssub.s32 %s14, %s21
    %p23 = scmp.eq.s32.totalorder %s22, 0
    %s25 = sadd.s32 %s24, 1
    %s26 = scalar_select %p23, %s24, %s25
    %p29 = pneg %p23
    %p30 = scmp.eq.s32.totalorder %s14, 1
    %p31 = por %p29, %p30
    %p32 = scmp.ne.s32.totalorder %s24, %s27
    %p33 = scmp.eq.s32.totalorder %s14, 0
    %p34 = por %p32, %p33
    %p35 = scmp.ne.s32.totalorder %s24, %s27
    %p36 = scmp.eq.s32.totalorder %s19, 1
    %p37 = por %p35, %p36
    %p38 = scmp.ne.s32.totalorder %s27, %s28
    %p39 = scmp.eq.s32.totalorder %s19, 0
    %p40 = por %p38, %p39
    %p41 = scmp.ne.s32.totalorder %s27, %s28
    %p42 = scmp.eq.s32.totalorder %s20, 1
    %p43 = por %p41, %p42
    %p45 = scmp.ne.s32.totalorder %s28, %s44
    %p46 = scmp.eq.s32.totalorder %s20, 0
    %p47 = por %p45, %p46
    %s49 = sadd.s32 %s48, 1
    %p52 = scmp.eq.s32.totalorder %s14, 1
    %p53 = scmp.ne.s32.totalorder %s48, %s50
    %p54 = scmp.eq.s32.totalorder %s14, 0
    %p55 = por %p53, %p54
    %p56 = scmp.ne.s32.totalorder %s48, %s50
    %p57 = scmp.eq.s32.totalorder %s19, 1
    %p58 = por %p56, %p57
    %p59 = scmp.ne.s32.totalorder %s50, %s51
    %p60 = scmp.eq.s32.totalorder %s19, 0
    %p61 = por %p59, %p60
    %p62 = scmp.ne.s32.totalorder %s50, %s51
    %p63 = scmp.eq.s32.totalorder %s20, 1
    %p64 = por %p62, %p63
    %p66 = scmp.ne.s32.totalorder %s51, %s65
    %p67 = scmp.eq.s32.totalorder %s20, 0
    %p68 = por %p66, %p67
    %s70 = sadd.s32 %s69, 1
    %p73 = scmp.eq.s32.totalorder %s14, 1
    %p74 = scmp.ne.s32.totalorder %s69, %s71
    %p75 = scmp.eq.s32.totalorder %s14, 0
    %p76 = por %p74, %p75
    %p77 = scmp.ne.s32.totalorder %s69, %s71
    %p78 = scmp.eq.s32.totalorder %s19, 1
    %p79 = por %p77, %p78
    %p80 = scmp.ne.s32.totalorder %s71, %s72
    %p81 = scmp.eq.s32.totalorder %s19, 0
    %p82 = por %p80, %p81
    %p83 = scmp.ne.s32.totalorder %s71, %s72
    %p84 = scmp.eq.s32.totalorder %s20, 1
    %p85 = por %p83, %p84
    %p87 = scmp.ne.s32.totalorder %s72, %s86
    %p88 = scmp.eq.s32.totalorder %s20, 0
    %p89 = por %p87, %p88
    %s91 = sadd.s32 %s90, 1
    %p94 = scmp.eq.s32.totalorder %s14, 1
    %p95 = scmp.ne.s32.totalorder %s90, %s92
    %p96 = scmp.eq.s32.totalorder %s14, 0
    %p97 = por %p95, %p96
    %p98 = scmp.ne.s32.totalorder %s90, %s92
    %p99 = scmp.eq.s32.totalorder %s19, 1
    %p100 = por %p98, %p99
    %p101 = scmp.ne.s32.totalorder %s92, %s93
    %p102 = scmp.eq.s32.totalorder %s19, 0
    %p103 = por %p101, %p102
    %p104 = scmp.ne.s32.totalorder %s92, %s93
    %p105 = scmp.eq.s32.totalorder %s20, 1
    %p106 = por %p104, %p105
    %p108 = scmp.ne.s32.totalorder %s93, %s107
    %p109 = scmp.eq.s32.totalorder %s20, 0
    %p110 = por %p108, %p109
    %s112 = sadd.s32 %s111, 1
    %p115 = scmp.eq.s32.totalorder %s14, 1
    %p116 = scmp.ne.s32.totalorder %s111, %s113
    %p117 = scmp.eq.s32.totalorder %s14, 0
    %p118 = por %p116, %p117
    %p119 = scmp.ne.s32.totalorder %s111, %s113
    %p120 = scmp.eq.s32.totalorder %s19, 1
    %p121 = por %p119, %p120
    %p122 = scmp.ne.s32.totalorder %s113, %s114
    %p123 = scmp.eq.s32.totalorder %s19, 0
    %p124 = por %p122, %p123
    %p125 = scmp.ne.s32.totalorder %s113, %s114
    %p126 = scmp.eq.s32.totalorder %s20, 1
    %p127 = por %p125, %p126
    %p129 = scmp.ne.s32.totalorder %s114, %s128
    %p130 = scmp.eq.s32.totalorder %s20, 0
    %p131 = por %p129, %p130
    %s133 = sadd.s32 %s132, 1
    %p136 = scmp.eq.s32.totalorder %s14, 1
    %p137 = scmp.ne.s32.totalorder %s132, %s134
    %p138 = scmp.eq.s32.totalorder %s14, 0
    %p139 = por %p137, %p138
    %p140 = scmp.ne.s32.totalorder %s132, %s134
    %p141 = scmp.eq.s32.totalorder %s19, 1
    %p142 = por %p140, %p141
    %p143 = scmp.ne.s32.totalorder %s134, %s135
    %p144 = scmp.eq.s32.totalorder %s19, 0
    %p145 = por %p143, %p144
    %p146 = scmp.ne.s32.totalorder %s134, %s135
    %p147 = scmp.eq.s32.totalorder %s20, 1
    %p148 = por %p146, %p147
    %p150 = scmp.ne.s32.totalorder %s135, %s149
    %p151 = scmp.eq.s32.totalorder %s20, 0
    %p152 = por %p150, %p151
    %s154 = sadd.s32 %s153, 1
    %p157 = scmp.eq.s32.totalorder %s14, 1
    %p158 = scmp.ne.s32.totalorder %s153, %s155
    %p159 = scmp.eq.s32.totalorder %s14, 0
    %p160 = por %p158, %p159
    %p161 = scmp.ne.s32.totalorder %s153, %s155
    %p162 = scmp.eq.s32.totalorder %s19, 1
    %p163 = por %p161, %p162
    %p164 = scmp.ne.s32.totalorder %s155, %s156
    %p165 = scmp.eq.s32.totalorder %s19, 0
    %p166 = por %p164, %p165
    %p167 = scmp.ne.s32.totalorder %s155, %s156
    %p168 = scmp.eq.s32.totalorder %s20, 1
    %p169 = por %p167, %p168
    %p171 = scmp.ne.s32.totalorder %s156, %s170
    %p172 = scmp.eq.s32.totalorder %s20, 0
    %p173 = por %p171, %p172
    %s175 = sadd.s32 %s174, 1
    %p178 = scmp.eq.s32.totalorder %s14, 1
    %p179 = scmp.ne.s32.totalorder %s174, %s176
    %p180 = scmp.eq.s32.totalorder %s14, 0
    %p181 = por %p179, %p180
    %p182 = scmp.ne.s32.totalorder %s174, %s176
    %p183 = scmp.eq.s32.totalorder %s19, 1
    %p184 = por %p182, %p183
    %p185 = scmp.ne.s32.totalorder %s176, %s177
    %p186 = scmp.eq.s32.totalorder %s19, 0
    %p187 = por %p185, %p186
    %p188 = scmp.ne.s32.totalorder %s176, %s177
    %p189 = scmp.eq.s32.totalorder %s20, 1
    %p190 = por %p188, %p189
    %p192 = scmp.ne.s32.totalorder %s177, %s191
    %p193 = scmp.eq.s32.totalorder %s20, 0
    %p194 = por %p192, %p193
    %s195 = ssub.s32 %s14, %s21
    %p196 = scmp.eq.s32.totalorder %s195, 0
    %s198 = sadd.s32 %s197, 1
    %s199 = scalar_select %p196, %s197, %s198
    %p202 = pneg %p196
    %p203 = scmp.eq.s32.totalorder %s14, 1
    %p204 = por %p202, %p203
    %p205 = scmp.ne.s32.totalorder %s197, %s200
    %p206 = scmp.eq.s32.totalorder %s14, 0
    %p207 = por %p205, %p206
    %p208 = scmp.ne.s32.totalorder %s197, %s200
    %p209 = scmp.eq.s32.totalorder %s19, 1
    %p210 = por %p208, %p209
    %p211 = scmp.ne.s32.totalorder %s200, %s201
    %p212 = scmp.eq.s32.totalorder %s19, 0
    %p213 = por %p211, %p212
    %p214 = scmp.ne.s32.totalorder %s200, %s201
    %p215 = scmp.eq.s32.totalorder %s20, 1
    %p216 = por %p214, %p215
    %p218 = scmp.ne.s32.totalorder %s201, %s217
    %p219 = scmp.eq.s32.totalorder %s20, 0
    %p220 = por %p218, %p219
    %p221 = scmp.le.s32.totalorder 1, %s14
    %p222 = scmp.lt.s32.totalorder %s14, 3
    %p223 = pnand %p221, %p222
    %p224 = pneg %p223
    // Predicated region
    $region9: #{um3_forward.1} parent=5 // pred_check
      _
    $region10: #{um3_forward.1} parent=5 // pred_check_branch
      %226 = sbr.rel (%p223) target = $region12
    $region11: #{um3_forward.1} parent=5 // pred_region
      %s227 = ssub.s32 %s14, 1
      // Predicated region
      $region13: #{um3_forward.1} parent=11 // pred_check
        %p228 = pneg %p61
      $region14: #{um3_forward.1} parent=11 // pred_check_branch
        %230 = sbr.rel (%p228) target = $region16
      $region15: #{um3_forward.1} parent=11 // pred_region
        _
      $region16: #{um3_forward.1} parent=11 // pred_fallthru
        _
      // Predicated region
      $region17: #{um3_forward.1} parent=11 // pred_check
        %p231 = pneg %p82
      $region18: #{um3_forward.1} parent=11 // pred_check_branch
        %233 = sbr.rel (%p231) target = $region20
      $region19: #{um3_forward.1} parent=11 // pred_region
        _
      $region20: #{um3_forward.1} parent=11 // pred_fallthru
        _
      // Predicated region
      $region21: #{um3_forward.1} parent=11 // pred_check
        %p234 = pneg %p103
      $region22: #{um3_forward.1} parent=11 // pred_check_branch
        %236 = sbr.rel (%p234) target = $region24
      $region23: #{um3_forward.1} parent=11 // pred_region
        _
      $region24: #{um3_forward.1} parent=11 // pred_fallthru
        _
      // Predicated region
      $region25: #{um3_forward.1} parent=11 // pred_check
        %p237 = pneg %p124
      $region26: #{um3_forward.1} parent=11 // pred_check_branch
        %239 = sbr.rel (%p237) target = $region28
      $region27: #{um3_forward.1} parent=11 // pred_region
        _
      $region28: #{um3_forward.1} parent=11 // pred_fallthru
        _
      // Predicated region
      $region29: #{um3_forward.1} parent=11 // pred_check
        %p240 = pneg %p145
      $region30: #{um3_forward.1} parent=11 // pred_check_branch
        %242 = sbr.rel (%p240) target = $region32
      $region31: #{um3_forward.1} parent=11 // pred_region
        _
      $region32: #{um3_forward.1} parent=11 // pred_fallthru
        _
      // Predicated region
      $region33: #{um3_forward.1} parent=11 // pred_check
        %p243 = pneg %p166
      $region34: #{um3_forward.1} parent=11 // pred_check_branch
        %245 = sbr.rel (%p243) target = $region36
      $region35: #{um3_forward.1} parent=11 // pred_region
        _
      $region36: #{um3_forward.1} parent=11 // pred_fallthru
        _
      // Predicated region
      $region37: #{um3_forward.1} parent=11 // pred_check
        %p246 = pneg %p187
      $region38: #{um3_forward.1} parent=11 // pred_check_branch
        %248 = sbr.rel (%p246) target = $region40
      $region39: #{um3_forward.1} parent=11 // pred_region
        _
      $region40: #{um3_forward.1} parent=11 // pred_fallthru
        _
    $region12: #{um3_forward.1} parent=5 // pred_fallthru
      _
    %p249 = scmp.lt.s32.totalorder %s14, 2
    // Predicated region
    $region41: #{um3_forward.1} parent=5 // pred_check
      %p250 = pneg %p249
    $region42: #{um3_forward.1} parent=5 // pred_check_branch
      %252 = sbr.rel (%p250) target = $region44
    $region43: #{um3_forward.1} parent=5 // pred_region
      // Predicated region
      $region45: #{um3_forward.1} parent=43 // pred_check
        %p253 = pneg %p34
      $region46: #{um3_forward.1} parent=43 // pred_check_branch
        %255 = sbr.rel (%p253) target = $region48
      $region47: #{um3_forward.1} parent=43 // pred_region
        %p256 = scmp.lt.s32.totalorder %s14, 1
        %s257 = scalar_select %p256, %s14, 1
        %s258 = smul.addr %s257, 43
        %s259 = smul.addr %s258, 8
        %s260 = scalar_lea.vmem %s0, %s259
      $region48: #{um3_forward.1} parent=43 // pred_fallthru
        _
    $region44: #{um3_forward.1} parent=5 // pred_fallthru
      _
    %p261 = scmp.le.s32.totalorder 1, %s14
    %p262 = scmp.lt.s32.totalorder %s14, 3
    %p263 = pnand %p261, %p262
    %p264 = pneg %p263
    // Predicated region
    $region49: #{um3_forward.1} parent=5 // pred_check
      _
    $region50: #{um3_forward.1} parent=5 // pred_check_branch
      %266 = sbr.rel (%p263) target = $region52
    $region51: #{um3_forward.1} parent=5 // pred_region
      %s267 = ssub.s32 %s14, 1
      %p268 = scmp.lt.s32.totalorder %s19, 1
      %s269 = scalar_select %p268, %s19, 1
      %s270 = smul.addr %s269, 43
      %s271 = smul.addr %s270, 8
      %s272 = scalar_lea.vmem %s0, %s271
      %p273 = pneg %p40
      %p274 = pneg %p37
      %p275 = pneg %p61
      %p276 = pneg %p58
      %p277 = pneg %p82
      %p278 = pneg %p79
      %p279 = pneg %p103
      %p280 = pneg %p100
      %p281 = pneg %p124
      %p282 = pneg %p121
      %p283 = pneg %p145
      %p284 = pneg %p142
      %p285 = pneg %p166
      %p286 = pneg %p163
      %p287 = pneg %p187
      %p288 = pneg %p184
      %p289 = pneg %p213
      %p290 = pneg %p210
      %p291 = scmp.lt.s32.totalorder %s19, 1
      %s292 = scalar_select %p291, %s19, 1
      %s293 = smul.addr %s292, 36
      %s294 = smul.addr %s293, 8
      %s295 = scalar_lea.vmem %s8, %s294
      %p296 = scmp.lt.s32.totalorder %s19, 1
      %s297 = scalar_select %p296, %s19, 1
      %s298 = smul.addr %s297, 43
      %s299 = smul.addr %s298, 8
      %s300 = scalar_lea.vmem %s0, %s299
      %p301 = scmp.lt.s32.totalorder %s19, 1
      %s302 = scalar_select %p301, %s19, 1
      %s303 = smul.addr %s302, 36
      %s304 = smul.addr %s303, 8
      %s305 = scalar_lea.vmem %s8, %s304
      %v307 = vld [vmem:[%s300 + $0xd] sm:$0xff]
      %v308 = vld [vmem:[%s300 + $0x15] sm:$0xff]
      %v309 = vld [vmem:[%s300 + $0x1d] sm:$0xff]
      %v310 = vld [vmem:[%s300 + $0x25] sm:$0xff]
      %v311 = vld [vmem:[%s300 + $0x2d] sm:$0xff]
      %v312 = vld [vmem:[%s300 + $0x35] sm:$0xff]
      %v313 = vld [vmem:[%s300 + $0x3d] sm:$0xff]
      %v314 = vld [vmem:[%s300 + $0x45] sm:$0xff]
      %v315 = vld [vmem:[%s300 + $0x4d] sm:$0xff]
      %v316 = vld [vmem:[%s300 + $0x55] sm:$0xff]
      %v317 = vld [vmem:[%s300 + $0x5d] sm:$0xff]
      %v318 = vld [vmem:[%s300 + $0x65] sm:$0xff]
      %v319 = vld [vmem:[%s300 + $0x6d] sm:$0xff]
      %v320 = vld [vmem:[%s300 + $0x75] sm:$0xff]
      %v321 = vld [vmem:[%s300 + $0x7d] sm:$0xff]
      %v322 = vld [vmem:[%s300 + $0x85] sm:$0xff]
      %v323 = vld [vmem:[%s300 + $0x8d] sm:$0xff]
      %v324 = vld [vmem:[%s300 + $0x95] sm:$0xff]
      %v325 = vld [vmem:[%s300 + $0x9d] sm:$0xff]
      %v326 = vld [vmem:[%s300 + $0xa5] sm:$0xff]
      %v327 = vld [vmem:[%s300 + $0xad] sm:$0xff]
      %v328 = vld [vmem:[%s300 + $0xb5] sm:$0xff]
      %v329 = vld [vmem:[%s300 + $0xbd] sm:$0xff]
      %v330 = vld [vmem:[%s300 + $0xc5] sm:$0xff]
      %v331 = vld [vmem:[%s300 + $0xcd] sm:$0xff]
      %v332 = vld [vmem:[%s300 + $0xd5] sm:$0xff]
      %v333 = vld [vmem:[%s300 + $0xdd] sm:$0xff]
      %v334 = vld [vmem:[%s300 + $0xe5] sm:$0xff]
      %v335 = vld [vmem:[%s300 + $0xed] sm:$0xff]
      %v336 = vld [vmem:[%s300 + $0xf5] sm:$0xff]
      %v337 = vld [vmem:[%s300 + $0xfd] sm:$0xff]
      %v338 = vld [vmem:[%s300 + $0x105] sm:$0xff]
      %v339 = vld [vmem:[%s300 + $0x10d] sm:$0xff]
      %v340 = vld [vmem:[%s300 + $0x115] sm:$0xff]
      %v341 = vld [vmem:[%s300 + $0x11d] sm:$0xff]
      %v342 = vld [vmem:[%s300 + $0x125] sm:$0xff]
      %v343 = vld [vmem:[%s300 + $0xe] sm:$0xff]
      %v344 = vld [vmem:[%s300 + $0x16] sm:$0xff]
      %v345 = vld [vmem:[%s300 + $0x1e] sm:$0xff]
      %v346 = vld [vmem:[%s300 + $0x26] sm:$0xff]
      %v347 = vld [vmem:[%s300 + $0x2e] sm:$0xff]
      %v348 = vld [vmem:[%s300 + $0x36] sm:$0xff]
      %v349 = vld [vmem:[%s300 + $0x3e] sm:$0xff]
      %v350 = vld [vmem:[%s300 + $0x46] sm:$0xff]
      %v351 = vld [vmem:[%s300 + $0x4e] sm:$0xff]
      %v352 = vld [vmem:[%s300 + $0x56] sm:$0xff]
      %v353 = vld [vmem:[%s300 + $0x5e] sm:$0xff]
      %v354 = vld [vmem:[%s300 + $0x66] sm:$0xff]
      %v355 = vld [vmem:[%s300 + $0x6e] sm:$0xff]
      %v356 = vld [vmem:[%s300 + $0x76] sm:$0xff]
      %v357 = vld [vmem:[%s300 + $0x7e] sm:$0xff]
      %v358 = vld [vmem:[%s300 + $0x86] sm:$0xff]
      %v359 = vld [vmem:[%s300 + $0x8e] sm:$0xff]
      %v360 = vld [vmem:[%s300 + $0x96] sm:$0xff]
      %v361 = vld [vmem:[%s300 + $0x9e] sm:$0xff]
      %v362 = vld [vmem:[%s300 + $0xa6] sm:$0xff]
      %v363 = vld [vmem:[%s300 + $0xae] sm:$0xff]
      %v364 = vld [vmem:[%s300 + $0xb6] sm:$0xff]
      %v365 = vld [vmem:[%s300 + $0xbe] sm:$0xff]
      %v366 = vld [vmem:[%s300 + $0xc6] sm:$0xff]
      %v367 = vld [vmem:[%s300 + $0xce] sm:$0xff]
      %v368 = vld [vmem:[%s300 + $0xd6] sm:$0xff]
      %v369 = vld [vmem:[%s300 + $0xde] sm:$0xff]
      %v370 = vld [vmem:[%s300 + $0xe6] sm:$0xff]
      %v371 = vld [vmem:[%s300 + $0xee] sm:$0xff]
      %v372 = vld [vmem:[%s300 + $0xf6] sm:$0xff]
      %v373 = vld [vmem:[%s300 + $0xfe] sm:$0xff]
      %v374 = vld [vmem:[%s300 + $0x106] sm:$0xff]
      %v375 = vld [vmem:[%s300 + $0x10e] sm:$0xff]
      %v376 = vld [vmem:[%s300 + $0x116] sm:$0xff]
      %v377 = vld [vmem:[%s300 + $0x11e] sm:$0xff]
      %v378 = vld [vmem:[%s300 + $0x126] sm:$0xff]
      %v379 = vld [vmem:[%s300 + $0xf] sm:$0xff]
      %v380 = vld [vmem:[%s300 + $0x17] sm:$0xff]
      %v381 = vld [vmem:[%s300 + $0x1f] sm:$0xff]
      %v382 = vld [vmem:[%s300 + $0x27] sm:$0xff]
      %v383 = vld [vmem:[%s300 + $0x2f] sm:$0xff]
      %v384 = vld [vmem:[%s300 + $0x37] sm:$0xff]
      %v385 = vld [vmem:[%s300 + $0x3f] sm:$0xff]
      %v386 = vld [vmem:[%s300 + $0x47] sm:$0xff]
      %v387 = vld [vmem:[%s300 + $0x4f] sm:$0xff]
      %v388 = vld [vmem:[%s300 + $0x57] sm:$0xff]
      %v389 = vld [vmem:[%s300 + $0x5f] sm:$0xff]
      %v390 = vld [vmem:[%s300 + $0x67] sm:$0xff]
      %v391 = vld [vmem:[%s300 + $0x6f] sm:$0xff]
      %v392 = vld [vmem:[%s300 + $0x77] sm:$0xff]
      %v393 = vld [vmem:[%s300 + $0x7f] sm:$0xff]
      %v394 = vld [vmem:[%s300 + $0x87] sm:$0xff]
      %v395 = vld [vmem:[%s300 + $0x8f] sm:$0xff]
      %v396 = vld [vmem:[%s300 + $0x97] sm:$0xff]
      %v397 = vld [vmem:[%s300 + $0x9f] sm:$0xff]
      %v398 = vld [vmem:[%s300 + $0xa7] sm:$0xff]
      %v399 = vld [vmem:[%s300 + $0xaf] sm:$0xff]
      %v400 = vld [vmem:[%s300 + $0xb7] sm:$0xff]
      %v401 = vld [vmem:[%s300 + $0xbf] sm:$0xff]
      %v402 = vld [vmem:[%s300 + $0xc7] sm:$0xff]
      %v403 = vld [vmem:[%s300 + $0xcf] sm:$0xff]
      %v404 = vld [vmem:[%s300 + $0xd7] sm:$0xff]
      %v405 = vld [vmem:[%s300 + $0xdf] sm:$0xff]
      %v406 = vld [vmem:[%s300 + $0xe7] sm:$0xff]
      %v407 = vld [vmem:[%s300 + $0xef] sm:$0xff]
      %v408 = vld [vmem:[%s300 + $0xf7] sm:$0xff]
      %v409 = vld [vmem:[%s300 + $0xff] sm:$0xff]
      %v410 = vld [vmem:[%s300 + $0x107] sm:$0xff]
      %v411 = vld [vmem:[%s300 + $0x10f] sm:$0xff]
      %v412 = vld [vmem:[%s300 + $0x117] sm:$0xff]
      %v413 = vld [vmem:[%s300 + $0x11f] sm:$0xff]
      %v414 = vld [vmem:[%s300 + $0x127] sm:$0xff]
      %v415 = vld [vmem:[%s300 + $0x12f] sm:$0xff]
      %v416 = vld [vmem:[%s300 + $0x137] sm:$0xff]
      %v417 = vld [vmem:[%s300 + $0x20] sm:$0xff]
      %v418 = vld [vmem:[%s300 + $0x28] sm:$0xff]
      %v419 = vld [vmem:[%s300 + $0x30] sm:$0xff]
      %v420 = vld [vmem:[%s300 + $0x38] sm:$0xff]
      %v421 = vld [vmem:[%s300 + $0x40] sm:$0xff]
      %v422 = vld [vmem:[%s300 + $0x48] sm:$0xff]
      %v423 = vld [vmem:[%s300 + $0x50] sm:$0xff]
      %v424 = vld [vmem:[%s300 + $0x58] sm:$0xff]
      %v425 = vld [vmem:[%s300 + $0x60] sm:$0xff]
      %v426 = vld [vmem:[%s300 + $0x68] sm:$0xff]
      %v427 = vld [vmem:[%s300 + $0x70] sm:$0xff]
      %v428 = vld [vmem:[%s300 + $0x78] sm:$0xff]
      %v429 = vld [vmem:[%s300 + $0x80] sm:$0xff]
      %v430 = vld [vmem:[%s300 + $0x88] sm:$0xff]
      %v431 = vld [vmem:[%s300 + $0x90] sm:$0xff]
      %v432 = vld [vmem:[%s300 + $0x98] sm:$0xff]
      %v433 = vld [vmem:[%s300 + $0xa0] sm:$0xff]
      %v434 = vld [vmem:[%s300 + $0xa8] sm:$0xff]
      %v435 = vld [vmem:[%s300 + $0xb0] sm:$0xff]
      %v436 = vld [vmem:[%s300 + $0xb8] sm:$0xff]
      %v437 = vld [vmem:[%s300 + $0xc0] sm:$0xff]
      %v438 = vld [vmem:[%s300 + $0xc8] sm:$0xff]
      %v439 = vld [vmem:[%s300 + $0xd0] sm:$0xff]
      %v440 = vld [vmem:[%s300 + $0xd8] sm:$0xff]
      %v441 = vld [vmem:[%s300 + $0xe0] sm:$0xff]
      %v442 = vld [vmem:[%s300 + $0xe8] sm:$0xff]
      %v443 = vld [vmem:[%s300 + $0xf0] sm:$0xff]
      %v444 = vld [vmem:[%s300 + $0xf8] sm:$0xff]
      %v445 = vld [vmem:[%s300 + $0x100] sm:$0xff]
      %v446 = vld [vmem:[%s300 + $0x108] sm:$0xff]
      %v447 = vld [vmem:[%s300 + $0x110] sm:$0xff]
      %v448 = vld [vmem:[%s300 + $0x118] sm:$0xff]
      %v449 = vld [vmem:[%s300 + $0x120] sm:$0xff]
      %v450 = vld [vmem:[%s300 + $0x128] sm:$0xff]
      %v451 = vld [vmem:[%s300 + $0x130] sm:$0xff]
      %v452 = vld [vmem:[%s300 + $0x138] sm:$0xff]
      %v453 = vld [vmem:[%s300 + $0x21] sm:$0xff]
      %v454 = vld [vmem:[%s300 + $0x29] sm:$0xff]
      %v455 = vld [vmem:[%s300 + $0x31] sm:$0xff]
      %v456 = vld [vmem:[%s300 + $0x39] sm:$0xff]
      %v457 = vld [vmem:[%s300 + $0x41] sm:$0xff]
      %v458 = vld [vmem:[%s300 + $0x49] sm:$0xff]
      %v459 = vld [vmem:[%s300 + $0x51] sm:$0xff]
      %v460 = vld [vmem:[%s300 + $0x59] sm:$0xff]
      %v461 = vld [vmem:[%s300 + $0x61] sm:$0xff]
      %v462 = vld [vmem:[%s300 + $0x69] sm:$0xff]
      %v463 = vld [vmem:[%s300 + $0x71] sm:$0xff]
      %v464 = vld [vmem:[%s300 + $0x79] sm:$0xff]
      %v465 = vld [vmem:[%s300 + $0x81] sm:$0xff]
      %v466 = vld [vmem:[%s300 + $0x89] sm:$0xff]
      %v467 = vld [vmem:[%s300 + $0x91] sm:$0xff]
      %v468 = vld [vmem:[%s300 + $0x99] sm:$0xff]
      %v469 = vld [vmem:[%s300 + $0xa1] sm:$0xff]
      %v470 = vld [vmem:[%s300 + $0xa9] sm:$0xff]
      %v471 = vld [vmem:[%s300 + $0xb1] sm:$0xff]
      %v472 = vld [vmem:[%s300 + $0xb9] sm:$0xff]
      %v473 = vld [vmem:[%s300 + $0xc1] sm:$0xff]
      %v474 = vld [vmem:[%s300 + $0xc9] sm:$0xff]
      %v475 = vld [vmem:[%s300 + $0xd1] sm:$0xff]
      %v476 = vld [vmem:[%s300 + $0xd9] sm:$0xff]
      %v477 = vld [vmem:[%s300 + $0xe1] sm:$0xff]
      %v478 = vld [vmem:[%s300 + $0xe9] sm:$0xff]
      %v479 = vld [vmem:[%s300 + $0xf1] sm:$0xff]
      %v480 = vld [vmem:[%s300 + $0xf9] sm:$0xff]
      %v481 = vld [vmem:[%s300 + $0x101] sm:$0xff]
      %v482 = vld [vmem:[%s300 + $0x109] sm:$0xff]
      %v483 = vld [vmem:[%s300 + $0x111] sm:$0xff]
      %v484 = vld [vmem:[%s300 + $0x119] sm:$0xff]
      %v485 = vld [vmem:[%s300 + $0x121] sm:$0xff]
      %v486 = vld [vmem:[%s300 + $0x129] sm:$0xff]
      %v487 = vld [vmem:[%s300 + $0x131] sm:$0xff]
      %v488 = vld [vmem:[%s300 + $0x139] sm:$0xff]
      %v489 = vld [vmem:[%s300 + $0x141] sm:$0xff]
      %v490 = vld [vmem:[%s300 + $0x149] sm:$0xff]
      %v491 = vld [vmem:[%s300 + $0x32] sm:$0xff]
      %v492 = vld [vmem:[%s300 + $0x3a] sm:$0xff]
      %v493 = vld [vmem:[%s300 + $0x42] sm:$0xff]
      %v494 = vld [vmem:[%s300 + $0x4a] sm:$0xff]
      %v495 = vld [vmem:[%s300 + $0x52] sm:$0xff]
      %v496 = vld [vmem:[%s300 + $0x5a] sm:$0xff]
      %v497 = vld [vmem:[%s300 + $0x62] sm:$0xff]
      %v498 = vld [vmem:[%s300 + $0x6a] sm:$0xff]
      %v499 = vld [vmem:[%s300 + $0x72] sm:$0xff]
      %v500 = vld [vmem:[%s300 + $0x7a] sm:$0xff]
      %v501 = vld [vmem:[%s300 + $0x82] sm:$0xff]
      %v502 = vld [vmem:[%s300 + $0x8a] sm:$0xff]
      %v503 = vld [vmem:[%s300 + $0x92] sm:$0xff]
      %v504 = vld [vmem:[%s300 + $0x9a] sm:$0xff]
      %v505 = vld [vmem:[%s300 + $0xa2] sm:$0xff]
      %v506 = vld [vmem:[%s300 + $0xaa] sm:$0xff]
      %v507 = vld [vmem:[%s300 + $0xb2] sm:$0xff]
      %v508 = vld [vmem:[%s300 + $0xba] sm:$0xff]
      %v509 = vld [vmem:[%s300 + $0xc2] sm:$0xff]
      %v510 = vld [vmem:[%s300 + $0xca] sm:$0xff]
      %v511 = vld [vmem:[%s300 + $0xd2] sm:$0xff]
      %v512 = vld [vmem:[%s300 + $0xda] sm:$0xff]
      %v513 = vld [vmem:[%s300 + $0xe2] sm:$0xff]
      %v514 = vld [vmem:[%s300 + $0xea] sm:$0xff]
      %v515 = vld [vmem:[%s300 + $0xf2] sm:$0xff]
      %v516 = vld [vmem:[%s300 + $0xfa] sm:$0xff]
      %v517 = vld [vmem:[%s300 + $0x102] sm:$0xff]
      %v518 = vld [vmem:[%s300 + $0x10a] sm:$0xff]
      %v519 = vld [vmem:[%s300 + $0x112] sm:$0xff]
      %v520 = vld [vmem:[%s300 + $0x11a] sm:$0xff]
      %v521 = vld [vmem:[%s300 + $0x122] sm:$0xff]
      %v522 = vld [vmem:[%s300 + $0x12a] sm:$0xff]
      %v523 = vld [vmem:[%s300 + $0x132] sm:$0xff]
      %v524 = vld [vmem:[%s300 + $0x13a] sm:$0xff]
      %v525 = vld [vmem:[%s300 + $0x142] sm:$0xff]
      %v526 = vld [vmem:[%s300 + $0x14a] sm:$0xff]
      %v527 = vld [vmem:[%s300 + $0x33] sm:$0xff]
      %v528 = vld [vmem:[%s300 + $0x3b] sm:$0xff]
      %v529 = vld [vmem:[%s300 + $0x43] sm:$0xff]
      %v530 = vld [vmem:[%s300 + $0x4b] sm:$0xff]
      %v531 = vld [vmem:[%s300 + $0x53] sm:$0xff]
      %v532 = vld [vmem:[%s300 + $0x5b] sm:$0xff]
      %v533 = vld [vmem:[%s300 + $0x63] sm:$0xff]
      %v534 = vld [vmem:[%s300 + $0x6b] sm:$0xff]
      %v535 = vld [vmem:[%s300 + $0x73] sm:$0xff]
      %v536 = vld [vmem:[%s300 + $0x7b] sm:$0xff]
      %v537 = vld [vmem:[%s300 + $0x83] sm:$0xff]
      %v538 = vld [vmem:[%s300 + $0x8b] sm:$0xff]
      %v539 = vld [vmem:[%s300 + $0x93] sm:$0xff]
      %v540 = vld [vmem:[%s300 + $0x9b] sm:$0xff]
      %v541 = vld [vmem:[%s300 + $0xa3] sm:$0xff]
      %v542 = vld [vmem:[%s300 + $0xab] sm:$0xff]
      %v543 = vld [vmem:[%s300 + $0xb3] sm:$0xff]
      %v544 = vld [vmem:[%s300 + $0xbb] sm:$0xff]
      %v545 = vld [vmem:[%s300 + $0xc3] sm:$0xff]
      %v546 = vld [vmem:[%s300 + $0xcb] sm:$0xff]
      %v547 = vld [vmem:[%s300 + $0xd3] sm:$0xff]
      %v548 = vld [vmem:[%s300 + $0xdb] sm:$0xff]
      %v549 = vld [vmem:[%s300 + $0xe3] sm:$0xff]
      %v550 = vld [vmem:[%s300 + $0xeb] sm:$0xff]
      %v551 = vld [vmem:[%s300 + $0xf3] sm:$0xff]
      %v552 = vld [vmem:[%s300 + $0xfb] sm:$0xff]
      %v553 = vld [vmem:[%s300 + $0x103] sm:$0xff]
      %v554 = vld [vmem:[%s300 + $0x10b] sm:$0xff]
      %v555 = vld [vmem:[%s300 + $0x113] sm:$0xff]
      %v556 = vld [vmem:[%s300 + $0x11b] sm:$0xff]
      %v557 = vld [vmem:[%s300 + $0x123] sm:$0xff]
      %v558 = vld [vmem:[%s300 + $0x12b] sm:$0xff]
      %v559 = vld [vmem:[%s300 + $0x133] sm:$0xff]
      %v560 = vld [vmem:[%s300 + $0x13b] sm:$0xff]
      %v561 = vld [vmem:[%s300 + $0x143] sm:$0xff]
      %v562 = vld [vmem:[%s300 + $0x14b] sm:$0xff]
      %599 = vrot.lane.b32.xlu0 %v343, 16
      %v600 = vpop.permute.xlu0 %599
      %601 = vrot.lane.b32.xlu0 %v344, 16
      %v602 = vpop.permute.xlu0 %601
      %603 = vrot.lane.b32.xlu0 %v345, 16
      %v604 = vpop.permute.xlu0 %603
      %605 = vrot.lane.b32.xlu0 %v346, 16
      %v606 = vpop.permute.xlu0 %605
      %607 = vrot.lane.b32.xlu0 %v347, 16
      %v608 = vpop.permute.xlu0 %607
      %609 = vrot.lane.b32.xlu0 %v348, 16
      %v610 = vpop.permute.xlu0 %609
      %611 = vrot.lane.b32.xlu0 %v349, 16
      %v612 = vpop.permute.xlu0 %611
      %613 = vrot.lane.b32.xlu0 %v350, 16
      %v614 = vpop.permute.xlu0 %613
      %615 = vrot.lane.b32.xlu0 %v351, 16
      %v616 = vpop.permute.xlu0 %615
      %617 = vrot.lane.b32.xlu0 %v352, 16
      %v618 = vpop.permute.xlu0 %617
      %619 = vrot.lane.b32.xlu0 %v353, 16
      %v620 = vpop.permute.xlu0 %619
      %621 = vrot.lane.b32.xlu0 %v354, 16
      %v622 = vpop.permute.xlu0 %621
      %623 = vrot.lane.b32.xlu0 %v355, 16
      %v624 = vpop.permute.xlu0 %623
      %625 = vrot.lane.b32.xlu0 %v356, 16
      %v626 = vpop.permute.xlu0 %625
      %627 = vrot.lane.b32.xlu0 %v357, 16
      %v628 = vpop.permute.xlu0 %627
      %629 = vrot.lane.b32.xlu0 %v358, 16
      %v630 = vpop.permute.xlu0 %629
      %631 = vrot.lane.b32.xlu0 %v359, 16
      %v632 = vpop.permute.xlu0 %631
      %633 = vrot.lane.b32.xlu0 %v360, 16
      %v634 = vpop.permute.xlu0 %633
      %635 = vrot.lane.b32.xlu0 %v361, 16
      %v636 = vpop.permute.xlu0 %635
      %637 = vrot.lane.b32.xlu0 %v362, 16
      %v638 = vpop.permute.xlu0 %637
      %639 = vrot.lane.b32.xlu0 %v363, 16
      %v640 = vpop.permute.xlu0 %639
      %641 = vrot.lane.b32.xlu0 %v364, 16
      %v642 = vpop.permute.xlu0 %641
      %643 = vrot.lane.b32.xlu0 %v365, 16
      %v644 = vpop.permute.xlu0 %643
      %645 = vrot.lane.b32.xlu0 %v366, 16
      %v646 = vpop.permute.xlu0 %645
      %647 = vrot.lane.b32.xlu0 %v367, 16
      %v648 = vpop.permute.xlu0 %647
      %649 = vrot.lane.b32.xlu0 %v368, 16
      %v650 = vpop.permute.xlu0 %649
      %651 = vrot.lane.b32.xlu0 %v369, 16
      %v652 = vpop.permute.xlu0 %651
      %653 = vrot.lane.b32.xlu0 %v370, 16
      %v654 = vpop.permute.xlu0 %653
      %655 = vrot.lane.b32.xlu0 %v371, 16
      %v656 = vpop.permute.xlu0 %655
      %657 = vrot.lane.b32.xlu0 %v372, 16
      %v658 = vpop.permute.xlu0 %657
      %659 = vrot.lane.b32.xlu0 %v373, 16
      %v660 = vpop.permute.xlu0 %659
      %661 = vrot.lane.b32.xlu0 %v374, 16
      %v662 = vpop.permute.xlu0 %661
      %663 = vrot.lane.b32.xlu0 %v375, 16
      %v664 = vpop.permute.xlu0 %663
      %665 = vrot.lane.b32.xlu0 %v376, 16
      %v666 = vpop.permute.xlu0 %665
      %667 = vrot.lane.b32.xlu0 %v377, 16
      %v668 = vpop.permute.xlu0 %667
      %669 = vrot.lane.b32.xlu0 %v378, 16
      %v670 = vpop.permute.xlu0 %669
      %743 = vrot.lane.b32.xlu0 %v379, 32
      %v744 = vpop.permute.xlu0 %743
      %745 = vrot.lane.b32.xlu0 %v380, 32
      %v746 = vpop.permute.xlu0 %745
      %747 = vrot.lane.b32.xlu0 %v381, 32
      %v748 = vpop.permute.xlu0 %747
      %749 = vrot.lane.b32.xlu0 %v382, 32
      %v750 = vpop.permute.xlu0 %749
      %751 = vrot.lane.b32.xlu0 %v383, 32
      %v752 = vpop.permute.xlu0 %751
      %753 = vrot.lane.b32.xlu0 %v384, 32
      %v754 = vpop.permute.xlu0 %753
      %755 = vrot.lane.b32.xlu0 %v385, 32
      %v756 = vpop.permute.xlu0 %755
      %757 = vrot.lane.b32.xlu0 %v386, 32
      %v758 = vpop.permute.xlu0 %757
      %759 = vrot.lane.b32.xlu0 %v387, 32
      %v760 = vpop.permute.xlu0 %759
      %761 = vrot.lane.b32.xlu0 %v388, 32
      %v762 = vpop.permute.xlu0 %761
      %763 = vrot.lane.b32.xlu0 %v389, 32
      %v764 = vpop.permute.xlu0 %763
      %765 = vrot.lane.b32.xlu0 %v390, 32
      %v766 = vpop.permute.xlu0 %765
      %767 = vrot.lane.b32.xlu0 %v391, 32
      %v768 = vpop.permute.xlu0 %767
      %769 = vrot.lane.b32.xlu0 %v392, 32
      %v770 = vpop.permute.xlu0 %769
      %771 = vrot.lane.b32.xlu0 %v393, 32
      %v772 = vpop.permute.xlu0 %771
      %773 = vrot.lane.b32.xlu0 %v394, 32
      %v774 = vpop.permute.xlu0 %773
      %775 = vrot.lane.b32.xlu0 %v395, 32
      %v776 = vpop.permute.xlu0 %775
      %777 = vrot.lane.b32.xlu0 %v396, 32
      %v778 = vpop.permute.xlu0 %777
      %779 = vrot.lane.b32.xlu0 %v397, 32
      %v780 = vpop.permute.xlu0 %779
      %781 = vrot.lane.b32.xlu0 %v398, 32
      %v782 = vpop.permute.xlu0 %781
      %783 = vrot.lane.b32.xlu0 %v399, 32
      %v784 = vpop.permute.xlu0 %783
      %785 = vrot.lane.b32.xlu0 %v400, 32
      %v786 = vpop.permute.xlu0 %785
      %787 = vrot.lane.b32.xlu0 %v401, 32
      %v788 = vpop.permute.xlu0 %787
      %789 = vrot.lane.b32.xlu0 %v402, 32
      %v790 = vpop.permute.xlu0 %789
      %791 = vrot.lane.b32.xlu0 %v403, 32
      %v792 = vpop.permute.xlu0 %791
      %793 = vrot.lane.b32.xlu0 %v404, 32
      %v794 = vpop.permute.xlu0 %793
      %795 = vrot.lane.b32.xlu0 %v405, 32
      %v796 = vpop.permute.xlu0 %795
      %797 = vrot.lane.b32.xlu0 %v406, 32
      %v798 = vpop.permute.xlu0 %797
      %799 = vrot.lane.b32.xlu0 %v407, 32
      %v800 = vpop.permute.xlu0 %799
      %801 = vrot.lane.b32.xlu0 %v408, 32
      %v802 = vpop.permute.xlu0 %801
      %803 = vrot.lane.b32.xlu0 %v409, 32
      %v804 = vpop.permute.xlu0 %803
      %805 = vrot.lane.b32.xlu0 %v410, 32
      %v806 = vpop.permute.xlu0 %805
      %807 = vrot.lane.b32.xlu0 %v411, 32
      %v808 = vpop.permute.xlu0 %807
      %809 = vrot.lane.b32.xlu0 %v412, 32
      %v810 = vpop.permute.xlu0 %809
      %811 = vrot.lane.b32.xlu0 %v413, 32
      %v812 = vpop.permute.xlu0 %811
      %813 = vrot.lane.b32.xlu0 %v414, 32
      %v814 = vpop.permute.xlu0 %813
      %853 = vrot.lane.b32.xlu0 %v381, 48
      %v854 = vpop.permute.xlu0 %853
      %855 = vrot.lane.b32.xlu0 %v382, 48
      %v856 = vpop.permute.xlu0 %855
      %857 = vrot.lane.b32.xlu0 %v383, 48
      %v858 = vpop.permute.xlu0 %857
      %859 = vrot.lane.b32.xlu0 %v384, 48
      %v860 = vpop.permute.xlu0 %859
      %861 = vrot.lane.b32.xlu0 %v385, 48
      %v862 = vpop.permute.xlu0 %861
      %863 = vrot.lane.b32.xlu0 %v386, 48
      %v864 = vpop.permute.xlu0 %863
      %865 = vrot.lane.b32.xlu0 %v387, 48
      %v866 = vpop.permute.xlu0 %865
      %867 = vrot.lane.b32.xlu0 %v388, 48
      %v868 = vpop.permute.xlu0 %867
      %869 = vrot.lane.b32.xlu0 %v389, 48
      %v870 = vpop.permute.xlu0 %869
      %871 = vrot.lane.b32.xlu0 %v390, 48
      %v872 = vpop.permute.xlu0 %871
      %873 = vrot.lane.b32.xlu0 %v391, 48
      %v874 = vpop.permute.xlu0 %873
      %875 = vrot.lane.b32.xlu0 %v392, 48
      %v876 = vpop.permute.xlu0 %875
      %877 = vrot.lane.b32.xlu0 %v393, 48
      %v878 = vpop.permute.xlu0 %877
      %879 = vrot.lane.b32.xlu0 %v394, 48
      %v880 = vpop.permute.xlu0 %879
      %881 = vrot.lane.b32.xlu0 %v395, 48
      %v882 = vpop.permute.xlu0 %881
      %883 = vrot.lane.b32.xlu0 %v396, 48
      %v884 = vpop.permute.xlu0 %883
      %885 = vrot.lane.b32.xlu0 %v397, 48
      %v886 = vpop.permute.xlu0 %885
      %887 = vrot.lane.b32.xlu0 %v398, 48
      %v888 = vpop.permute.xlu0 %887
      %889 = vrot.lane.b32.xlu0 %v399, 48
      %v890 = vpop.permute.xlu0 %889
      %891 = vrot.lane.b32.xlu0 %v400, 48
      %v892 = vpop.permute.xlu0 %891
      %893 = vrot.lane.b32.xlu0 %v401, 48
      %v894 = vpop.permute.xlu0 %893
      %895 = vrot.lane.b32.xlu0 %v402, 48
      %v896 = vpop.permute.xlu0 %895
      %897 = vrot.lane.b32.xlu0 %v403, 48
      %v898 = vpop.permute.xlu0 %897
      %899 = vrot.lane.b32.xlu0 %v404, 48
      %v900 = vpop.permute.xlu0 %899
      %901 = vrot.lane.b32.xlu0 %v405, 48
      %v902 = vpop.permute.xlu0 %901
      %903 = vrot.lane.b32.xlu0 %v406, 48
      %v904 = vpop.permute.xlu0 %903
      %905 = vrot.lane.b32.xlu0 %v407, 48
      %v906 = vpop.permute.xlu0 %905
      %907 = vrot.lane.b32.xlu0 %v408, 48
      %v908 = vpop.permute.xlu0 %907
      %909 = vrot.lane.b32.xlu0 %v409, 48
      %v910 = vpop.permute.xlu0 %909
      %911 = vrot.lane.b32.xlu0 %v410, 48
      %v912 = vpop.permute.xlu0 %911
      %913 = vrot.lane.b32.xlu0 %v411, 48
      %v914 = vpop.permute.xlu0 %913
      %915 = vrot.lane.b32.xlu0 %v412, 48
      %v916 = vpop.permute.xlu0 %915
      %917 = vrot.lane.b32.xlu0 %v413, 48
      %v918 = vpop.permute.xlu0 %917
      %919 = vrot.lane.b32.xlu0 %v414, 48
      %v920 = vpop.permute.xlu0 %919
      %921 = vrot.lane.b32.xlu0 %v415, 48
      %v922 = vpop.permute.xlu0 %921
      %923 = vrot.lane.b32.xlu0 %v416, 48
      %v924 = vpop.permute.xlu0 %923
      %997 = vrot.lane.b32.xlu0 %v417, 64
      %v998 = vpop.permute.xlu0 %997
      %999 = vrot.lane.b32.xlu0 %v418, 64
      %v1000 = vpop.permute.xlu0 %999
      %1001 = vrot.lane.b32.xlu0 %v419, 64
      %v1002 = vpop.permute.xlu0 %1001
      %1003 = vrot.lane.b32.xlu0 %v420, 64
      %v1004 = vpop.permute.xlu0 %1003
      %1005 = vrot.lane.b32.xlu0 %v421, 64
      %v1006 = vpop.permute.xlu0 %1005
      %1007 = vrot.lane.b32.xlu0 %v422, 64
      %v1008 = vpop.permute.xlu0 %1007
      %1009 = vrot.lane.b32.xlu0 %v423, 64
      %v1010 = vpop.permute.xlu0 %1009
      %1011 = vrot.lane.b32.xlu0 %v424, 64
      %v1012 = vpop.permute.xlu0 %1011
      %1013 = vrot.lane.b32.xlu0 %v425, 64
      %v1014 = vpop.permute.xlu0 %1013
      %1015 = vrot.lane.b32.xlu0 %v426, 64
      %v1016 = vpop.permute.xlu0 %1015
      %1017 = vrot.lane.b32.xlu0 %v427, 64
      %v1018 = vpop.permute.xlu0 %1017
      %1019 = vrot.lane.b32.xlu0 %v428, 64
      %v1020 = vpop.permute.xlu0 %1019
      %1021 = vrot.lane.b32.xlu0 %v429, 64
      %v1022 = vpop.permute.xlu0 %1021
      %1023 = vrot.lane.b32.xlu0 %v430, 64
      %v1024 = vpop.permute.xlu0 %1023
      %1025 = vrot.lane.b32.xlu0 %v431, 64
      %v1026 = vpop.permute.xlu0 %1025
      %1027 = vrot.lane.b32.xlu0 %v432, 64
      %v1028 = vpop.permute.xlu0 %1027
      %1029 = vrot.lane.b32.xlu0 %v433, 64
      %v1030 = vpop.permute.xlu0 %1029
      %1031 = vrot.lane.b32.xlu0 %v434, 64
      %v1032 = vpop.permute.xlu0 %1031
      %1033 = vrot.lane.b32.xlu0 %v435, 64
      %v1034 = vpop.permute.xlu0 %1033
      %1035 = vrot.lane.b32.xlu0 %v436, 64
      %v1036 = vpop.permute.xlu0 %1035
      %1037 = vrot.lane.b32.xlu0 %v437, 64
      %v1038 = vpop.permute.xlu0 %1037
      %1039 = vrot.lane.b32.xlu0 %v438, 64
      %v1040 = vpop.permute.xlu0 %1039
      %1041 = vrot.lane.b32.xlu0 %v439, 64
      %v1042 = vpop.permute.xlu0 %1041
      %1043 = vrot.lane.b32.xlu0 %v440, 64
      %v1044 = vpop.permute.xlu0 %1043
      %1045 = vrot.lane.b32.xlu0 %v441, 64
      %v1046 = vpop.permute.xlu0 %1045
      %1047 = vrot.lane.b32.xlu0 %v442, 64
      %v1048 = vpop.permute.xlu0 %1047
      %1049 = vrot.lane.b32.xlu0 %v443, 64
      %v1050 = vpop.permute.xlu0 %1049
      %1051 = vrot.lane.b32.xlu0 %v444, 64
      %v1052 = vpop.permute.xlu0 %1051
      %1053 = vrot.lane.b32.xlu0 %v445, 64
      %v1054 = vpop.permute.xlu0 %1053
      %1055 = vrot.lane.b32.xlu0 %v446, 64
      %v1056 = vpop.permute.xlu0 %1055
      %1057 = vrot.lane.b32.xlu0 %v447, 64
      %v1058 = vpop.permute.xlu0 %1057
      %1059 = vrot.lane.b32.xlu0 %v448, 64
      %v1060 = vpop.permute.xlu0 %1059
      %1061 = vrot.lane.b32.xlu0 %v449, 64
      %v1062 = vpop.permute.xlu0 %1061
      %1063 = vrot.lane.b32.xlu0 %v450, 64
      %v1064 = vpop.permute.xlu0 %1063
      %1065 = vrot.lane.b32.xlu0 %v451, 64
      %v1066 = vpop.permute.xlu0 %1065
      %1067 = vrot.lane.b32.xlu0 %v452, 64
      %v1068 = vpop.permute.xlu0 %1067
      %1141 = vrot.lane.b32.xlu0 %v453, 80
      %v1142 = vpop.permute.xlu0 %1141
      %1143 = vrot.lane.b32.xlu0 %v454, 80
      %v1144 = vpop.permute.xlu0 %1143
      %1145 = vrot.lane.b32.xlu0 %v455, 80
      %v1146 = vpop.permute.xlu0 %1145
      %1147 = vrot.lane.b32.xlu0 %v456, 80
      %v1148 = vpop.permute.xlu0 %1147
      %1149 = vrot.lane.b32.xlu0 %v457, 80
      %v1150 = vpop.permute.xlu0 %1149
      %1151 = vrot.lane.b32.xlu0 %v458, 80
      %v1152 = vpop.permute.xlu0 %1151
      %1153 = vrot.lane.b32.xlu0 %v459, 80
      %v1154 = vpop.permute.xlu0 %1153
      %1155 = vrot.lane.b32.xlu0 %v460, 80
      %v1156 = vpop.permute.xlu0 %1155
      %1157 = vrot.lane.b32.xlu0 %v461, 80
      %v1158 = vpop.permute.xlu0 %1157
      %1159 = vrot.lane.b32.xlu0 %v462, 80
      %v1160 = vpop.permute.xlu0 %1159
      %1161 = vrot.lane.b32.xlu0 %v463, 80
      %v1162 = vpop.permute.xlu0 %1161
      %1163 = vrot.lane.b32.xlu0 %v464, 80
      %v1164 = vpop.permute.xlu0 %1163
      %1165 = vrot.lane.b32.xlu0 %v465, 80
      %v1166 = vpop.permute.xlu0 %1165
      %1167 = vrot.lane.b32.xlu0 %v466, 80
      %v1168 = vpop.permute.xlu0 %1167
      %1169 = vrot.lane.b32.xlu0 %v467, 80
      %v1170 = vpop.permute.xlu0 %1169
      %1171 = vrot.lane.b32.xlu0 %v468, 80
      %v1172 = vpop.permute.xlu0 %1171
      %1173 = vrot.lane.b32.xlu0 %v469, 80
      %v1174 = vpop.permute.xlu0 %1173
      %1175 = vrot.lane.b32.xlu0 %v470, 80
      %v1176 = vpop.permute.xlu0 %1175
      %1177 = vrot.lane.b32.xlu0 %v471, 80
      %v1178 = vpop.permute.xlu0 %1177
      %1179 = vrot.lane.b32.xlu0 %v472, 80
      %v1180 = vpop.permute.xlu0 %1179
      %1181 = vrot.lane.b32.xlu0 %v473, 80
      %v1182 = vpop.permute.xlu0 %1181
      %1183 = vrot.lane.b32.xlu0 %v474, 80
      %v1184 = vpop.permute.xlu0 %1183
      %1185 = vrot.lane.b32.xlu0 %v475, 80
      %v1186 = vpop.permute.xlu0 %1185
      %1187 = vrot.lane.b32.xlu0 %v476, 80
      %v1188 = vpop.permute.xlu0 %1187
      %1189 = vrot.lane.b32.xlu0 %v477, 80
      %v1190 = vpop.permute.xlu0 %1189
      %1191 = vrot.lane.b32.xlu0 %v478, 80
      %v1192 = vpop.permute.xlu0 %1191
      %1193 = vrot.lane.b32.xlu0 %v479, 80
      %v1194 = vpop.permute.xlu0 %1193
      %1195 = vrot.lane.b32.xlu0 %v480, 80
      %v1196 = vpop.permute.xlu0 %1195
      %1197 = vrot.lane.b32.xlu0 %v481, 80
      %v1198 = vpop.permute.xlu0 %1197
      %1199 = vrot.lane.b32.xlu0 %v482, 80
      %v1200 = vpop.permute.xlu0 %1199
      %1201 = vrot.lane.b32.xlu0 %v483, 80
      %v1202 = vpop.permute.xlu0 %1201
      %1203 = vrot.lane.b32.xlu0 %v484, 80
      %v1204 = vpop.permute.xlu0 %1203
      %1205 = vrot.lane.b32.xlu0 %v485, 80
      %v1206 = vpop.permute.xlu0 %1205
      %1207 = vrot.lane.b32.xlu0 %v486, 80
      %v1208 = vpop.permute.xlu0 %1207
      %1209 = vrot.lane.b32.xlu0 %v487, 80
      %v1210 = vpop.permute.xlu0 %1209
      %1211 = vrot.lane.b32.xlu0 %v488, 80
      %v1212 = vpop.permute.xlu0 %1211
      %1251 = vrot.lane.b32.xlu0 %v455, 96
      %v1252 = vpop.permute.xlu0 %1251
      %1253 = vrot.lane.b32.xlu0 %v456, 96
      %v1254 = vpop.permute.xlu0 %1253
      %1255 = vrot.lane.b32.xlu0 %v457, 96
      %v1256 = vpop.permute.xlu0 %1255
      %1257 = vrot.lane.b32.xlu0 %v458, 96
      %v1258 = vpop.permute.xlu0 %1257
      %1259 = vrot.lane.b32.xlu0 %v459, 96
      %v1260 = vpop.permute.xlu0 %1259
      %1261 = vrot.lane.b32.xlu0 %v460, 96
      %v1262 = vpop.permute.xlu0 %1261
      %1263 = vrot.lane.b32.xlu0 %v461, 96
      %v1264 = vpop.permute.xlu0 %1263
      %1265 = vrot.lane.b32.xlu0 %v462, 96
      %v1266 = vpop.permute.xlu0 %1265
      %1267 = vrot.lane.b32.xlu0 %v463, 96
      %v1268 = vpop.permute.xlu0 %1267
      %1269 = vrot.lane.b32.xlu0 %v464, 96
      %v1270 = vpop.permute.xlu0 %1269
      %1271 = vrot.lane.b32.xlu0 %v465, 96
      %v1272 = vpop.permute.xlu0 %1271
      %1273 = vrot.lane.b32.xlu0 %v466, 96
      %v1274 = vpop.permute.xlu0 %1273
      %1275 = vrot.lane.b32.xlu0 %v467, 96
      %v1276 = vpop.permute.xlu0 %1275
      %1277 = vrot.lane.b32.xlu0 %v468, 96
      %v1278 = vpop.permute.xlu0 %1277
      %1279 = vrot.lane.b32.xlu0 %v469, 96
      %v1280 = vpop.permute.xlu0 %1279
      %1281 = vrot.lane.b32.xlu0 %v470, 96
      %v1282 = vpop.permute.xlu0 %1281
      %1283 = vrot.lane.b32.xlu0 %v471, 96
      %v1284 = vpop.permute.xlu0 %1283
      %1285 = vrot.lane.b32.xlu0 %v472, 96
      %v1286 = vpop.permute.xlu0 %1285
      %1287 = vrot.lane.b32.xlu0 %v473, 96
      %v1288 = vpop.permute.xlu0 %1287
      %1289 = vrot.lane.b32.xlu0 %v474, 96
      %v1290 = vpop.permute.xlu0 %1289
      %1291 = vrot.lane.b32.xlu0 %v475, 96
      %v1292 = vpop.permute.xlu0 %1291
      %1293 = vrot.lane.b32.xlu0 %v476, 96
      %v1294 = vpop.permute.xlu0 %1293
      %1295 = vrot.lane.b32.xlu0 %v477, 96
      %v1296 = vpop.permute.xlu0 %1295
      %1297 = vrot.lane.b32.xlu0 %v478, 96
      %v1298 = vpop.permute.xlu0 %1297
      %1299 = vrot.lane.b32.xlu0 %v479, 96
      %v1300 = vpop.permute.xlu0 %1299
      %1301 = vrot.lane.b32.xlu0 %v480, 96
      %v1302 = vpop.permute.xlu0 %1301
      %1303 = vrot.lane.b32.xlu0 %v481, 96
      %v1304 = vpop.permute.xlu0 %1303
      %1305 = vrot.lane.b32.xlu0 %v482, 96
      %v1306 = vpop.permute.xlu0 %1305
      %1307 = vrot.lane.b32.xlu0 %v483, 96
      %v1308 = vpop.permute.xlu0 %1307
      %1309 = vrot.lane.b32.xlu0 %v484, 96
      %v1310 = vpop.permute.xlu0 %1309
      %1311 = vrot.lane.b32.xlu0 %v485, 96
      %v1312 = vpop.permute.xlu0 %1311
      %1313 = vrot.lane.b32.xlu0 %v486, 96
      %v1314 = vpop.permute.xlu0 %1313
      %1315 = vrot.lane.b32.xlu0 %v487, 96
      %v1316 = vpop.permute.xlu0 %1315
      %1317 = vrot.lane.b32.xlu0 %v488, 96
      %v1318 = vpop.permute.xlu0 %1317
      %1319 = vrot.lane.b32.xlu0 %v489, 96
      %v1320 = vpop.permute.xlu0 %1319
      %1321 = vrot.lane.b32.xlu0 %v490, 96
      %v1322 = vpop.permute.xlu0 %1321
      %1395 = vrot.lane.b32.xlu0 %v491, 112
      %v1396 = vpop.permute.xlu0 %1395
      %1397 = vrot.lane.b32.xlu0 %v492, 112
      %v1398 = vpop.permute.xlu0 %1397
      %1399 = vrot.lane.b32.xlu0 %v493, 112
      %v1400 = vpop.permute.xlu0 %1399
      %1401 = vrot.lane.b32.xlu0 %v494, 112
      %v1402 = vpop.permute.xlu0 %1401
      %1403 = vrot.lane.b32.xlu0 %v495, 112
      %v1404 = vpop.permute.xlu0 %1403
      %1405 = vrot.lane.b32.xlu0 %v496, 112
      %v1406 = vpop.permute.xlu0 %1405
      %1407 = vrot.lane.b32.xlu0 %v497, 112
      %v1408 = vpop.permute.xlu0 %1407
      %1409 = vrot.lane.b32.xlu0 %v498, 112
      %v1410 = vpop.permute.xlu0 %1409
      %1411 = vrot.lane.b32.xlu0 %v499, 112
      %v1412 = vpop.permute.xlu0 %1411
      %1413 = vrot.lane.b32.xlu0 %v500, 112
      %v1414 = vpop.permute.xlu0 %1413
      %1415 = vrot.lane.b32.xlu0 %v501, 112
      %v1416 = vpop.permute.xlu0 %1415
      %1417 = vrot.lane.b32.xlu0 %v502, 112
      %v1418 = vpop.permute.xlu0 %1417
      %1419 = vrot.lane.b32.xlu0 %v503, 112
      %v1420 = vpop.permute.xlu0 %1419
      %1421 = vrot.lane.b32.xlu0 %v504, 112
      %v1422 = vpop.permute.xlu0 %1421
      %1423 = vrot.lane.b32.xlu0 %v505, 112
      %v1424 = vpop.permute.xlu0 %1423
      %1425 = vrot.lane.b32.xlu0 %v506, 112
      %v1426 = vpop.permute.xlu0 %1425
      %1427 = vrot.lane.b32.xlu0 %v507, 112
      %v1428 = vpop.permute.xlu0 %1427
      %1429 = vrot.lane.b32.xlu0 %v508, 112
      %v1430 = vpop.permute.xlu0 %1429
      %1431 = vrot.lane.b32.xlu0 %v509, 112
      %v1432 = vpop.permute.xlu0 %1431
      %1433 = vrot.lane.b32.xlu0 %v510, 112
      %v1434 = vpop.permute.xlu0 %1433
      %1435 = vrot.lane.b32.xlu0 %v511, 112
      %v1436 = vpop.permute.xlu0 %1435
      %1437 = vrot.lane.b32.xlu0 %v512, 112
      %v1438 = vpop.permute.xlu0 %1437
      %1439 = vrot.lane.b32.xlu0 %v513, 112
      %v1440 = vpop.permute.xlu0 %1439
      %1441 = vrot.lane.b32.xlu0 %v514, 112
      %v1442 = vpop.permute.xlu0 %1441
      %1443 = vrot.lane.b32.xlu0 %v515, 112
      %v1444 = vpop.permute.xlu0 %1443
      %1445 = vrot.lane.b32.xlu0 %v516, 112
      %v1446 = vpop.permute.xlu0 %1445
      %1447 = vrot.lane.b32.xlu0 %v517, 112
      %v1448 = vpop.permute.xlu0 %1447
      %1449 = vrot.lane.b32.xlu0 %v518, 112
      %v1450 = vpop.permute.xlu0 %1449
      %1451 = vrot.lane.b32.xlu0 %v519, 112
      %v1452 = vpop.permute.xlu0 %1451
      %1453 = vrot.lane.b32.xlu0 %v520, 112
      %v1454 = vpop.permute.xlu0 %1453
      %1455 = vrot.lane.b32.xlu0 %v521, 112
      %v1456 = vpop.permute.xlu0 %1455
      %1457 = vrot.lane.b32.xlu0 %v522, 112
      %v1458 = vpop.permute.xlu0 %1457
      %1459 = vrot.lane.b32.xlu0 %v523, 112
      %v1460 = vpop.permute.xlu0 %1459
      %1461 = vrot.lane.b32.xlu0 %v524, 112
      %v1462 = vpop.permute.xlu0 %1461
      %1463 = vrot.lane.b32.xlu0 %v525, 112
      %v1464 = vpop.permute.xlu0 %1463
      %1465 = vrot.lane.b32.xlu0 %v526, 112
      %v1466 = vpop.permute.xlu0 %1465
      %vm1503 = vcmask 130048
      %v1504 = vsel %vm1503, %v307, %v600
      %v1505 = vsel %vm1503, %v308, %v602
      %v1506 = vsel %vm1503, %v309, %v604
      %v1507 = vsel %vm1503, %v310, %v606
      %v1508 = vsel %vm1503, %v311, %v608
      %v1509 = vsel %vm1503, %v312, %v610
      %v1510 = vsel %vm1503, %v313, %v612
      %v1511 = vsel %vm1503, %v314, %v614
      %v1512 = vsel %vm1503, %v315, %v616
      %v1513 = vsel %vm1503, %v316, %v618
      %v1514 = vsel %vm1503, %v317, %v620
      %v1515 = vsel %vm1503, %v318, %v622
      %v1516 = vsel %vm1503, %v319, %v624
      %v1517 = vsel %vm1503, %v320, %v626
      %v1518 = vsel %vm1503, %v321, %v628
      %v1519 = vsel %vm1503, %v322, %v630
      %v1520 = vsel %vm1503, %v323, %v632
      %v1521 = vsel %vm1503, %v324, %v634
      %v1522 = vsel %vm1503, %v325, %v636
      %v1523 = vsel %vm1503, %v326, %v638
      %v1524 = vsel %vm1503, %v327, %v640
      %v1525 = vsel %vm1503, %v328, %v642
      %v1526 = vsel %vm1503, %v329, %v644
      %v1527 = vsel %vm1503, %v330, %v646
      %v1528 = vsel %vm1503, %v331, %v648
      %v1529 = vsel %vm1503, %v332, %v650
      %v1530 = vsel %vm1503, %v333, %v652
      %v1531 = vsel %vm1503, %v334, %v654
      %v1532 = vsel %vm1503, %v335, %v656
      %v1533 = vsel %vm1503, %v336, %v658
      %v1534 = vsel %vm1503, %v337, %v660
      %v1535 = vsel %vm1503, %v338, %v662
      %v1536 = vsel %vm1503, %v339, %v664
      %v1537 = vsel %vm1503, %v340, %v666
      %v1538 = vsel %vm1503, %v341, %v668
      %v1539 = vsel %vm1503, %v342, %v670
      %vm1540 = vcmask 261120
      %v1541 = vsel %vm1540, %v1504, %v744
      %v1542 = vsel %vm1540, %v1505, %v746
      %v1543 = vsel %vm1540, %v1506, %v748
      %v1544 = vsel %vm1540, %v1507, %v750
      %v1545 = vsel %vm1540, %v1508, %v752
      %v1546 = vsel %vm1540, %v1509, %v754
      %v1547 = vsel %vm1540, %v1510, %v756
      %v1548 = vsel %vm1540, %v1511, %v758
      %v1549 = vsel %vm1540, %v1512, %v760
      %v1550 = vsel %vm1540, %v1513, %v762
      %v1551 = vsel %vm1540, %v1514, %v764
      %v1552 = vsel %vm1540, %v1515, %v766
      %v1553 = vsel %vm1540, %v1516, %v768
      %v1554 = vsel %vm1540, %v1517, %v770
      %v1555 = vsel %vm1540, %v1518, %v772
      %v1556 = vsel %vm1540, %v1519, %v774
      %v1557 = vsel %vm1540, %v1520, %v776
      %v1558 = vsel %vm1540, %v1521, %v778
      %v1559 = vsel %vm1540, %v1522, %v780
      %v1560 = vsel %vm1540, %v1523, %v782
      %v1561 = vsel %vm1540, %v1524, %v784
      %v1562 = vsel %vm1540, %v1525, %v786
      %v1563 = vsel %vm1540, %v1526, %v788
      %v1564 = vsel %vm1540, %v1527, %v790
      %v1565 = vsel %vm1540, %v1528, %v792
      %v1566 = vsel %vm1540, %v1529, %v794
      %v1567 = vsel %vm1540, %v1530, %v796
      %v1568 = vsel %vm1540, %v1531, %v798
      %v1569 = vsel %vm1540, %v1532, %v800
      %v1570 = vsel %vm1540, %v1533, %v802
      %v1571 = vsel %vm1540, %v1534, %v804
      %v1572 = vsel %vm1540, %v1535, %v806
      %v1573 = vsel %vm1540, %v1536, %v808
      %v1574 = vsel %vm1540, %v1537, %v810
      %v1575 = vsel %vm1540, %v1538, %v812
      %v1576 = vsel %vm1540, %v1539, %v814
      %vm1577 = vcmask 392192
      %v1578 = vsel %vm1577, %v1541, %v854
      %v1579 = vsel %vm1577, %v1542, %v856
      %v1580 = vsel %vm1577, %v1543, %v858
      %v1581 = vsel %vm1577, %v1544, %v860
      %v1582 = vsel %vm1577, %v1545, %v862
      %v1583 = vsel %vm1577, %v1546, %v864
      %v1584 = vsel %vm1577, %v1547, %v866
      %v1585 = vsel %vm1577, %v1548, %v868
      %v1586 = vsel %vm1577, %v1549, %v870
      %v1587 = vsel %vm1577, %v1550, %v872
      %v1588 = vsel %vm1577, %v1551, %v874
      %v1589 = vsel %vm1577, %v1552, %v876
      %v1590 = vsel %vm1577, %v1553, %v878
      %v1591 = vsel %vm1577, %v1554, %v880
      %v1592 = vsel %vm1577, %v1555, %v882
      %v1593 = vsel %vm1577, %v1556, %v884
      %v1594 = vsel %vm1577, %v1557, %v886
      %v1595 = vsel %vm1577, %v1558, %v888
      %v1596 = vsel %vm1577, %v1559, %v890
      %v1597 = vsel %vm1577, %v1560, %v892
      %v1598 = vsel %vm1577, %v1561, %v894
      %v1599 = vsel %vm1577, %v1562, %v896
      %v1600 = vsel %vm1577, %v1563, %v898
      %v1601 = vsel %vm1577, %v1564, %v900
      %v1602 = vsel %vm1577, %v1565, %v902
      %v1603 = vsel %vm1577, %v1566, %v904
      %v1604 = vsel %vm1577, %v1567, %v906
      %v1605 = vsel %vm1577, %v1568, %v908
      %v1606 = vsel %vm1577, %v1569, %v910
      %v1607 = vsel %vm1577, %v1570, %v912
      %v1608 = vsel %vm1577, %v1571, %v914
      %v1609 = vsel %vm1577, %v1572, %v916
      %v1610 = vsel %vm1577, %v1573, %v918
      %v1611 = vsel %vm1577, %v1574, %v920
      %v1612 = vsel %vm1577, %v1575, %v922
      %v1613 = vsel %vm1577, %v1576, %v924
      %vm1614 = vcmask 523264
      %v1615 = vsel %vm1614, %v1578, %v998
      %v1616 = vsel %vm1614, %v1579, %v1000
      %v1617 = vsel %vm1614, %v1580, %v1002
      %v1618 = vsel %vm1614, %v1581, %v1004
      %v1619 = vsel %vm1614, %v1582, %v1006
      %v1620 = vsel %vm1614, %v1583, %v1008
      %v1621 = vsel %vm1614, %v1584, %v1010
      %v1622 = vsel %vm1614, %v1585, %v1012
      %v1623 = vsel %vm1614, %v1586, %v1014
      %v1624 = vsel %vm1614, %v1587, %v1016
      %v1625 = vsel %vm1614, %v1588, %v1018
      %v1626 = vsel %vm1614, %v1589, %v1020
      %v1627 = vsel %vm1614, %v1590, %v1022
      %v1628 = vsel %vm1614, %v1591, %v1024
      %v1629 = vsel %vm1614, %v1592, %v1026
      %v1630 = vsel %vm1614, %v1593, %v1028
      %v1631 = vsel %vm1614, %v1594, %v1030
      %v1632 = vsel %vm1614, %v1595, %v1032
      %v1633 = vsel %vm1614, %v1596, %v1034
      %v1634 = vsel %vm1614, %v1597, %v1036
      %v1635 = vsel %vm1614, %v1598, %v1038
      %v1636 = vsel %vm1614, %v1599, %v1040
      %v1637 = vsel %vm1614, %v1600, %v1042
      %v1638 = vsel %vm1614, %v1601, %v1044
      %v1639 = vsel %vm1614, %v1602, %v1046
      %v1640 = vsel %vm1614, %v1603, %v1048
      %v1641 = vsel %vm1614, %v1604, %v1050
      %v1642 = vsel %vm1614, %v1605, %v1052
      %v1643 = vsel %vm1614, %v1606, %v1054
      %v1644 = vsel %vm1614, %v1607, %v1056
      %v1645 = vsel %vm1614, %v1608, %v1058
      %v1646 = vsel %vm1614, %v1609, %v1060
      %v1647 = vsel %vm1614, %v1610, %v1062
      %v1648 = vsel %vm1614, %v1611, %v1064
      %v1649 = vsel %vm1614, %v1612, %v1066
      %v1650 = vsel %vm1614, %v1613, %v1068
      %vm1651 = vcmask 654336
      %v1652 = vsel %vm1651, %v1615, %v1142
      %v1653 = vsel %vm1651, %v1616, %v1144
      %v1654 = vsel %vm1651, %v1617, %v1146
      %v1655 = vsel %vm1651, %v1618, %v1148
      %v1656 = vsel %vm1651, %v1619, %v1150
      %v1657 = vsel %vm1651, %v1620, %v1152
      %v1658 = vsel %vm1651, %v1621, %v1154
      %v1659 = vsel %vm1651, %v1622, %v1156
      %v1660 = vsel %vm1651, %v1623, %v1158
      %v1661 = vsel %vm1651, %v1624, %v1160
      %v1662 = vsel %vm1651, %v1625, %v1162
      %v1663 = vsel %vm1651, %v1626, %v1164
      %v1664 = vsel %vm1651, %v1627, %v1166
      %v1665 = vsel %vm1651, %v1628, %v1168
      %v1666 = vsel %vm1651, %v1629, %v1170
      %v1667 = vsel %vm1651, %v1630, %v1172
      %v1668 = vsel %vm1651, %v1631, %v1174
      %v1669 = vsel %vm1651, %v1632, %v1176
      %v1670 = vsel %vm1651, %v1633, %v1178
      %v1671 = vsel %vm1651, %v1634, %v1180
      %v1672 = vsel %vm1651, %v1635, %v1182
      %v1673 = vsel %vm1651, %v1636, %v1184
      %v1674 = vsel %vm1651, %v1637, %v1186
      %v1675 = vsel %vm1651, %v1638, %v1188
      %v1676 = vsel %vm1651, %v1639, %v1190
      %v1677 = vsel %vm1651, %v1640, %v1192
      %v1678 = vsel %vm1651, %v1641, %v1194
      %v1679 = vsel %vm1651, %v1642, %v1196
      %v1680 = vsel %vm1651, %v1643, %v1198
      %v1681 = vsel %vm1651, %v1644, %v1200
      %v1682 = vsel %vm1651, %v1645, %v1202
      %v1683 = vsel %vm1651, %v1646, %v1204
      %v1684 = vsel %vm1651, %v1647, %v1206
      %v1685 = vsel %vm1651, %v1648, %v1208
      %v1686 = vsel %vm1651, %v1649, %v1210
      %v1687 = vsel %vm1651, %v1650, %v1212
      %vm1688 = vcmask 785408
      %v1689 = vsel %vm1688, %v1652, %v1252
      %v1690 = vsel %vm1688, %v1653, %v1254
      %v1691 = vsel %vm1688, %v1654, %v1256
      %v1692 = vsel %vm1688, %v1655, %v1258
      %v1693 = vsel %vm1688, %v1656, %v1260
      %v1694 = vsel %vm1688, %v1657, %v1262
      %v1695 = vsel %vm1688, %v1658, %v1264
      %v1696 = vsel %vm1688, %v1659, %v1266
      %v1697 = vsel %vm1688, %v1660, %v1268
      %v1698 = vsel %vm1688, %v1661, %v1270
      %v1699 = vsel %vm1688, %v1662, %v1272
      %v1700 = vsel %vm1688, %v1663, %v1274
      %v1701 = vsel %vm1688, %v1664, %v1276
      %v1702 = vsel %vm1688, %v1665, %v1278
      %v1703 = vsel %vm1688, %v1666, %v1280
      %v1704 = vsel %vm1688, %v1667, %v1282
      %v1705 = vsel %vm1688, %v1668, %v1284
      %v1706 = vsel %vm1688, %v1669, %v1286
      %v1707 = vsel %vm1688, %v1670, %v1288
      %v1708 = vsel %vm1688, %v1671, %v1290
      %v1709 = vsel %vm1688, %v1672, %v1292
      %v1710 = vsel %vm1688, %v1673, %v1294
      %v1711 = vsel %vm1688, %v1674, %v1296
      %v1712 = vsel %vm1688, %v1675, %v1298
      %v1713 = vsel %vm1688, %v1676, %v1300
      %v1714 = vsel %vm1688, %v1677, %v1302
      %v1715 = vsel %vm1688, %v1678, %v1304
      %v1716 = vsel %vm1688, %v1679, %v1306
      %v1717 = vsel %vm1688, %v1680, %v1308
      %v1718 = vsel %vm1688, %v1681, %v1310
      %v1719 = vsel %vm1688, %v1682, %v1312
      %v1720 = vsel %vm1688, %v1683, %v1314
      %v1721 = vsel %vm1688, %v1684, %v1316
      %v1722 = vsel %vm1688, %v1685, %v1318
      %v1723 = vsel %vm1688, %v1686, %v1320
      %v1724 = vsel %vm1688, %v1687, %v1322
      %vm1725 = vcmask 916480
      %v1726 = vsel %vm1725, %v1689, %v1396
      %v1727 = vsel %vm1725, %v1690, %v1398
      %v1728 = vsel %vm1725, %v1691, %v1400
      %v1729 = vsel %vm1725, %v1692, %v1402
      %v1730 = vsel %vm1725, %v1693, %v1404
      %v1731 = vsel %vm1725, %v1694, %v1406
      %v1732 = vsel %vm1725, %v1695, %v1408
      %v1733 = vsel %vm1725, %v1696, %v1410
      %v1734 = vsel %vm1725, %v1697, %v1412
      %v1735 = vsel %vm1725, %v1698, %v1414
      %v1736 = vsel %vm1725, %v1699, %v1416
      %v1737 = vsel %vm1725, %v1700, %v1418
      %v1738 = vsel %vm1725, %v1701, %v1420
      %v1739 = vsel %vm1725, %v1702, %v1422
      %v1740 = vsel %vm1725, %v1703, %v1424
      %v1741 = vsel %vm1725, %v1704, %v1426
      %v1742 = vsel %vm1725, %v1705, %v1428
      %v1743 = vsel %vm1725, %v1706, %v1430
      %v1744 = vsel %vm1725, %v1707, %v1432
      %v1745 = vsel %vm1725, %v1708, %v1434
      %v1746 = vsel %vm1725, %v1709, %v1436
      %v1747 = vsel %vm1725, %v1710, %v1438
      %v1748 = vsel %vm1725, %v1711, %v1440
      %v1749 = vsel %vm1725, %v1712, %v1442
      %v1750 = vsel %vm1725, %v1713, %v1444
      %v1751 = vsel %vm1725, %v1714, %v1446
      %v1752 = vsel %vm1725, %v1715, %v1448
      %v1753 = vsel %vm1725, %v1716, %v1450
      %v1754 = vsel %vm1725, %v1717, %v1452
      %v1755 = vsel %vm1725, %v1718, %v1454
      %v1756 = vsel %vm1725, %v1719, %v1456
      %v1757 = vsel %vm1725, %v1720, %v1458
      %v1758 = vsel %vm1725, %v1721, %v1460
      %v1759 = vsel %vm1725, %v1722, %v1462
      %v1760 = vsel %vm1725, %v1723, %v1464
      %v1761 = vsel %vm1725, %v1724, %v1466
      %v1762 = vpack.c.bf16 %v1727, %v1726
      %v1763 = vpack.c.bf16 %v528, %v527
      %v1764 = vpack.c.bf16 %v1729, %v1728
      %v1765 = vpack.c.bf16 %v530, %v529
      %v1766 = vpack.c.bf16 %v1731, %v1730
      %v1767 = vpack.c.bf16 %v532, %v531
      %v1768 = vpack.c.bf16 %v1733, %v1732
      %v1769 = vpack.c.bf16 %v534, %v533
      %v1770 = vpack.c.bf16 %v1735, %v1734
      %v1771 = vpack.c.bf16 %v536, %v535
      %v1772 = vpack.c.bf16 %v1737, %v1736
      %v1773 = vpack.c.bf16 %v538, %v537
      %v1774 = vpack.c.bf16 %v1739, %v1738
      %v1775 = vpack.c.bf16 %v540, %v539
      %v1776 = vpack.c.bf16 %v1741, %v1740
      %v1777 = vpack.c.bf16 %v542, %v541
      %v1778 = vpack.c.bf16 %v1743, %v1742
      %v1779 = vpack.c.bf16 %v544, %v543
      %v1780 = vpack.c.bf16 %v1745, %v1744
      %v1781 = vpack.c.bf16 %v546, %v545
      %v1782 = vpack.c.bf16 %v1747, %v1746
      %v1783 = vpack.c.bf16 %v548, %v547
      %v1784 = vpack.c.bf16 %v1749, %v1748
      %v1785 = vpack.c.bf16 %v550, %v549
      %v1786 = vpack.c.bf16 %v1751, %v1750
      %v1787 = vpack.c.bf16 %v552, %v551
      %v1788 = vpack.c.bf16 %v1753, %v1752
      %v1789 = vpack.c.bf16 %v554, %v553
      %v1790 = vpack.c.bf16 %v1755, %v1754
      %v1791 = vpack.c.bf16 %v556, %v555
      %v1792 = vpack.c.bf16 %v1757, %v1756
      %v1793 = vpack.c.bf16 %v558, %v557
      %v1794 = vpack.c.bf16 %v1759, %v1758
      %v1795 = vpack.c.bf16 %v560, %v559
      %v1796 = vpack.c.bf16 %v1761, %v1760
      %v1797 = vpack.c.bf16 %v562, %v561
      %v1798 = vld [vmem:[%s1] sm:$0xf]
      %v1799 = vld [vmem:[%s1 + $0x4] sm:$0xf]
      %v1800 = vld [vmem:[%s1 + $0x8] sm:$0xf]
      %v1801 = vld [vmem:[%s1 + $0xc] sm:$0xf]
      %v1802 = vld [vmem:[%s1 + $0x10] sm:$0xf]
      %v1803 = vld [vmem:[%s1 + $0x14] sm:$0xf]
      %v1804 = vld [vmem:[%s1 + $0x18] sm:$0xf]
      %v1805 = vld [vmem:[%s1 + $0x1c] sm:$0xf]
      %v1806 = vld [vmem:[%s1 + $0x20] sm:$0xf]
      %v1807 = vld [vmem:[%s1 + $0x24] sm:$0xf]
      %v1808 = vld [vmem:[%s1 + $0x28] sm:$0xf]
      %v1809 = vld [vmem:[%s1 + $0x2c] sm:$0xf]
      %v1810 = vld [vmem:[%s1 + $0x30] sm:$0xf]
      %v1811 = vld [vmem:[%s1 + $0x34] sm:$0xf]
      %v1812 = vld [vmem:[%s1 + $0x38] sm:$0xf]
      %v1813 = vld [vmem:[%s1 + $0x3c] sm:$0xf]
      %v1814 = vld [vmem:[%s1 + $0x40] sm:$0xf]
      %v1815 = vld [vmem:[%s1 + $0x44] sm:$0xf]
      %v1816 = vld [vmem:[%s2] sm:$0x1]
      %v1818 = vlaneseq
      %v1819 = vshrl.u32 %v1818, 7
      %v1820 = vsub.s32 0, %v1819
      %v1821 = vrot.slane %v1816, %v1820
      %v1841 = vunpack.c.l.b16 %v1798
      %v1842 = vunpack.c.l.b16 %v1799
      %v1843 = vunpack.c.l.b16 %v1800
      %v1844 = vunpack.c.l.b16 %v1801
      %v1845 = vunpack.c.l.b16 %v1802
      %v1846 = vunpack.c.l.b16 %v1803
      %v1847 = vunpack.c.l.b16 %v1804
      %v1848 = vunpack.c.l.b16 %v1805
      %v1849 = vunpack.c.l.b16 %v1806
      %v1850 = vunpack.c.l.b16 %v1807
      %v1851 = vunpack.c.l.b16 %v1808
      %v1852 = vunpack.c.l.b16 %v1809
      %v1853 = vunpack.c.l.b16 %v1810
      %v1854 = vunpack.c.l.b16 %v1811
      %v1855 = vunpack.c.l.b16 %v1812
      %v1856 = vunpack.c.l.b16 %v1813
      %v1857 = vunpack.c.l.b16 %v1814
      %v1858 = vunpack.c.l.b16 %v1815
      %v1859 = vpack.c.b16 %v1842, %v1841
      %v1860 = vpack.c.b16 %v1844, %v1843
      %v1861 = vpack.c.b16 %v1846, %v1845
      %v1862 = vpack.c.b16 %v1848, %v1847
      %v1863 = vpack.c.b16 %v1850, %v1849
      %v1864 = vpack.c.b16 %v1852, %v1851
      %v1865 = vpack.c.b16 %v1854, %v1853
      %v1866 = vpack.c.b16 %v1856, %v1855
      %v1867 = vpack.c.b16 %v1858, %v1857
      %v1878 = vsel %vm1503, %v1763, 0
      %v1881 = vsel %vm1503, %v1765, 0
      %v1884 = vsel %vm1503, %v1767, 0
      %v1887 = vsel %vm1503, %v1769, 0
      %v1890 = vsel %vm1503, %v1771, 0
      %v1893 = vsel %vm1503, %v1773, 0
      %v1896 = vsel %vm1503, %v1775, 0
      %v1899 = vsel %vm1503, %v1777, 0
      %v1902 = vsel %vm1503, %v1779, 0
      %v1905 = vsel %vm1503, %v1781, 0
      %v1908 = vsel %vm1503, %v1783, 0
      %v1911 = vsel %vm1503, %v1785, 0
      %v1914 = vsel %vm1503, %v1787, 0
      %v1917 = vsel %vm1503, %v1789, 0
      %v1920 = vsel %vm1503, %v1791, 0
      %v1923 = vsel %vm1503, %v1793, 0
      %v1926 = vsel %vm1503, %v1795, 0
      %v1929 = vsel %vm1503, %v1797, 0
      %1931 = vmatprep.subr.bf16.mxu0 0
      %1932 = vmatpush1.bf16.msra.mxu0 %v1859
      %1933 = vmatprep.subr.bf16.mxu0 0
      %1934 = vmatpush1.bf16.msra.mxu0 %v1860
      %1935 = vmatprep.subr.bf16.mxu0 0
      %1936 = vmatpush1.bf16.msra.mxu0 %v1861
      %1937 = vmatprep.subr.bf16.mxu0 0
      %1938 = vmatpush1.bf16.msra.mxu0 %v1862
      %1939 = vmatprep.subr.bf16.mxu0 0
      %1940 = vmatpush1.bf16.msra.mxu0 %v1863
      %1941 = vmatprep.subr.bf16.mxu0 0
      %1942 = vmatpush1.bf16.msra.mxu0 %v1864
      %1943 = vmatprep.subr.bf16.mxu0 0
      %1944 = vmatpush1.bf16.msra.mxu0 %v1865
      %1945 = vmatprep.subr.bf16.mxu0 0
      %1946 = vmatpush1.bf16.msra.mxu0 %v1866
      %1947 = vmatprep.subr.bf16.mxu0 0
      %1948 = vmatpush1.bf16.msra.mxu0 %v1867
      %1949 = vmatprep.subr.bf16.mxu0 0
      %1950 = vmatpush1.bf16.msra.mxu0 0
      %1951 = vmatprep.subr.bf16.mxu0 0
      %1952 = vmatpush1.bf16.msra.mxu0 0
      %1953 = vmatprep.subr.bf16.mxu0 0
      %1954 = vmatpush1.bf16.msra.mxu0 0
      %1955 = vmatprep.subr.bf16.mxu0 0
      %1956 = vmatpush1.bf16.msra.mxu0 0
      %1957 = vmatprep.subr.bf16.mxu0 0
      %1958 = vmatpush1.bf16.msra.mxu0 0
      %1959 = vmatprep.subr.bf16.mxu0 0
      %1960 = vmatpush1.bf16.msra.mxu0 0
      %1961 = vmatprep.subr.bf16.mxu0 0
      %1962 = vmatpush1.bf16.msra.mxu0 0
      %1963 = vmatprep.mubr.bf16.mxu0 %v1878
      %1964 = vmatmul.mubr.bf16.gmra.mrb[0].mxu0 %v1762
      %v1965 = vpop.f32.mrb[0].mxu0
      %v1966 = vadd.f32 %v1821, %v1965
      %v1967 = vpop.f32.mrb[0].mxu0
      %v1968 = vpop.f32.mrb[0].mxu0
      %v1969 = vadd.f32 %v1821, %v1968
      %v1970 = vpop.f32.mrb[0].mxu0
      %1971 = vmatprep.mubr.bf16.mxu0 %v1881
      %1972 = vmatmul.mubr.bf16.gmra.mrb[0].mxu0 %v1764
      %v1973 = vpop.f32.mrb[0].mxu0
      %v1974 = vadd.f32 %v1821, %v1973
      %v1975 = vpop.f32.mrb[0].mxu0
      %v1976 = vpop.f32.mrb[0].mxu0
      %v1977 = vadd.f32 %v1821, %v1976
      %v1978 = vpop.f32.mrb[0].mxu0
      %1979 = vmatprep.mubr.bf16.mxu0 %v1884
      %1980 = vmatmul.mubr.bf16.gmra.mrb[0].mxu0 %v1766
      %v1981 = vpop.f32.mrb[0].mxu0
      %v1982 = vadd.f32 %v1821, %v1981
      %v1983 = vpop.f32.mrb[0].mxu0
      %v1984 = vpop.f32.mrb[0].mxu0
      %v1985 = vadd.f32 %v1821, %v1984
      %v1986 = vpop.f32.mrb[0].mxu0
      %1987 = vmatprep.mubr.bf16.mxu0 %v1887
      %1988 = vmatmul.mubr.bf16.gmra.mrb[0].mxu0 %v1768
      %v1989 = vpop.f32.mrb[0].mxu0
      %v1990 = vadd.f32 %v1821, %v1989
      %v1991 = vpop.f32.mrb[0].mxu0
      %v1992 = vpop.f32.mrb[0].mxu0
      %v1993 = vadd.f32 %v1821, %v1992
      %v1994 = vpop.f32.mrb[0].mxu0
      %1995 = vmatprep.mubr.bf16.mxu0 %v1890
      %1996 = vmatmul.mubr.bf16.gmra.mrb[0].mxu0 %v1770
      %v1997 = vpop.f32.mrb[0].mxu0
      %v1998 = vadd.f32 %v1821, %v1997
      %v1999 = vpop.f32.mrb[0].mxu0
      %v2000 = vpop.f32.mrb[0].mxu0
      %v2001 = vadd.f32 %v1821, %v2000
      %v2002 = vpop.f32.mrb[0].mxu0
      %2003 = vmatprep.mubr.bf16.mxu0 %v1893
      %2004 = vmatmul.mubr.bf16.gmra.mrb[0].mxu0 %v1772
      %v2005 = vpop.f32.mrb[0].mxu0
      %v2006 = vadd.f32 %v1821, %v2005
      %v2007 = vpop.f32.mrb[0].mxu0
      %v2008 = vpop.f32.mrb[0].mxu0
      %v2009 = vadd.f32 %v1821, %v2008
      %v2010 = vpop.f32.mrb[0].mxu0
      %2011 = vmatprep.mubr.bf16.mxu0 %v1896
      %2012 = vmatmul.mubr.bf16.gmra.mrb[0].mxu0 %v1774
      %v2013 = vpop.f32.mrb[0].mxu0
      %v2014 = vadd.f32 %v1821, %v2013
      %v2015 = vpop.f32.mrb[0].mxu0
      %v2016 = vpop.f32.mrb[0].mxu0
      %v2017 = vadd.f32 %v1821, %v2016
      %v2018 = vpop.f32.mrb[0].mxu0
      %2019 = vmatprep.mubr.bf16.mxu0 %v1899
      %2020 = vmatmul.mubr.bf16.gmra.mrb[0].mxu0 %v1776
      %v2021 = vpop.f32.mrb[0].mxu0
      %v2022 = vadd.f32 %v1821, %v2021
      %v2023 = vpop.f32.mrb[0].mxu0
      %v2024 = vpop.f32.mrb[0].mxu0
      %v2025 = vadd.f32 %v1821, %v2024
      %v2026 = vpop.f32.mrb[0].mxu0
      %2027 = vmatprep.mubr.bf16.mxu0 %v1902
      %2028 = vmatmul.mubr.bf16.gmra.mrb[0].mxu0 %v1778
      %v2029 = vpop.f32.mrb[0].mxu0
      %v2030 = vadd.f32 %v1821, %v2029
      %v2031 = vpop.f32.mrb[0].mxu0
      %v2032 = vpop.f32.mrb[0].mxu0
      %v2033 = vadd.f32 %v1821, %v2032
      %v2034 = vpop.f32.mrb[0].mxu0
      %2035 = vmatprep.mubr.bf16.mxu0 %v1905
      %2036 = vmatmul.mubr.bf16.gmra.mrb[0].mxu0 %v1780
      %v2037 = vpop.f32.mrb[0].mxu0
      %v2038 = vadd.f32 %v1821, %v2037
      %v2039 = vpop.f32.mrb[0].mxu0
      %v2040 = vpop.f32.mrb[0].mxu0
      %v2041 = vadd.f32 %v1821, %v2040
      %v2042 = vpop.f32.mrb[0].mxu0
      %2043 = vmatprep.mubr.bf16.mxu0 %v1908
      %2044 = vmatmul.mubr.bf16.gmra.mrb[0].mxu0 %v1782
      %v2045 = vpop.f32.mrb[0].mxu0
      %v2046 = vadd.f32 %v1821, %v2045
      %v2047 = vpop.f32.mrb[0].mxu0
      %v2048 = vpop.f32.mrb[0].mxu0
      %v2049 = vadd.f32 %v1821, %v2048
      %v2050 = vpop.f32.mrb[0].mxu0
      %2051 = vmatprep.mubr.bf16.mxu0 %v1911
      %2052 = vmatmul.mubr.bf16.gmra.mrb[0].mxu0 %v1784
      %v2053 = vpop.f32.mrb[0].mxu0
      %v2054 = vadd.f32 %v1821, %v2053
      %v2055 = vpop.f32.mrb[0].mxu0
      %v2056 = vpop.f32.mrb[0].mxu0
      %v2057 = vadd.f32 %v1821, %v2056
      %v2058 = vpop.f32.mrb[0].mxu0
      %2059 = vmatprep.mubr.bf16.mxu0 %v1914
      %2060 = vmatmul.mubr.bf16.gmra.mrb[0].mxu0 %v1786
      %v2061 = vpop.f32.mrb[0].mxu0
      %v2062 = vadd.f32 %v1821, %v2061
      %v2063 = vpop.f32.mrb[0].mxu0
      %v2064 = vpop.f32.mrb[0].mxu0
      %v2065 = vadd.f32 %v1821, %v2064
      %v2066 = vpop.f32.mrb[0].mxu0
      %2067 = vmatprep.mubr.bf16.mxu0 %v1917
      %2068 = vmatmul.mubr.bf16.gmra.mrb[0].mxu0 %v1788
      %v2069 = vpop.f32.mrb[0].mxu0
      %v2070 = vadd.f32 %v1821, %v2069
      %v2071 = vpop.f32.mrb[0].mxu0
      %v2072 = vpop.f32.mrb[0].mxu0
      %v2073 = vadd.f32 %v1821, %v2072
      %v2074 = vpop.f32.mrb[0].mxu0
      %2075 = vmatprep.mubr.bf16.mxu0 %v1920
      %2076 = vmatmul.mubr.bf16.gmra.mrb[0].mxu0 %v1790
      %v2077 = vpop.f32.mrb[0].mxu0
      %v2078 = vadd.f32 %v1821, %v2077
      %v2079 = vpop.f32.mrb[0].mxu0
      %v2080 = vpop.f32.mrb[0].mxu0
      %v2081 = vadd.f32 %v1821, %v2080
      %v2082 = vpop.f32.mrb[0].mxu0
      %2083 = vmatprep.mubr.bf16.mxu0 %v1923
      %2084 = vmatmul.mubr.bf16.gmra.mrb[0].mxu0 %v1792
      %v2085 = vpop.f32.mrb[0].mxu0
      %v2086 = vadd.f32 %v1821, %v2085
      %v2087 = vpop.f32.mrb[0].mxu0
      %v2088 = vpop.f32.mrb[0].mxu0
      %v2089 = vadd.f32 %v1821, %v2088
      %v2090 = vpop.f32.mrb[0].mxu0
      %2091 = vmatprep.mubr.bf16.mxu0 %v1926
      %2092 = vmatmul.mubr.bf16.gmra.mrb[0].mxu0 %v1794
      %v2093 = vpop.f32.mrb[0].mxu0
      %v2094 = vadd.f32 %v1821, %v2093
      %v2095 = vpop.f32.mrb[0].mxu0
      %v2096 = vpop.f32.mrb[0].mxu0
      %v2097 = vadd.f32 %v1821, %v2096
      %v2098 = vpop.f32.mrb[0].mxu0
      %2099 = vmatprep.mubr.bf16.mxu0 %v1929
      %2100 = vmatmul.mubr.bf16.gmra.mrb[0].mxu0 %v1796
      %v2101 = vpop.f32.mrb[0].mxu0
      %v2102 = vadd.f32 %v1821, %v2101
      %v2103 = vpop.f32.mrb[0].mxu0
      %v2104 = vpop.f32.mrb[0].mxu0
      %v2105 = vadd.f32 %v1821, %v2104
      %v2106 = vpop.f32.mrb[0].mxu0
      %2107 = vdwg.mxu0
      %v2108 = vld [vmem:[%s7] sm:$0xff]
      %v2109 = vld [vmem:[%s7 + $0x8] sm:$0xff]
      %v2110 = vld [vmem:[%s7 + $0x10] sm:$0xff]
      %v2111 = vld [vmem:[%s7 + $0x18] sm:$0xff]
      %v2112 = vld [vmem:[%s7 + $0x20] sm:$0xff]
      %v2113 = vld [vmem:[%s7 + $0x28] sm:$0xff]
      %v2114 = vld [vmem:[%s7 + $0x30] sm:$0xff]
      %v2115 = vld [vmem:[%s7 + $0x38] sm:$0xff]
      %v2116 = vld [vmem:[%s7 + $0x40] sm:$0xff]
      %v2117 = vld [vmem:[%s7 + $0x48] sm:$0xff]
      %v2118 = vld [vmem:[%s7 + $0x50] sm:$0xff]
      %v2119 = vld [vmem:[%s7 + $0x58] sm:$0xff]
      %v2120 = vld [vmem:[%s7 + $0x60] sm:$0xff]
      %v2121 = vld [vmem:[%s7 + $0x68] sm:$0xff]
      %v2122 = vld [vmem:[%s7 + $0x70] sm:$0xff]
      %v2123 = vld [vmem:[%s7 + $0x78] sm:$0xff]
      %v2124 = vld [vmem:[%s7 + $0x80] sm:$0xff]
      %v2125 = vld [vmem:[%s7 + $0x88] sm:$0xff]
      %v2126 = vld [vmem:[%s7 + $0x90] sm:$0xff]
      %v2127 = vld [vmem:[%s7 + $0x98] sm:$0xff]
      %v2128 = vld [vmem:[%s7 + $0xa0] sm:$0xff]
      %v2129 = vld [vmem:[%s7 + $0xa8] sm:$0xff]
      %v2130 = vld [vmem:[%s7 + $0xb0] sm:$0xff]
      %v2131 = vld [vmem:[%s7 + $0xb8] sm:$0xff]
      %v2132 = vld [vmem:[%s7 + $0xc0] sm:$0xff]
      %v2133 = vld [vmem:[%s7 + $0xc8] sm:$0xff]
      %v2134 = vld [vmem:[%s7 + $0xd0] sm:$0xff]
      %v2135 = vld [vmem:[%s7 + $0xd8] sm:$0xff]
      %v2136 = vld [vmem:[%s7 + $0xe0] sm:$0xff]
      %v2137 = vld [vmem:[%s7 + $0xe8] sm:$0xff]
      %v2138 = vld [vmem:[%s7 + $0xf0] sm:$0xff]
      %v2139 = vld [vmem:[%s7 + $0xf8] sm:$0xff]
      %v2140 = vld [vmem:[%s7 + $0x100] sm:$0xff]
      %v2141 = vld [vmem:[%s7 + $0x108] sm:$0xff]
      %v2142 = vld [vmem:[%s7 + $0x110] sm:$0xff]
      %v2143 = vld [vmem:[%s7 + $0x118] sm:$0xff]
      %2145 = vset.pattern.permute.xlu0 0
      %2146 = vperm.xlu0 %2145, %v2108
      %v2147 = vpop.permute.xlu0 %2146
      %2150 = vset.pattern.permute.xlu0 0
      %2151 = vperm.xlu0 %2150, %v2109
      %v2152 = vpop.permute.xlu0 %2151
      %2155 = vset.pattern.permute.xlu0 0
      %2156 = vperm.xlu0 %2155, %v2110
      %v2157 = vpop.permute.xlu0 %2156
      %2160 = vset.pattern.permute.xlu0 0
      %2161 = vperm.xlu0 %2160, %v2111
      %v2162 = vpop.permute.xlu0 %2161
      %2165 = vset.pattern.permute.xlu0 0
      %2166 = vperm.xlu0 %2165, %v2112
      %v2167 = vpop.permute.xlu0 %2166
      %2170 = vset.pattern.permute.xlu0 0
      %2171 = vperm.xlu0 %2170, %v2113
      %v2172 = vpop.permute.xlu0 %2171
      %2175 = vset.pattern.permute.xlu0 0
      %2176 = vperm.xlu0 %2175, %v2114
      %v2177 = vpop.permute.xlu0 %2176
      %2180 = vset.pattern.permute.xlu0 0
      %2181 = vperm.xlu0 %2180, %v2115
      %v2182 = vpop.permute.xlu0 %2181
      %2185 = vset.pattern.permute.xlu0 0
      %2186 = vperm.xlu0 %2185, %v2116
      %v2187 = vpop.permute.xlu0 %2186
      %2190 = vset.pattern.permute.xlu0 0
      %2191 = vperm.xlu0 %2190, %v2117
      %v2192 = vpop.permute.xlu0 %2191
      %2195 = vset.pattern.permute.xlu0 0
      %2196 = vperm.xlu0 %2195, %v2118
      %v2197 = vpop.permute.xlu0 %2196
      %2200 = vset.pattern.permute.xlu0 0
      %2201 = vperm.xlu0 %2200, %v2119
      %v2202 = vpop.permute.xlu0 %2201
      %2205 = vset.pattern.permute.xlu0 0
      %2206 = vperm.xlu0 %2205, %v2120
      %v2207 = vpop.permute.xlu0 %2206
      %2210 = vset.pattern.permute.xlu0 0
      %2211 = vperm.xlu0 %2210, %v2121
      %v2212 = vpop.permute.xlu0 %2211
      %2215 = vset.pattern.permute.xlu0 0
      %2216 = vperm.xlu0 %2215, %v2122
      %v2217 = vpop.permute.xlu0 %2216
      %2220 = vset.pattern.permute.xlu0 0
      %2221 = vperm.xlu0 %2220, %v2123
      %v2222 = vpop.permute.xlu0 %2221
      %2225 = vset.pattern.permute.xlu0 0
      %2226 = vperm.xlu0 %2225, %v2124
      %v2227 = vpop.permute.xlu0 %2226
      %2230 = vset.pattern.permute.xlu0 0
      %2231 = vperm.xlu0 %2230, %v2125
      %v2232 = vpop.permute.xlu0 %2231
      %2235 = vset.pattern.permute.xlu0 0
      %2236 = vperm.xlu0 %2235, %v2126
      %v2237 = vpop.permute.xlu0 %2236
      %2240 = vset.pattern.permute.xlu0 0
      %2241 = vperm.xlu0 %2240, %v2127
      %v2242 = vpop.permute.xlu0 %2241
      %2245 = vset.pattern.permute.xlu0 0
      %2246 = vperm.xlu0 %2245, %v2128
      %v2247 = vpop.permute.xlu0 %2246
      %2250 = vset.pattern.permute.xlu0 0
      %2251 = vperm.xlu0 %2250, %v2129
      %v2252 = vpop.permute.xlu0 %2251
      %2255 = vset.pattern.permute.xlu0 0
      %2256 = vperm.xlu0 %2255, %v2130
      %v2257 = vpop.permute.xlu0 %2256
      %2260 = vset.pattern.permute.xlu0 0
      %2261 = vperm.xlu0 %2260, %v2131
      %v2262 = vpop.permute.xlu0 %2261
      %2265 = vset.pattern.permute.xlu0 0
      %2266 = vperm.xlu0 %2265, %v2132
      %v2267 = vpop.permute.xlu0 %2266
      %2270 = vset.pattern.permute.xlu0 0
      %2271 = vperm.xlu0 %2270, %v2133
      %v2272 = vpop.permute.xlu0 %2271
      %2275 = vset.pattern.permute.xlu0 0
      %2276 = vperm.xlu0 %2275, %v2134
      %v2277 = vpop.permute.xlu0 %2276
      %2280 = vset.pattern.permute.xlu0 0
      %2281 = vperm.xlu0 %2280, %v2135
      %v2282 = vpop.permute.xlu0 %2281
      %2285 = vset.pattern.permute.xlu0 0
      %2286 = vperm.xlu0 %2285, %v2136
      %v2287 = vpop.permute.xlu0 %2286
      %2290 = vset.pattern.permute.xlu0 0
      %2291 = vperm.xlu0 %2290, %v2137
      %v2292 = vpop.permute.xlu0 %2291
      %2295 = vset.pattern.permute.xlu0 0
      %2296 = vperm.xlu0 %2295, %v2138
      %v2297 = vpop.permute.xlu0 %2296
      %2300 = vset.pattern.permute.xlu0 0
      %2301 = vperm.xlu0 %2300, %v2139
      %v2302 = vpop.permute.xlu0 %2301
      %2305 = vset.pattern.permute.xlu0 0
      %2306 = vperm.xlu0 %2305, %v2140
      %v2307 = vpop.permute.xlu0 %2306
      %2310 = vset.pattern.permute.xlu0 0
      %2311 = vperm.xlu0 %2310, %v2141
      %v2312 = vpop.permute.xlu0 %2311
      %2315 = vset.pattern.permute.xlu0 0
      %2316 = vperm.xlu0 %2315, %v2142
      %v2317 = vpop.permute.xlu0 %2316
      %2320 = vset.pattern.permute.xlu0 0
      %2321 = vperm.xlu0 %2320, %v2143
      %v2322 = vpop.permute.xlu0 %2321
      %v2324 = vmul.f32 %v1966, %v2147
      %v2325 = vmul.f32 %v1969, %v2152
      %v2326 = vmul.f32 %v1974, %v2157
      %v2327 = vmul.f32 %v1977, %v2162
      %v2328 = vmul.f32 %v1982, %v2167
      %v2329 = vmul.f32 %v1985, %v2172
      %v2330 = vmul.f32 %v1990, %v2177
      %v2331 = vmul.f32 %v1993, %v2182
      %v2332 = vmul.f32 %v1998, %v2187
      %v2333 = vmul.f32 %v2001, %v2192
      %v2334 = vmul.f32 %v2006, %v2197
      %v2335 = vmul.f32 %v2009, %v2202
      %v2336 = vmul.f32 %v2014, %v2207
      %v2337 = vmul.f32 %v2017, %v2212
      %v2338 = vmul.f32 %v2022, %v2217
      %v2339 = vmul.f32 %v2025, %v2222
      %v2340 = vmul.f32 %v2030, %v2227
      %v2341 = vmul.f32 %v2033, %v2232
      %v2342 = vmul.f32 %v2038, %v2237
      %v2343 = vmul.f32 %v2041, %v2242
      %v2344 = vmul.f32 %v2046, %v2247
      %v2345 = vmul.f32 %v2049, %v2252
      %v2346 = vmul.f32 %v2054, %v2257
      %v2347 = vmul.f32 %v2057, %v2262
      %v2348 = vmul.f32 %v2062, %v2267
      %v2349 = vmul.f32 %v2065, %v2272
      %v2350 = vmul.f32 %v2070, %v2277
      %v2351 = vmul.f32 %v2073, %v2282
      %v2352 = vmul.f32 %v2078, %v2287
      %v2353 = vmul.f32 %v2081, %v2292
      %v2354 = vmul.f32 %v2086, %v2297
      %v2355 = vmul.f32 %v2089, %v2302
      %v2356 = vmul.f32 %v2094, %v2307
      %v2357 = vmul.f32 %v2097, %v2312
      %v2358 = vmul.f32 %v2102, %v2317
      %v2359 = vmul.f32 %v2105, %v2322
      %v2360 = vmax.f32 %v2324, 0.0
      %v2361 = vmax.f32 %v2325, 0.0
      %v2362 = vmax.f32 %v2326, 0.0
      %v2363 = vmax.f32 %v2327, 0.0
      %v2364 = vmax.f32 %v2328, 0.0
      %v2365 = vmax.f32 %v2329, 0.0
      %v2366 = vmax.f32 %v2330, 0.0
      %v2367 = vmax.f32 %v2331, 0.0
      %v2368 = vmax.f32 %v2332, 0.0
      %v2369 = vmax.f32 %v2333, 0.0
      %v2370 = vmax.f32 %v2334, 0.0
      %v2371 = vmax.f32 %v2335, 0.0
      %v2372 = vmax.f32 %v2336, 0.0
      %v2373 = vmax.f32 %v2337, 0.0
      %v2374 = vmax.f32 %v2338, 0.0
      %v2375 = vmax.f32 %v2339, 0.0
      %v2376 = vmax.f32 %v2340, 0.0
      %v2377 = vmax.f32 %v2341, 0.0
      %v2378 = vmax.f32 %v2342, 0.0
      %v2379 = vmax.f32 %v2343, 0.0
      %v2380 = vmax.f32 %v2344, 0.0
      %v2381 = vmax.f32 %v2345, 0.0
      %v2382 = vmax.f32 %v2346, 0.0
      %v2383 = vmax.f32 %v2347, 0.0
      %v2384 = vmax.f32 %v2348, 0.0
      %v2385 = vmax.f32 %v2349, 0.0
      %v2386 = vmax.f32 %v2350, 0.0
      %v2387 = vmax.f32 %v2351, 0.0
      %v2388 = vmax.f32 %v2352, 0.0
      %v2389 = vmax.f32 %v2353, 0.0
      %v2390 = vmax.f32 %v2354, 0.0
      %v2391 = vmax.f32 %v2355, 0.0
      %v2392 = vmax.f32 %v2356, 0.0
      %v2393 = vmax.f32 %v2357, 0.0
      %v2394 = vmax.f32 %v2358, 0.0
      %v2395 = vmax.f32 %v2359, 0.0
      %vm2396 = vcmask 125952
      %2397 = vst.msk [vmem:[#allocation2] sm:$0xf] %vm2396, 0
      %2398 = vst.msk [vmem:[#allocation2 + $0x4] sm:$0xf] %vm2396, 0
      %2399 = vst.msk [vmem:[#allocation2 + $0x8] sm:$0xf] %vm2396, 0
      %2400 = vst.msk [vmem:[#allocation2 + $0xc] sm:$0xf] %vm2396, 0
      %2401 = vst.msk [vmem:[#allocation2 + $0xa0] sm:$0xf] %vm2396, 0
      %2402 = vst.msk [vmem:[#allocation2 + $0xa4] sm:$0xf] %vm2396, 0
      %2403 = vst.msk [vmem:[#allocation2 + $0xa8] sm:$0xf] %vm2396, 0
      %v2404 = vpack.c.bf16 %v2361, %v2360
      %v2405 = vpack.c.bf16 %v2363, %v2362
      %v2406 = vpack.c.bf16 %v2365, %v2364
      %v2407 = vpack.c.bf16 %v2367, %v2366
      %v2408 = vpack.c.bf16 %v2369, %v2368
      %v2409 = vpack.c.bf16 %v2371, %v2370
      %v2410 = vpack.c.bf16 %v2373, %v2372
      %v2411 = vpack.c.bf16 %v2375, %v2374
      %v2412 = vpack.c.bf16 %v2377, %v2376
      %v2413 = vpack.c.bf16 %v2379, %v2378
      %v2414 = vpack.c.bf16 %v2381, %v2380
      %v2415 = vpack.c.bf16 %v2383, %v2382
      %v2416 = vpack.c.bf16 %v2385, %v2384
      %v2417 = vpack.c.bf16 %v2387, %v2386
      %v2418 = vpack.c.bf16 %v2389, %v2388
      %v2419 = vpack.c.bf16 %v2391, %v2390
      %v2420 = vpack.c.bf16 %v2393, %v2392
      %v2421 = vpack.c.bf16 %v2395, %v2394
      %v2440 = vunpack.c.l.b16 %v2404
      %v2441 = vunpack.c.h.b16 %v2404
      %v2442 = vunpack.c.l.b16 %v2405
      %v2443 = vunpack.c.h.b16 %v2405
      %v2444 = vunpack.c.l.b16 %v2406
      %v2445 = vunpack.c.h.b16 %v2406
      %v2446 = vunpack.c.l.b16 %v2407
      %v2447 = vunpack.c.h.b16 %v2407
      %v2448 = vunpack.c.l.b16 %v2408
      %v2449 = vunpack.c.h.b16 %v2408
      %v2450 = vunpack.c.l.b16 %v2409
      %v2451 = vunpack.c.h.b16 %v2409
      %v2452 = vunpack.c.l.b16 %v2410
      %v2453 = vunpack.c.h.b16 %v2410
      %v2454 = vunpack.c.l.b16 %v2411
      %v2455 = vunpack.c.h.b16 %v2411
      %v2456 = vunpack.c.l.b16 %v2412
      %v2457 = vunpack.c.h.b16 %v2412
      %v2458 = vunpack.c.l.b16 %v2413
      %v2459 = vunpack.c.h.b16 %v2413
      %v2460 = vunpack.c.l.b16 %v2414
      %v2461 = vunpack.c.h.b16 %v2414
      %v2462 = vunpack.c.l.b16 %v2415
      %v2463 = vunpack.c.h.b16 %v2415
      %v2464 = vunpack.c.l.b16 %v2416
      %v2465 = vunpack.c.h.b16 %v2416
      %v2466 = vunpack.c.l.b16 %v2417
      %v2467 = vunpack.c.h.b16 %v2417
      %v2468 = vunpack.c.l.b16 %v2418
      %v2469 = vunpack.c.h.b16 %v2418
      %v2470 = vunpack.c.l.b16 %v2419
      %v2471 = vunpack.c.h.b16 %v2419
      %v2472 = vunpack.c.l.b16 %v2420
      %v2473 = vunpack.c.h.b16 %v2420
      %v2474 = vunpack.c.l.b16 %v2421
      %v2475 = vunpack.c.h.b16 %v2421
      %v2476 = vpack.c.b16 %v2440, %v2440
      %v2477 = vpack.c.b16 %v2441, %v2441
      %v2478 = vpack.c.b16 %v2442, %v2442
      %v2479 = vpack.c.b16 %v2443, %v2443
      %v2480 = vpack.c.b16 %v2444, %v2444
      %v2481 = vpack.c.b16 %v2445, %v2445
      %v2482 = vpack.c.b16 %v2446, %v2446
      %v2483 = vpack.c.b16 %v2447, %v2447
      %v2484 = vpack.c.b16 %v2448, %v2448
      %v2485 = vpack.c.b16 %v2449, %v2449
      %v2486 = vpack.c.b16 %v2450, %v2450
      %v2487 = vpack.c.b16 %v2451, %v2451
      %v2488 = vpack.c.b16 %v2452, %v2452
      %v2489 = vpack.c.b16 %v2453, %v2453
      %v2490 = vpack.c.b16 %v2454, %v2454
      %v2491 = vpack.c.b16 %v2455, %v2455
      %v2492 = vpack.c.b16 %v2456, %v2456
      %v2493 = vpack.c.b16 %v2457, %v2457
      %v2494 = vpack.c.b16 %v2458, %v2458
      %v2495 = vpack.c.b16 %v2459, %v2459
      %v2496 = vpack.c.b16 %v2460, %v2460
      %v2497 = vpack.c.b16 %v2461, %v2461
      %v2498 = vpack.c.b16 %v2462, %v2462
      %v2499 = vpack.c.b16 %v2463, %v2463
      %v2500 = vpack.c.b16 %v2464, %v2464
      %v2501 = vpack.c.b16 %v2465, %v2465
      %v2502 = vpack.c.b16 %v2466, %v2466
      %v2503 = vpack.c.b16 %v2467, %v2467
      %v2504 = vpack.c.b16 %v2468, %v2468
      %v2505 = vpack.c.b16 %v2469, %v2469
      %v2506 = vpack.c.b16 %v2470, %v2470
      %v2507 = vpack.c.b16 %v2471, %v2471
      %v2508 = vpack.c.b16 %v2472, %v2472
      %v2509 = vpack.c.b16 %v2473, %v2473
      %v2510 = vpack.c.b16 %v2474, %v2474
      %v2511 = vpack.c.b16 %v2475, %v2475
      %2548 = vst.msk [vmem:[#allocation2 + $0x10] sm:$0xf] %vm2396, %v2476
      %2549 = vst.msk [vmem:[#allocation2 + $0x14] sm:$0xf] %vm2396, %v2477
      %2550 = vst.msk [vmem:[#allocation2 + $0x18] sm:$0xf] %vm2396, %v2478
      %2551 = vst.msk [vmem:[#allocation2 + $0x1c] sm:$0xf] %vm2396, %v2479
      %2552 = vst.msk [vmem:[#allocation2 + $0x20] sm:$0xf] %vm2396, %v2480
      %2553 = vst.msk [vmem:[#allocation2 + $0x24] sm:$0xf] %vm2396, %v2481
      %2554 = vst.msk [vmem:[#allocation2 + $0x28] sm:$0xf] %vm2396, %v2482
      %2555 = vst.msk [vmem:[#allocation2 + $0x2c] sm:$0xf] %vm2396, %v2483
      %2556 = vst.msk [vmem:[#allocation2 + $0x30] sm:$0xf] %vm2396, %v2484
      %2557 = vst.msk [vmem:[#allocation2 + $0x34] sm:$0xf] %vm2396, %v2485
      %2558 = vst.msk [vmem:[#allocation2 + $0x38] sm:$0xf] %vm2396, %v2486
      %2559 = vst.msk [vmem:[#allocation2 + $0x3c] sm:$0xf] %vm2396, %v2487
      %2560 = vst.msk [vmem:[#allocation2 + $0x40] sm:$0xf] %vm2396, %v2488
      %2561 = vst.msk [vmem:[#allocation2 + $0x44] sm:$0xf] %vm2396, %v2489
      %2562 = vst.msk [vmem:[#allocation2 + $0x48] sm:$0xf] %vm2396, %v2490
      %2563 = vst.msk [vmem:[#allocation2 + $0x4c] sm:$0xf] %vm2396, %v2491
      %2564 = vst.msk [vmem:[#allocation2 + $0x50] sm:$0xf] %vm2396, %v2492
      %2565 = vst.msk [vmem:[#allocation2 + $0x54] sm:$0xf] %vm2396, %v2493
      %2566 = vst.msk [vmem:[#allocation2 + $0x58] sm:$0xf] %vm2396, %v2494
      %2567 = vst.msk [vmem:[#allocation2 + $0x5c] sm:$0xf] %vm2396, %v2495
      %2568 = vst.msk [vmem:[#allocation2 + $0x60] sm:$0xf] %vm2396, %v2496
      %2569 = vst.msk [vmem:[#allocation2 + $0x64] sm:$0xf] %vm2396, %v2497
      %2570 = vst.msk [vmem:[#allocation2 + $0x68] sm:$0xf] %vm2396, %v2498
      %2571 = vst.msk [vmem:[#allocation2 + $0x6c] sm:$0xf] %vm2396, %v2499
      %2572 = vst.msk [vmem:[#allocation2 + $0x70] sm:$0xf] %vm2396, %v2500
      %2573 = vst.msk [vmem:[#allocation2 + $0x74] sm:$0xf] %vm2396, %v2501
      %2574 = vst.msk [vmem:[#allocation2 + $0x78] sm:$0xf] %vm2396, %v2502
      %2575 = vst.msk [vmem:[#allocation2 + $0x7c] sm:$0xf] %vm2396, %v2503
      %2576 = vst.msk [vmem:[#allocation2 + $0x80] sm:$0xf] %vm2396, %v2504
      %2577 = vst.msk [vmem:[#allocation2 + $0x84] sm:$0xf] %vm2396, %v2505
      %2578 = vst.msk [vmem:[#allocation2 + $0x88] sm:$0xf] %vm2396, %v2506
      %2579 = vst.msk [vmem:[#allocation2 + $0x8c] sm:$0xf] %vm2396, %v2507
      %2580 = vst.msk [vmem:[#allocation2 + $0x90] sm:$0xf] %vm2396, %v2508
      %2581 = vst.msk [vmem:[#allocation2 + $0x94] sm:$0xf] %vm2396, %v2509
      %2582 = vst.msk [vmem:[#allocation2 + $0x98] sm:$0xf] %vm2396, %v2510
      %2583 = vst.msk [vmem:[#allocation2 + $0x9c] sm:$0xf] %vm2396, %v2511
      %v2584 = vld [vmem:[#allocation2 + $0x4] sm:$0xc]
      %v2585 = vld [vmem:[#allocation2 + $0x8] sm:$0xf]
      %v2586 = vld [vmem:[#allocation2 + $0xc] sm:$0xf]
      %v2587 = vld [vmem:[#allocation2 + $0x10] sm:$0xf]
      %v2588 = vld [vmem:[#allocation2 + $0x14] sm:$0xf]
      %v2589 = vld [vmem:[#allocation2 + $0x18] sm:$0xf]
      %v2590 = vld [vmem:[#allocation2 + $0x1c] sm:$0xf]
      %v2591 = vld [vmem:[#allocation2 + $0x20] sm:$0xf]
      %v2592 = vld [vmem:[#allocation2 + $0x24] sm:$0xf]
      %v2593 = vld [vmem:[#allocation2 + $0x28] sm:$0xf]
      %v2594 = vld [vmem:[#allocation2 + $0x2c] sm:$0xf]
      %v2595 = vld [vmem:[#allocation2 + $0x30] sm:$0xf]
      %v2596 = vld [vmem:[#allocation2 + $0x34] sm:$0xf]
      %v2597 = vld [vmem:[#allocation2 + $0x38] sm:$0xf]
      %v2598 = vld [vmem:[#allocation2 + $0x3c] sm:$0xf]
      %v2599 = vld [vmem:[#allocation2 + $0x40] sm:$0xf]
      %v2600 = vld [vmem:[#allocation2 + $0x44] sm:$0xf]
      %v2601 = vld [vmem:[#allocation2 + $0x48] sm:$0xf]
      %v2602 = vld [vmem:[#allocation2 + $0x4c] sm:$0xf]
      %v2603 = vld [vmem:[#allocation2 + $0x50] sm:$0xf]
      %v2604 = vld [vmem:[#allocation2 + $0x54] sm:$0xf]
      %v2605 = vld [vmem:[#allocation2 + $0x58] sm:$0xf]
      %v2606 = vld [vmem:[#allocation2 + $0x5c] sm:$0xf]
      %v2607 = vld [vmem:[#allocation2 + $0x60] sm:$0xf]
      %v2608 = vld [vmem:[#allocation2 + $0x64] sm:$0xf]
      %v2609 = vld [vmem:[#allocation2 + $0x68] sm:$0xf]
      %v2610 = vld [vmem:[#allocation2 + $0x6c] sm:$0xf]
      %v2611 = vld [vmem:[#allocation2 + $0x70] sm:$0xf]
      %v2612 = vld [vmem:[#allocation2 + $0x74] sm:$0xf]
      %v2613 = vld [vmem:[#allocation2 + $0x78] sm:$0xf]
      %v2614 = vld [vmem:[#allocation2 + $0x7c] sm:$0xf]
      %v2615 = vld [vmem:[#allocation2 + $0x80] sm:$0xf]
      %v2616 = vld [vmem:[#allocation2 + $0x84] sm:$0xf]
      %v2617 = vld [vmem:[#allocation2 + $0x88] sm:$0xf]
      %v2618 = vld [vmem:[#allocation2 + $0x8c] sm:$0xf]
      %v2619 = vld [vmem:[#allocation2 + $0x90] sm:$0xf]
      %v2620 = vld [vmem:[#allocation2 + $0x94] sm:$0x7]
      %v2621 = vld [vmem:[#allocation2 + $0x4] sm:$0x8]
      %v2622 = vld [vmem:[#allocation2 + $0x94] sm:$0xf]
      %v2623 = vld [vmem:[#allocation2 + $0xc] sm:$0x8]
      %v2624 = vld [vmem:[#allocation2 + $0x98] sm:$0xf]
      %v2625 = vld [vmem:[#allocation2 + $0x9c] sm:$0xf]
      %v2626 = vld [vmem:[#allocation2 + $0xa0] sm:$0x1]
      %v2627 = vld [vmem:[#allocation2 + $0xa0] sm:$0xf]
      %v2628 = vld [vmem:[#allocation2 + $0xa4] sm:$0xf]
      %v2629 = vld [vmem:[#allocation2 + $0xa8] sm:$0x1]
      %v2630 = vld [vmem:[#allocation2 + $0x18] sm:$0xe]
      %v2631 = vld [vmem:[#allocation2 + $0xa8] sm:$0x3]
      %v2669 = vunpack.c.l.b16 %v2584
      %v2670 = vunpack.c.l.b16 %v2585
      %v2671 = vunpack.c.l.b16 %v2586
      %v2672 = vunpack.c.l.b16 %v2587
      %v2673 = vunpack.c.l.b16 %v2588
      %v2674 = vunpack.c.l.b16 %v2589
      %v2675 = vunpack.c.l.b16 %v2590
      %v2676 = vunpack.c.l.b16 %v2591
      %v2677 = vunpack.c.l.b16 %v2592
      %v2678 = vunpack.c.l.b16 %v2593
      %v2679 = vunpack.c.l.b16 %v2594
      %v2680 = vunpack.c.l.b16 %v2595
      %v2681 = vunpack.c.l.b16 %v2596
      %v2682 = vunpack.c.l.b16 %v2597
      %v2683 = vunpack.c.l.b16 %v2598
      %v2684 = vunpack.c.l.b16 %v2599
      %v2685 = vunpack.c.l.b16 %v2600
      %v2686 = vunpack.c.l.b16 %v2601
      %v2687 = vunpack.c.l.b16 %v2602
      %v2688 = vunpack.c.l.b16 %v2603
      %v2689 = vunpack.c.l.b16 %v2604
      %v2690 = vunpack.c.l.b16 %v2605
      %v2691 = vunpack.c.l.b16 %v2606
      %v2692 = vunpack.c.l.b16 %v2607
      %v2693 = vunpack.c.l.b16 %v2608
      %v2694 = vunpack.c.l.b16 %v2609
      %v2695 = vunpack.c.l.b16 %v2610
      %v2696 = vunpack.c.l.b16 %v2611
      %v2697 = vunpack.c.l.b16 %v2612
      %v2698 = vunpack.c.l.b16 %v2613
      %v2699 = vunpack.c.l.b16 %v2614
      %v2700 = vunpack.c.l.b16 %v2615
      %v2701 = vunpack.c.l.b16 %v2616
      %v2702 = vunpack.c.l.b16 %v2617
      %v2703 = vunpack.c.l.b16 %v2618
      %v2704 = vunpack.c.l.b16 %v2619
      %v2705 = vunpack.c.l.b16 %v2620
      %v2706 = vpack.c.b16 %v2670, %v2669
      %v2707 = vpack.c.b16 %v2672, %v2671
      %v2708 = vpack.c.b16 %v2674, %v2673
      %v2709 = vpack.c.b16 %v2676, %v2675
      %v2710 = vpack.c.b16 %v2678, %v2677
      %v2711 = vpack.c.b16 %v2680, %v2679
      %v2712 = vpack.c.b16 %v2682, %v2681
      %v2713 = vpack.c.b16 %v2684, %v2683
      %v2714 = vpack.c.b16 %v2686, %v2685
      %v2715 = vpack.c.b16 %v2688, %v2687
      %v2716 = vpack.c.b16 %v2690, %v2689
      %v2717 = vpack.c.b16 %v2692, %v2691
      %v2718 = vpack.c.b16 %v2694, %v2693
      %v2719 = vpack.c.b16 %v2696, %v2695
      %v2720 = vpack.c.b16 %v2698, %v2697
      %v2721 = vpack.c.b16 %v2700, %v2699
      %v2722 = vpack.c.b16 %v2702, %v2701
      %v2723 = vpack.c.b16 %v2704, %v2703
      %v2724 = vpack.c.b16 %v2705, %v2705
      %v2726 = vunpack.c.l.b16 %v2621
      %v2727 = vpack.c.b16 %v2670, %v2726
      %vm2728 = vsmask.f32 7424
      %v2730 = vshrl.u32 %v2727, 16
      %v2732 = vshll.u32 %v2727, 16
      %v2734 = vrot.slane %v2732, 1
      %v2735 = vor.u32 %v2730, %v2734
      %v2737 = vshll.u32 %v2707, 16
      %v2739 = vrot.slane %v2737, 1
      %v2740 = vsel %vm2728, %v2735, %v2739
      %v2741 = vshrl.u32 %v2707, 16
      %v2743 = vor.u32 %v2741, %v2739
      %v2745 = vshll.u32 %v2708, 16
      %v2747 = vrot.slane %v2745, 1
      %v2748 = vsel %vm2728, %v2743, %v2747
      %v2749 = vshrl.u32 %v2708, 16
      %v2751 = vor.u32 %v2749, %v2747
      %v2753 = vshll.u32 %v2709, 16
      %v2755 = vrot.slane %v2753, 1
      %v2756 = vsel %vm2728, %v2751, %v2755
      %v2757 = vshrl.u32 %v2709, 16
      %v2759 = vor.u32 %v2757, %v2755
      %v2761 = vshll.u32 %v2710, 16
      %v2763 = vrot.slane %v2761, 1
      %v2764 = vsel %vm2728, %v2759, %v2763
      %v2765 = vshrl.u32 %v2710, 16
      %v2767 = vor.u32 %v2765, %v2763
      %v2769 = vshll.u32 %v2711, 16
      %v2771 = vrot.slane %v2769, 1
      %v2772 = vsel %vm2728, %v2767, %v2771
      %v2773 = vshrl.u32 %v2711, 16
      %v2775 = vor.u32 %v2773, %v2771
      %v2777 = vshll.u32 %v2712, 16
      %v2779 = vrot.slane %v2777, 1
      %v2780 = vsel %vm2728, %v2775, %v2779
      %v2781 = vshrl.u32 %v2712, 16
      %v2783 = vor.u32 %v2781, %v2779
      %v2785 = vshll.u32 %v2713, 16
      %v2787 = vrot.slane %v2785, 1
      %v2788 = vsel %vm2728, %v2783, %v2787
      %v2789 = vshrl.u32 %v2713, 16
      %v2791 = vor.u32 %v2789, %v2787
      %v2793 = vshll.u32 %v2714, 16
      %v2795 = vrot.slane %v2793, 1
      %v2796 = vsel %vm2728, %v2791, %v2795
      %v2797 = vshrl.u32 %v2714, 16
      %v2799 = vor.u32 %v2797, %v2795
      %v2801 = vshll.u32 %v2715, 16
      %v2803 = vrot.slane %v2801, 1
      %v2804 = vsel %vm2728, %v2799, %v2803
      %v2805 = vshrl.u32 %v2715, 16
      %v2807 = vor.u32 %v2805, %v2803
      %v2809 = vshll.u32 %v2716, 16
      %v2811 = vrot.slane %v2809, 1
      %v2812 = vsel %vm2728, %v2807, %v2811
      %v2813 = vshrl.u32 %v2716, 16
      %v2815 = vor.u32 %v2813, %v2811
      %v2817 = vshll.u32 %v2717, 16
      %v2819 = vrot.slane %v2817, 1
      %v2820 = vsel %vm2728, %v2815, %v2819
      %v2821 = vshrl.u32 %v2717, 16
      %v2823 = vor.u32 %v2821, %v2819
      %v2825 = vshll.u32 %v2718, 16
      %v2827 = vrot.slane %v2825, 1
      %v2828 = vsel %vm2728, %v2823, %v2827
      %v2829 = vshrl.u32 %v2718, 16
      %v2831 = vor.u32 %v2829, %v2827
      %v2833 = vshll.u32 %v2719, 16
      %v2835 = vrot.slane %v2833, 1
      %v2836 = vsel %vm2728, %v2831, %v2835
      %v2837 = vshrl.u32 %v2719, 16
      %v2839 = vor.u32 %v2837, %v2835
      %v2841 = vshll.u32 %v2720, 16
      %v2843 = vrot.slane %v2841, 1
      %v2844 = vsel %vm2728, %v2839, %v2843
      %v2845 = vshrl.u32 %v2720, 16
      %v2847 = vor.u32 %v2845, %v2843
      %v2849 = vshll.u32 %v2721, 16
      %v2851 = vrot.slane %v2849, 1
      %v2852 = vsel %vm2728, %v2847, %v2851
      %v2853 = vshrl.u32 %v2721, 16
      %v2855 = vor.u32 %v2853, %v2851
      %v2857 = vshll.u32 %v2722, 16
      %v2859 = vrot.slane %v2857, 1
      %v2860 = vsel %vm2728, %v2855, %v2859
      %v2861 = vshrl.u32 %v2722, 16
      %v2863 = vor.u32 %v2861, %v2859
      %v2865 = vshll.u32 %v2723, 16
      %v2867 = vrot.slane %v2865, 1
      %v2868 = vsel %vm2728, %v2863, %v2867
      %v2869 = vshrl.u32 %v2723, 16
      %v2871 = vor.u32 %v2869, %v2867
      %v2873 = vshll.u32 %v2724, 16
      %v2875 = vrot.slane %v2873, 1
      %v2876 = vsel %vm2728, %v2871, %v2875
      %v2877 = vshrl.u32 %v2724, 16
      %v2879 = vor.u32 %v2877, %v2875
      %2880 = vrot.lane.b32.xlu0 %v2740, 16
      %v2881 = vpop.permute.xlu0 %2880
      %2882 = vrot.lane.b32.xlu0 %v2748, 16
      %v2883 = vpop.permute.xlu0 %2882
      %2884 = vrot.lane.b32.xlu0 %v2756, 16
      %v2885 = vpop.permute.xlu0 %2884
      %2886 = vrot.lane.b32.xlu0 %v2764, 16
      %v2887 = vpop.permute.xlu0 %2886
      %2888 = vrot.lane.b32.xlu0 %v2772, 16
      %v2889 = vpop.permute.xlu0 %2888
      %2890 = vrot.lane.b32.xlu0 %v2780, 16
      %v2891 = vpop.permute.xlu0 %2890
      %2892 = vrot.lane.b32.xlu0 %v2788, 16
      %v2893 = vpop.permute.xlu0 %2892
      %2894 = vrot.lane.b32.xlu0 %v2796, 16
      %v2895 = vpop.permute.xlu0 %2894
      %2896 = vrot.lane.b32.xlu0 %v2804, 16
      %v2897 = vpop.permute.xlu0 %2896
      %2898 = vrot.lane.b32.xlu0 %v2812, 16
      %v2899 = vpop.permute.xlu0 %2898
      %2900 = vrot.lane.b32.xlu0 %v2820, 16
      %v2901 = vpop.permute.xlu0 %2900
      %2902 = vrot.lane.b32.xlu0 %v2828, 16
      %v2903 = vpop.permute.xlu0 %2902
      %2904 = vrot.lane.b32.xlu0 %v2836, 16
      %v2905 = vpop.permute.xlu0 %2904
      %2906 = vrot.lane.b32.xlu0 %v2844, 16
      %v2907 = vpop.permute.xlu0 %2906
      %2908 = vrot.lane.b32.xlu0 %v2852, 16
      %v2909 = vpop.permute.xlu0 %2908
      %2910 = vrot.lane.b32.xlu0 %v2860, 16
      %v2911 = vpop.permute.xlu0 %2910
      %2912 = vrot.lane.b32.xlu0 %v2868, 16
      %v2913 = vpop.permute.xlu0 %2912
      %2914 = vrot.lane.b32.xlu0 %v2876, 16
      %v2915 = vpop.permute.xlu0 %2914
      %2916 = vrot.lane.b32.xlu0 %v2879, 16
      %v2917 = vpop.permute.xlu0 %2916
      %v2919 = vunpack.c.l.b16 %v2622
      %v2920 = vpack.c.b16 %v2919, %v2919
      %vm2921 = vcmask 1046528
      %v2922 = vrot.slane %v2727, 1
      %v2923 = vrot.slane %v2707, 1
      %v2924 = vsel %vm2921, %v2922, %v2923
      %v2925 = vrot.slane %v2708, 1
      %v2926 = vsel %vm2921, %v2923, %v2925
      %v2927 = vrot.slane %v2709, 1
      %v2928 = vsel %vm2921, %v2925, %v2927
      %v2929 = vrot.slane %v2710, 1
      %v2930 = vsel %vm2921, %v2927, %v2929
      %v2931 = vrot.slane %v2711, 1
      %v2932 = vsel %vm2921, %v2929, %v2931
      %v2933 = vrot.slane %v2712, 1
      %v2934 = vsel %vm2921, %v2931, %v2933
      %v2935 = vrot.slane %v2713, 1
      %v2936 = vsel %vm2921, %v2933, %v2935
      %v2937 = vrot.slane %v2714, 1
      %v2938 = vsel %vm2921, %v2935, %v2937
      %v2939 = vrot.slane %v2715, 1
      %v2940 = vsel %vm2921, %v2937, %v2939
      %v2941 = vrot.slane %v2716, 1
      %v2942 = vsel %vm2921, %v2939, %v2941
      %v2943 = vrot.slane %v2717, 1
      %v2944 = vsel %vm2921, %v2941, %v2943
      %v2945 = vrot.slane %v2718, 1
      %v2946 = vsel %vm2921, %v2943, %v2945
      %v2947 = vrot.slane %v2719, 1
      %v2948 = vsel %vm2921, %v2945, %v2947
      %v2949 = vrot.slane %v2720, 1
      %v2950 = vsel %vm2921, %v2947, %v2949
      %v2951 = vrot.slane %v2721, 1
      %v2952 = vsel %vm2921, %v2949, %v2951
      %v2953 = vrot.slane %v2722, 1
      %v2954 = vsel %vm2921, %v2951, %v2953
      %v2955 = vrot.slane %v2723, 1
      %v2956 = vsel %vm2921, %v2953, %v2955
      %v2957 = vrot.slane %v2920, 1
      %v2958 = vsel %vm2921, %v2955, %v2957
      %2959 = vrot.lane.b32.xlu0 %v2924, 32
      %v2960 = vpop.permute.xlu0 %2959
      %2961 = vrot.lane.b32.xlu0 %v2926, 32
      %v2962 = vpop.permute.xlu0 %2961
      %2963 = vrot.lane.b32.xlu0 %v2928, 32
      %v2964 = vpop.permute.xlu0 %2963
      %2965 = vrot.lane.b32.xlu0 %v2930, 32
      %v2966 = vpop.permute.xlu0 %2965
      %2967 = vrot.lane.b32.xlu0 %v2932, 32
      %v2968 = vpop.permute.xlu0 %2967
      %2969 = vrot.lane.b32.xlu0 %v2934, 32
      %v2970 = vpop.permute.xlu0 %2969
      %2971 = vrot.lane.b32.xlu0 %v2936, 32
      %v2972 = vpop.permute.xlu0 %2971
      %2973 = vrot.lane.b32.xlu0 %v2938, 32
      %v2974 = vpop.permute.xlu0 %2973
      %2975 = vrot.lane.b32.xlu0 %v2940, 32
      %v2976 = vpop.permute.xlu0 %2975
      %2977 = vrot.lane.b32.xlu0 %v2942, 32
      %v2978 = vpop.permute.xlu0 %2977
      %2979 = vrot.lane.b32.xlu0 %v2944, 32
      %v2980 = vpop.permute.xlu0 %2979
      %2981 = vrot.lane.b32.xlu0 %v2946, 32
      %v2982 = vpop.permute.xlu0 %2981
      %2983 = vrot.lane.b32.xlu0 %v2948, 32
      %v2984 = vpop.permute.xlu0 %2983
      %2985 = vrot.lane.b32.xlu0 %v2950, 32
      %v2986 = vpop.permute.xlu0 %2985
      %2987 = vrot.lane.b32.xlu0 %v2952, 32
      %v2988 = vpop.permute.xlu0 %2987
      %2989 = vrot.lane.b32.xlu0 %v2954, 32
      %v2990 = vpop.permute.xlu0 %2989
      %2991 = vrot.lane.b32.xlu0 %v2956, 32
      %v2992 = vpop.permute.xlu0 %2991
      %2993 = vrot.lane.b32.xlu0 %v2958, 32
      %v2994 = vpop.permute.xlu0 %2993
      %2995 = vrot.lane.b32.xlu0 %v2957, 32
      %v2996 = vpop.permute.xlu0 %2995
      %v3000 = vunpack.c.l.b16 %v2623
      %v3001 = vunpack.c.l.b16 %v2624
      %v3002 = vunpack.c.l.b16 %v2625
      %v3003 = vpack.c.b16 %v2672, %v3000
      %v3004 = vpack.c.b16 %v3001, %v2919
      %v3005 = vpack.c.b16 %v3002, %v3002
      %v3006 = vrot.slane %v3003, 1
      %v3007 = vsel %vm2921, %v3006, %v2925
      %v3008 = vrot.slane %v3004, 1
      %v3009 = vsel %vm2921, %v2955, %v3008
      %v3010 = vrot.slane %v3005, 1
      %v3011 = vsel %vm2921, %v3008, %v3010
      %3012 = vrot.lane.b32.xlu0 %v3007, 48
      %v3013 = vpop.permute.xlu0 %3012
      %3014 = vrot.lane.b32.xlu0 %v2928, 48
      %v3015 = vpop.permute.xlu0 %3014
      %3016 = vrot.lane.b32.xlu0 %v2930, 48
      %v3017 = vpop.permute.xlu0 %3016
      %3018 = vrot.lane.b32.xlu0 %v2932, 48
      %v3019 = vpop.permute.xlu0 %3018
      %3020 = vrot.lane.b32.xlu0 %v2934, 48
      %v3021 = vpop.permute.xlu0 %3020
      %3022 = vrot.lane.b32.xlu0 %v2936, 48
      %v3023 = vpop.permute.xlu0 %3022
      %3024 = vrot.lane.b32.xlu0 %v2938, 48
      %v3025 = vpop.permute.xlu0 %3024
      %3026 = vrot.lane.b32.xlu0 %v2940, 48
      %v3027 = vpop.permute.xlu0 %3026
      %3028 = vrot.lane.b32.xlu0 %v2942, 48
      %v3029 = vpop.permute.xlu0 %3028
      %3030 = vrot.lane.b32.xlu0 %v2944, 48
      %v3031 = vpop.permute.xlu0 %3030
      %3032 = vrot.lane.b32.xlu0 %v2946, 48
      %v3033 = vpop.permute.xlu0 %3032
      %3034 = vrot.lane.b32.xlu0 %v2948, 48
      %v3035 = vpop.permute.xlu0 %3034
      %3036 = vrot.lane.b32.xlu0 %v2950, 48
      %v3037 = vpop.permute.xlu0 %3036
      %3038 = vrot.lane.b32.xlu0 %v2952, 48
      %v3039 = vpop.permute.xlu0 %3038
      %3040 = vrot.lane.b32.xlu0 %v2954, 48
      %v3041 = vpop.permute.xlu0 %3040
      %3042 = vrot.lane.b32.xlu0 %v2956, 48
      %v3043 = vpop.permute.xlu0 %3042
      %3044 = vrot.lane.b32.xlu0 %v3009, 48
      %v3045 = vpop.permute.xlu0 %3044
      %3046 = vrot.lane.b32.xlu0 %v3011, 48
      %v3047 = vpop.permute.xlu0 %3046
      %3048 = vrot.lane.b32.xlu0 %v3010, 48
      %v3049 = vpop.permute.xlu0 %3048
      %v3050 = vpack.c.b16 %v2673, %v2672
      %v3051 = vpack.c.b16 %v2675, %v2674
      %v3052 = vpack.c.b16 %v2677, %v2676
      %v3053 = vpack.c.b16 %v2679, %v2678
      %v3054 = vpack.c.b16 %v2681, %v2680
      %v3055 = vpack.c.b16 %v2683, %v2682
      %v3056 = vpack.c.b16 %v2685, %v2684
      %v3057 = vpack.c.b16 %v2687, %v2686
      %v3058 = vpack.c.b16 %v2689, %v2688
      %v3059 = vpack.c.b16 %v2691, %v2690
      %v3060 = vpack.c.b16 %v2693, %v2692
      %v3061 = vpack.c.b16 %v2695, %v2694
      %v3062 = vpack.c.b16 %v2697, %v2696
      %v3063 = vpack.c.b16 %v2699, %v2698
      %v3064 = vpack.c.b16 %v2701, %v2700
      %v3065 = vpack.c.b16 %v2703, %v2702
      %v3066 = vpack.c.b16 %v2919, %v2704
      %v3067 = vpack.c.b16 %v3002, %v3001
      %vm3068 = vsmask.f32 2304
      %v3070 = vshrl.u32 %v3050, 16
      %v3072 = vrot.slane %v3070, 5
      %v3073 = vshll.u32 %v3050, 16
      %v3075 = vrot.slane %v3073, 6
      %v3076 = vor.u32 %v3072, %v3075
      %v3078 = vshrl.u32 %v3051, 16
      %v3080 = vrot.slane %v3078, 5
      %v3081 = vshll.u32 %v3051, 16
      %v3083 = vrot.slane %v3081, 6
      %v3084 = vor.u32 %v3080, %v3083
      %v3085 = vsel %vm3068, %v3076, %v3084
      %v3087 = vshrl.u32 %v3052, 16
      %v3089 = vrot.slane %v3087, 5
      %v3090 = vshll.u32 %v3052, 16
      %v3092 = vrot.slane %v3090, 6
      %v3093 = vor.u32 %v3089, %v3092
      %v3094 = vsel %vm3068, %v3084, %v3093
      %v3096 = vshrl.u32 %v3053, 16
      %v3098 = vrot.slane %v3096, 5
      %v3099 = vshll.u32 %v3053, 16
      %v3101 = vrot.slane %v3099, 6
      %v3102 = vor.u32 %v3098, %v3101
      %v3103 = vsel %vm3068, %v3093, %v3102
      %v3105 = vshrl.u32 %v3054, 16
      %v3107 = vrot.slane %v3105, 5
      %v3108 = vshll.u32 %v3054, 16
      %v3110 = vrot.slane %v3108, 6
      %v3111 = vor.u32 %v3107, %v3110
      %v3112 = vsel %vm3068, %v3102, %v3111
      %v3114 = vshrl.u32 %v3055, 16
      %v3116 = vrot.slane %v3114, 5
      %v3117 = vshll.u32 %v3055, 16
      %v3119 = vrot.slane %v3117, 6
      %v3120 = vor.u32 %v3116, %v3119
      %v3121 = vsel %vm3068, %v3111, %v3120
      %v3123 = vshrl.u32 %v3056, 16
      %v3125 = vrot.slane %v3123, 5
      %v3126 = vshll.u32 %v3056, 16
      %v3128 = vrot.slane %v3126, 6
      %v3129 = vor.u32 %v3125, %v3128
      %v3130 = vsel %vm3068, %v3120, %v3129
      %v3132 = vshrl.u32 %v3057, 16
      %v3134 = vrot.slane %v3132, 5
      %v3135 = vshll.u32 %v3057, 16
      %v3137 = vrot.slane %v3135, 6
      %v3138 = vor.u32 %v3134, %v3137
      %v3139 = vsel %vm3068, %v3129, %v3138
      %v3141 = vshrl.u32 %v3058, 16
      %v3143 = vrot.slane %v3141, 5
      %v3144 = vshll.u32 %v3058, 16
      %v3146 = vrot.slane %v3144, 6
      %v3147 = vor.u32 %v3143, %v3146
      %v3148 = vsel %vm3068, %v3138, %v3147
      %v3150 = vshrl.u32 %v3059, 16
      %v3152 = vrot.slane %v3150, 5
      %v3153 = vshll.u32 %v3059, 16
      %v3155 = vrot.slane %v3153, 6
      %v3156 = vor.u32 %v3152, %v3155
      %v3157 = vsel %vm3068, %v3147, %v3156
      %v3159 = vshrl.u32 %v3060, 16
      %v3161 = vrot.slane %v3159, 5
      %v3162 = vshll.u32 %v3060, 16
      %v3164 = vrot.slane %v3162, 6
      %v3165 = vor.u32 %v3161, %v3164
      %v3166 = vsel %vm3068, %v3156, %v3165
      %v3168 = vshrl.u32 %v3061, 16
      %v3170 = vrot.slane %v3168, 5
      %v3171 = vshll.u32 %v3061, 16
      %v3173 = vrot.slane %v3171, 6
      %v3174 = vor.u32 %v3170, %v3173
      %v3175 = vsel %vm3068, %v3165, %v3174
      %v3177 = vshrl.u32 %v3062, 16
      %v3179 = vrot.slane %v3177, 5
      %v3180 = vshll.u32 %v3062, 16
      %v3182 = vrot.slane %v3180, 6
      %v3183 = vor.u32 %v3179, %v3182
      %v3184 = vsel %vm3068, %v3174, %v3183
      %v3186 = vshrl.u32 %v3063, 16
      %v3188 = vrot.slane %v3186, 5
      %v3189 = vshll.u32 %v3063, 16
      %v3191 = vrot.slane %v3189, 6
      %v3192 = vor.u32 %v3188, %v3191
      %v3193 = vsel %vm3068, %v3183, %v3192
      %v3195 = vshrl.u32 %v3064, 16
      %v3197 = vrot.slane %v3195, 5
      %v3198 = vshll.u32 %v3064, 16
      %v3200 = vrot.slane %v3198, 6
      %v3201 = vor.u32 %v3197, %v3200
      %v3202 = vsel %vm3068, %v3192, %v3201
      %v3204 = vshrl.u32 %v3065, 16
      %v3206 = vrot.slane %v3204, 5
      %v3207 = vshll.u32 %v3065, 16
      %v3209 = vrot.slane %v3207, 6
      %v3210 = vor.u32 %v3206, %v3209
      %v3211 = vsel %vm3068, %v3201, %v3210
      %v3213 = vshrl.u32 %v3066, 16
      %v3215 = vrot.slane %v3213, 5
      %v3216 = vshll.u32 %v3066, 16
      %v3218 = vrot.slane %v3216, 6
      %v3219 = vor.u32 %v3215, %v3218
      %v3220 = vsel %vm3068, %v3210, %v3219
      %v3222 = vshrl.u32 %v3067, 16
      %v3224 = vrot.slane %v3222, 5
      %v3225 = vshll.u32 %v3067, 16
      %v3227 = vrot.slane %v3225, 6
      %v3228 = vor.u32 %v3224, %v3227
      %v3229 = vsel %vm3068, %v3219, %v3228
      %3230 = vrot.lane.b32.xlu0 %v3076, 64
      %v3231 = vpop.permute.xlu0 %3230
      %3232 = vrot.lane.b32.xlu0 %v3085, 64
      %v3233 = vpop.permute.xlu0 %3232
      %3234 = vrot.lane.b32.xlu0 %v3094, 64
      %v3235 = vpop.permute.xlu0 %3234
      %3236 = vrot.lane.b32.xlu0 %v3103, 64
      %v3237 = vpop.permute.xlu0 %3236
      %3238 = vrot.lane.b32.xlu0 %v3112, 64
      %v3239 = vpop.permute.xlu0 %3238
      %3240 = vrot.lane.b32.xlu0 %v3121, 64
      %v3241 = vpop.permute.xlu0 %3240
      %3242 = vrot.lane.b32.xlu0 %v3130, 64
      %v3243 = vpop.permute.xlu0 %3242
      %3244 = vrot.lane.b32.xlu0 %v3139, 64
      %v3245 = vpop.permute.xlu0 %3244
      %3246 = vrot.lane.b32.xlu0 %v3148, 64
      %v3247 = vpop.permute.xlu0 %3246
      %3248 = vrot.lane.b32.xlu0 %v3157, 64
      %v3249 = vpop.permute.xlu0 %3248
      %3250 = vrot.lane.b32.xlu0 %v3166, 64
      %v3251 = vpop.permute.xlu0 %3250
      %3252 = vrot.lane.b32.xlu0 %v3175, 64
      %v3253 = vpop.permute.xlu0 %3252
      %3254 = vrot.lane.b32.xlu0 %v3184, 64
      %v3255 = vpop.permute.xlu0 %3254
      %3256 = vrot.lane.b32.xlu0 %v3193, 64
      %v3257 = vpop.permute.xlu0 %3256
      %3258 = vrot.lane.b32.xlu0 %v3202, 64
      %v3259 = vpop.permute.xlu0 %3258
      %3260 = vrot.lane.b32.xlu0 %v3211, 64
      %v3261 = vpop.permute.xlu0 %3260
      %3262 = vrot.lane.b32.xlu0 %v3220, 64
      %v3263 = vpop.permute.xlu0 %3262
      %3264 = vrot.lane.b32.xlu0 %v3229, 64
      %v3265 = vpop.permute.xlu0 %3264
      %3266 = vrot.lane.b32.xlu0 %v3228, 64
      %v3267 = vpop.permute.xlu0 %3266
      %v3269 = vunpack.c.l.b16 %v2626
      %v3270 = vpack.c.b16 %v3269, %v3269
      %vm3271 = vcmask 1041408
      %v3272 = vrot.slane %v3050, 6
      %v3273 = vrot.slane %v3051, 6
      %v3274 = vsel %vm3271, %v3272, %v3273
      %v3275 = vrot.slane %v3052, 6
      %v3276 = vsel %vm3271, %v3273, %v3275
      %v3277 = vrot.slane %v3053, 6
      %v3278 = vsel %vm3271, %v3275, %v3277
      %v3279 = vrot.slane %v3054, 6
      %v3280 = vsel %vm3271, %v3277, %v3279
      %v3281 = vrot.slane %v3055, 6
      %v3282 = vsel %vm3271, %v3279, %v3281
      %v3283 = vrot.slane %v3056, 6
      %v3284 = vsel %vm3271, %v3281, %v3283
      %v3285 = vrot.slane %v3057, 6
      %v3286 = vsel %vm3271, %v3283, %v3285
      %v3287 = vrot.slane %v3058, 6
      %v3288 = vsel %vm3271, %v3285, %v3287
      %v3289 = vrot.slane %v3059, 6
      %v3290 = vsel %vm3271, %v3287, %v3289
      %v3291 = vrot.slane %v3060, 6
      %v3292 = vsel %vm3271, %v3289, %v3291
      %v3293 = vrot.slane %v3061, 6
      %v3294 = vsel %vm3271, %v3291, %v3293
      %v3295 = vrot.slane %v3062, 6
      %v3296 = vsel %vm3271, %v3293, %v3295
      %v3297 = vrot.slane %v3063, 6
      %v3298 = vsel %vm3271, %v3295, %v3297
      %v3299 = vrot.slane %v3064, 6
      %v3300 = vsel %vm3271, %v3297, %v3299
      %v3301 = vrot.slane %v3065, 6
      %v3302 = vsel %vm3271, %v3299, %v3301
      %v3303 = vrot.slane %v3066, 6
      %v3304 = vsel %vm3271, %v3301, %v3303
      %v3305 = vrot.slane %v3067, 6
      %v3306 = vsel %vm3271, %v3303, %v3305
      %v3307 = vrot.slane %v3270, 6
      %v3308 = vsel %vm3271, %v3305, %v3307
      %3309 = vrot.lane.b32.xlu0 %v3272, 80
      %v3310 = vpop.permute.xlu0 %3309
      %3311 = vrot.lane.b32.xlu0 %v3274, 80
      %v3312 = vpop.permute.xlu0 %3311
      %3313 = vrot.lane.b32.xlu0 %v3276, 80
      %v3314 = vpop.permute.xlu0 %3313
      %3315 = vrot.lane.b32.xlu0 %v3278, 80
      %v3316 = vpop.permute.xlu0 %3315
      %3317 = vrot.lane.b32.xlu0 %v3280, 80
      %v3318 = vpop.permute.xlu0 %3317
      %3319 = vrot.lane.b32.xlu0 %v3282, 80
      %v3320 = vpop.permute.xlu0 %3319
      %3321 = vrot.lane.b32.xlu0 %v3284, 80
      %v3322 = vpop.permute.xlu0 %3321
      %3323 = vrot.lane.b32.xlu0 %v3286, 80
      %v3324 = vpop.permute.xlu0 %3323
      %3325 = vrot.lane.b32.xlu0 %v3288, 80
      %v3326 = vpop.permute.xlu0 %3325
      %3327 = vrot.lane.b32.xlu0 %v3290, 80
      %v3328 = vpop.permute.xlu0 %3327
      %3329 = vrot.lane.b32.xlu0 %v3292, 80
      %v3330 = vpop.permute.xlu0 %3329
      %3331 = vrot.lane.b32.xlu0 %v3294, 80
      %v3332 = vpop.permute.xlu0 %3331
      %3333 = vrot.lane.b32.xlu0 %v3296, 80
      %v3334 = vpop.permute.xlu0 %3333
      %3335 = vrot.lane.b32.xlu0 %v3298, 80
      %v3336 = vpop.permute.xlu0 %3335
      %3337 = vrot.lane.b32.xlu0 %v3300, 80
      %v3338 = vpop.permute.xlu0 %3337
      %3339 = vrot.lane.b32.xlu0 %v3302, 80
      %v3340 = vpop.permute.xlu0 %3339
      %3341 = vrot.lane.b32.xlu0 %v3304, 80
      %v3342 = vpop.permute.xlu0 %3341
      %3343 = vrot.lane.b32.xlu0 %v3306, 80
      %v3344 = vpop.permute.xlu0 %3343
      %3345 = vrot.lane.b32.xlu0 %v3308, 80
      %v3346 = vpop.permute.xlu0 %3345
      %v3350 = vunpack.c.l.b16 %v2627
      %v3351 = vunpack.c.l.b16 %v2628
      %v3352 = vunpack.c.l.b16 %v2629
      %v3353 = vpack.c.b16 %v3351, %v3350
      %v3354 = vpack.c.b16 %v3352, %v3352
      %v3355 = vrot.slane %v3353, 6
      %v3356 = vsel %vm3271, %v3305, %v3355
      %v3357 = vrot.slane %v3354, 6
      %v3358 = vsel %vm3271, %v3355, %v3357
      %3359 = vrot.lane.b32.xlu0 %v3273, 96
      %v3360 = vpop.permute.xlu0 %3359
      %3361 = vrot.lane.b32.xlu0 %v3276, 96
      %v3362 = vpop.permute.xlu0 %3361
      %3363 = vrot.lane.b32.xlu0 %v3278, 96
      %v3364 = vpop.permute.xlu0 %3363
      %3365 = vrot.lane.b32.xlu0 %v3280, 96
      %v3366 = vpop.permute.xlu0 %3365
      %3367 = vrot.lane.b32.xlu0 %v3282, 96
      %v3368 = vpop.permute.xlu0 %3367
      %3369 = vrot.lane.b32.xlu0 %v3284, 96
      %v3370 = vpop.permute.xlu0 %3369
      %3371 = vrot.lane.b32.xlu0 %v3286, 96
      %v3372 = vpop.permute.xlu0 %3371
      %3373 = vrot.lane.b32.xlu0 %v3288, 96
      %v3374 = vpop.permute.xlu0 %3373
      %3375 = vrot.lane.b32.xlu0 %v3290, 96
      %v3376 = vpop.permute.xlu0 %3375
      %3377 = vrot.lane.b32.xlu0 %v3292, 96
      %v3378 = vpop.permute.xlu0 %3377
      %3379 = vrot.lane.b32.xlu0 %v3294, 96
      %v3380 = vpop.permute.xlu0 %3379
      %3381 = vrot.lane.b32.xlu0 %v3296, 96
      %v3382 = vpop.permute.xlu0 %3381
      %3383 = vrot.lane.b32.xlu0 %v3298, 96
      %v3384 = vpop.permute.xlu0 %3383
      %3385 = vrot.lane.b32.xlu0 %v3300, 96
      %v3386 = vpop.permute.xlu0 %3385
      %3387 = vrot.lane.b32.xlu0 %v3302, 96
      %v3388 = vpop.permute.xlu0 %3387
      %3389 = vrot.lane.b32.xlu0 %v3304, 96
      %v3390 = vpop.permute.xlu0 %3389
      %3391 = vrot.lane.b32.xlu0 %v3306, 96
      %v3392 = vpop.permute.xlu0 %3391
      %3393 = vrot.lane.b32.xlu0 %v3356, 96
      %v3394 = vpop.permute.xlu0 %3393
      %3395 = vrot.lane.b32.xlu0 %v3358, 96
      %v3396 = vpop.permute.xlu0 %3395
      %v3398 = vunpack.c.l.b16 %v2630
      %v3399 = vpack.c.b16 %v2675, %v3398
      %vm3400 = vsmask.f32 1280
      %v3402 = vshrl.u32 %v3399, 16
      %v3404 = vrot.slane %v3402, 6
      %v3405 = vshll.u32 %v3399, 16
      %v3407 = vrot.slane %v3405, 7
      %v3408 = vor.u32 %v3404, %v3407
      %v3409 = vrot.slane %v3087, 6
      %v3410 = vrot.slane %v3090, 7
      %v3411 = vor.u32 %v3409, %v3410
      %v3412 = vsel %vm3400, %v3408, %v3411
      %v3413 = vrot.slane %v3096, 6
      %v3414 = vrot.slane %v3099, 7
      %v3415 = vor.u32 %v3413, %v3414
      %v3416 = vsel %vm3400, %v3411, %v3415
      %v3417 = vrot.slane %v3105, 6
      %v3418 = vrot.slane %v3108, 7
      %v3419 = vor.u32 %v3417, %v3418
      %v3420 = vsel %vm3400, %v3415, %v3419
      %v3421 = vrot.slane %v3114, 6
      %v3422 = vrot.slane %v3117, 7
      %v3423 = vor.u32 %v3421, %v3422
      %v3424 = vsel %vm3400, %v3419, %v3423
      %v3425 = vrot.slane %v3123, 6
      %v3426 = vrot.slane %v3126, 7
      %v3427 = vor.u32 %v3425, %v3426
      %v3428 = vsel %vm3400, %v3423, %v3427
      %v3429 = vrot.slane %v3132, 6
      %v3430 = vrot.slane %v3135, 7
      %v3431 = vor.u32 %v3429, %v3430
      %v3432 = vsel %vm3400, %v3427, %v3431
      %v3433 = vrot.slane %v3141, 6
      %v3434 = vrot.slane %v3144, 7
      %v3435 = vor.u32 %v3433, %v3434
      %v3436 = vsel %vm3400, %v3431, %v3435
      %v3437 = vrot.slane %v3150, 6
      %v3438 = vrot.slane %v3153, 7
      %v3439 = vor.u32 %v3437, %v3438
      %v3440 = vsel %vm3400, %v3435, %v3439
      %v3441 = vrot.slane %v3159, 6
      %v3442 = vrot.slane %v3162, 7
      %v3443 = vor.u32 %v3441, %v3442
      %v3444 = vsel %vm3400, %v3439, %v3443
      %v3445 = vrot.slane %v3168, 6
      %v3446 = vrot.slane %v3171, 7
      %v3447 = vor.u32 %v3445, %v3446
      %v3448 = vsel %vm3400, %v3443, %v3447
      %v3449 = vrot.slane %v3177, 6
      %v3450 = vrot.slane %v3180, 7
      %v3451 = vor.u32 %v3449, %v3450
      %v3452 = vsel %vm3400, %v3447, %v3451
      %v3453 = vrot.slane %v3186, 6
      %v3454 = vrot.slane %v3189, 7
      %v3455 = vor.u32 %v3453, %v3454
      %v3456 = vsel %vm3400, %v3451, %v3455
      %v3457 = vrot.slane %v3195, 6
      %v3458 = vrot.slane %v3198, 7
      %v3459 = vor.u32 %v3457, %v3458
      %v3460 = vsel %vm3400, %v3455, %v3459
      %v3461 = vrot.slane %v3204, 6
      %v3462 = vrot.slane %v3207, 7
      %v3463 = vor.u32 %v3461, %v3462
      %v3464 = vsel %vm3400, %v3459, %v3463
      %v3465 = vrot.slane %v3213, 6
      %v3466 = vrot.slane %v3216, 7
      %v3467 = vor.u32 %v3465, %v3466
      %v3468 = vsel %vm3400, %v3463, %v3467
      %v3469 = vrot.slane %v3222, 6
      %v3470 = vrot.slane %v3225, 7
      %v3471 = vor.u32 %v3469, %v3470
      %v3472 = vsel %vm3400, %v3467, %v3471
      %v3474 = vshrl.u32 %v3353, 16
      %v3476 = vrot.slane %v3474, 6
      %v3477 = vshll.u32 %v3353, 16
      %v3479 = vrot.slane %v3477, 7
      %v3480 = vor.u32 %v3476, %v3479
      %v3481 = vsel %vm3400, %v3471, %v3480
      %v3483 = vshrl.u32 %v3354, 16
      %v3485 = vrot.slane %v3483, 6
      %v3486 = vshll.u32 %v3354, 16
      %v3488 = vrot.slane %v3486, 7
      %v3489 = vor.u32 %v3485, %v3488
      %v3490 = vsel %vm3400, %v3480, %v3489
      %3491 = vrot.lane.b32.xlu0 %v3408, 112
      %v3492 = vpop.permute.xlu0 %3491
      %3493 = vrot.lane.b32.xlu0 %v3412, 112
      %v3494 = vpop.permute.xlu0 %3493
      %3495 = vrot.lane.b32.xlu0 %v3416, 112
      %v3496 = vpop.permute.xlu0 %3495
      %3497 = vrot.lane.b32.xlu0 %v3420, 112
      %v3498 = vpop.permute.xlu0 %3497
      %3499 = vrot.lane.b32.xlu0 %v3424, 112
      %v3500 = vpop.permute.xlu0 %3499
      %3501 = vrot.lane.b32.xlu0 %v3428, 112
      %v3502 = vpop.permute.xlu0 %3501
      %3503 = vrot.lane.b32.xlu0 %v3432, 112
      %v3504 = vpop.permute.xlu0 %3503
      %3505 = vrot.lane.b32.xlu0 %v3436, 112
      %v3506 = vpop.permute.xlu0 %3505
      %3507 = vrot.lane.b32.xlu0 %v3440, 112
      %v3508 = vpop.permute.xlu0 %3507
      %3509 = vrot.lane.b32.xlu0 %v3444, 112
      %v3510 = vpop.permute.xlu0 %3509
      %3511 = vrot.lane.b32.xlu0 %v3448, 112
      %v3512 = vpop.permute.xlu0 %3511
      %3513 = vrot.lane.b32.xlu0 %v3452, 112
      %v3514 = vpop.permute.xlu0 %3513
      %3515 = vrot.lane.b32.xlu0 %v3456, 112
      %v3516 = vpop.permute.xlu0 %3515
      %3517 = vrot.lane.b32.xlu0 %v3460, 112
      %v3518 = vpop.permute.xlu0 %3517
      %3519 = vrot.lane.b32.xlu0 %v3464, 112
      %v3520 = vpop.permute.xlu0 %3519
      %3521 = vrot.lane.b32.xlu0 %v3468, 112
      %v3522 = vpop.permute.xlu0 %3521
      %3523 = vrot.lane.b32.xlu0 %v3472, 112
      %v3524 = vpop.permute.xlu0 %3523
      %3525 = vrot.lane.b32.xlu0 %v3481, 112
      %v3526 = vpop.permute.xlu0 %3525
      %3527 = vrot.lane.b32.xlu0 %v3490, 112
      %v3528 = vpop.permute.xlu0 %3527
      %v3530 = vunpack.c.l.b16 %v2631
      %v3531 = vpack.c.b16 %v3530, %v3530
      %vm3532 = vcmask 1040384
      %v3533 = vrot.slane %v3399, 7
      %v3534 = vrot.slane %v3052, 7
      %v3535 = vsel %vm3532, %v3533, %v3534
      %v3536 = vrot.slane %v3053, 7
      %v3537 = vsel %vm3532, %v3534, %v3536
      %v3538 = vrot.slane %v3054, 7
      %v3539 = vsel %vm3532, %v3536, %v3538
      %v3540 = vrot.slane %v3055, 7
      %v3541 = vsel %vm3532, %v3538, %v3540
      %v3542 = vrot.slane %v3056, 7
      %v3543 = vsel %vm3532, %v3540, %v3542
      %v3544 = vrot.slane %v3057, 7
      %v3545 = vsel %vm3532, %v3542, %v3544
      %v3546 = vrot.slane %v3058, 7
      %v3547 = vsel %vm3532, %v3544, %v3546
      %v3548 = vrot.slane %v3059, 7
      %v3549 = vsel %vm3532, %v3546, %v3548
      %v3550 = vrot.slane %v3060, 7
      %v3551 = vsel %vm3532, %v3548, %v3550
      %v3552 = vrot.slane %v3061, 7
      %v3553 = vsel %vm3532, %v3550, %v3552
      %v3554 = vrot.slane %v3062, 7
      %v3555 = vsel %vm3532, %v3552, %v3554
      %v3556 = vrot.slane %v3063, 7
      %v3557 = vsel %vm3532, %v3554, %v3556
      %v3558 = vrot.slane %v3064, 7
      %v3559 = vsel %vm3532, %v3556, %v3558
      %v3560 = vrot.slane %v3065, 7
      %v3561 = vsel %vm3532, %v3558, %v3560
      %v3562 = vrot.slane %v3066, 7
      %v3563 = vsel %vm3532, %v3560, %v3562
      %v3564 = vrot.slane %v3067, 7
      %v3565 = vsel %vm3532, %v3562, %v3564
      %v3566 = vrot.slane %v3353, 7
      %v3567 = vsel %vm3532, %v3564, %v3566
      %v3568 = vrot.slane %v3531, 7
      %v3569 = vsel %vm3532, %v3566, %v3568
      %v3572 = vsel %vm1503, %v2706, %v2881
      %v3574 = vsel %vm1503, %v2707, %v2883
      %v3576 = vsel %vm1503, %v2708, %v2885
      %v3578 = vsel %vm1503, %v2709, %v2887
      %v3580 = vsel %vm1503, %v2710, %v2889
      %v3582 = vsel %vm1503, %v2711, %v2891
      %v3584 = vsel %vm1503, %v2712, %v2893
      %v3586 = vsel %vm1503, %v2713, %v2895
      %v3588 = vsel %vm1503, %v2714, %v2897
      %v3590 = vsel %vm1503, %v2715, %v2899
      %v3592 = vsel %vm1503, %v2716, %v2901
      %v3594 = vsel %vm1503, %v2717, %v2903
      %v3596 = vsel %vm1503, %v2718, %v2905
      %v3598 = vsel %vm1503, %v2719, %v2907
      %v3600 = vsel %vm1503, %v2720, %v2909
      %v3602 = vsel %vm1503, %v2721, %v2911
      %v3604 = vsel %vm1503, %v2722, %v2913
      %v3606 = vsel %vm1503, %v2723, %v2915
      %v3608 = vsel %vm1503, %v2724, %v2917
      %v3610 = vsel %vm1540, %v3572, %v2960
      %v3612 = vsel %vm1540, %v3574, %v2962
      %v3614 = vsel %vm1540, %v3576, %v2964
      %v3616 = vsel %vm1540, %v3578, %v2966
      %v3618 = vsel %vm1540, %v3580, %v2968
      %v3620 = vsel %vm1540, %v3582, %v2970
      %v3622 = vsel %vm1540, %v3584, %v2972
      %v3624 = vsel %vm1540, %v3586, %v2974
      %v3626 = vsel %vm1540, %v3588, %v2976
      %v3628 = vsel %vm1540, %v3590, %v2978
      %v3630 = vsel %vm1540, %v3592, %v2980
      %v3632 = vsel %vm1540, %v3594, %v2982
      %v3634 = vsel %vm1540, %v3596, %v2984
      %v3636 = vsel %vm1540, %v3598, %v2986
      %v3638 = vsel %vm1540, %v3600, %v2988
      %v3640 = vsel %vm1540, %v3602, %v2990
      %v3642 = vsel %vm1540, %v3604, %v2992
      %v3644 = vsel %vm1540, %v3606, %v2994
      %v3646 = vsel %vm1540, %v3608, %v2996
      %v3648 = vsel %vm1577, %v3610, %v3013
      %v3650 = vsel %vm1577, %v3612, %v3015
      %v3652 = vsel %vm1577, %v3614, %v3017
      %v3654 = vsel %vm1577, %v3616, %v3019
      %v3656 = vsel %vm1577, %v3618, %v3021
      %v3658 = vsel %vm1577, %v3620, %v3023
      %v3660 = vsel %vm1577, %v3622, %v3025
      %v3662 = vsel %vm1577, %v3624, %v3027
      %v3664 = vsel %vm1577, %v3626, %v3029
      %v3666 = vsel %vm1577, %v3628, %v3031
      %v3668 = vsel %vm1577, %v3630, %v3033
      %v3670 = vsel %vm1577, %v3632, %v3035
      %v3672 = vsel %vm1577, %v3634, %v3037
      %v3674 = vsel %vm1577, %v3636, %v3039
      %v3676 = vsel %vm1577, %v3638, %v3041
      %v3678 = vsel %vm1577, %v3640, %v3043
      %v3680 = vsel %vm1577, %v3642, %v3045
      %v3682 = vsel %vm1577, %v3644, %v3047
      %v3684 = vsel %vm1577, %v3646, %v3049
      %v3686 = vsel %vm1614, %v3648, %v3231
      %v3688 = vsel %vm1614, %v3650, %v3233
      %v3690 = vsel %vm1614, %v3652, %v3235
      %v3692 = vsel %vm1614, %v3654, %v3237
      %v3694 = vsel %vm1614, %v3656, %v3239
      %v3696 = vsel %vm1614, %v3658, %v3241
      %v3698 = vsel %vm1614, %v3660, %v3243
      %v3700 = vsel %vm1614, %v3662, %v3245
      %v3702 = vsel %vm1614, %v3664, %v3247
      %v3704 = vsel %vm1614, %v3666, %v3249
      %v3706 = vsel %vm1614, %v3668, %v3251
      %v3708 = vsel %vm1614, %v3670, %v3253
      %v3710 = vsel %vm1614, %v3672, %v3255
      %v3712 = vsel %vm1614, %v3674, %v3257
      %v3714 = vsel %vm1614, %v3676, %v3259
      %v3716 = vsel %vm1614, %v3678, %v3261
      %v3718 = vsel %vm1614, %v3680, %v3263
      %v3720 = vsel %vm1614, %v3682, %v3265
      %v3722 = vsel %vm1614, %v3684, %v3267
      %v3724 = vsel %vm1651, %v3686, %v3310
      %v3726 = vsel %vm1651, %v3688, %v3312
      %v3728 = vsel %vm1651, %v3690, %v3314
      %v3730 = vsel %vm1651, %v3692, %v3316
      %v3732 = vsel %vm1651, %v3694, %v3318
      %v3734 = vsel %vm1651, %v3696, %v3320
      %v3736 = vsel %vm1651, %v3698, %v3322
      %v3738 = vsel %vm1651, %v3700, %v3324
      %v3740 = vsel %vm1651, %v3702, %v3326
      %v3742 = vsel %vm1651, %v3704, %v3328
      %v3744 = vsel %vm1651, %v3706, %v3330
      %v3746 = vsel %vm1651, %v3708, %v3332
      %v3748 = vsel %vm1651, %v3710, %v3334
      %v3750 = vsel %vm1651, %v3712, %v3336
      %v3752 = vsel %vm1651, %v3714, %v3338
      %v3754 = vsel %vm1651, %v3716, %v3340
      %v3756 = vsel %vm1651, %v3718, %v3342
      %v3758 = vsel %vm1651, %v3720, %v3344
      %v3760 = vsel %vm1651, %v3722, %v3346
      %v3762 = vsel %vm1688, %v3724, %v3360
      %v3764 = vsel %vm1688, %v3726, %v3362
      %v3766 = vsel %vm1688, %v3728, %v3364
      %v3768 = vsel %vm1688, %v3730, %v3366
      %v3770 = vsel %vm1688, %v3732, %v3368
      %v3772 = vsel %vm1688, %v3734, %v3370
      %v3774 = vsel %vm1688, %v3736, %v3372
      %v3776 = vsel %vm1688, %v3738, %v3374
      %v3778 = vsel %vm1688, %v3740, %v3376
      %v3780 = vsel %vm1688, %v3742, %v3378
      %v3782 = vsel %vm1688, %v3744, %v3380
      %v3784 = vsel %vm1688, %v3746, %v3382
      %v3786 = vsel %vm1688, %v3748, %v3384
      %v3788 = vsel %vm1688, %v3750, %v3386
      %v3790 = vsel %vm1688, %v3752, %v3388
      %v3792 = vsel %vm1688, %v3754, %v3390
      %v3794 = vsel %vm1688, %v3756, %v3392
      %v3796 = vsel %vm1688, %v3758, %v3394
      %v3798 = vsel %vm1688, %v3760, %v3396
      %v3800 = vsel %vm1725, %v3762, %v3492
      %v3802 = vsel %vm1725, %v3764, %v3494
      %v3804 = vsel %vm1725, %v3766, %v3496
      %v3806 = vsel %vm1725, %v3768, %v3498
      %v3808 = vsel %vm1725, %v3770, %v3500
      %v3810 = vsel %vm1725, %v3772, %v3502
      %v3812 = vsel %vm1725, %v3774, %v3504
      %v3814 = vsel %vm1725, %v3776, %v3506
      %v3816 = vsel %vm1725, %v3778, %v3508
      %v3818 = vsel %vm1725, %v3780, %v3510
      %v3820 = vsel %vm1725, %v3782, %v3512
      %v3822 = vsel %vm1725, %v3784, %v3514
      %v3824 = vsel %vm1725, %v3786, %v3516
      %v3826 = vsel %vm1725, %v3788, %v3518
      %v3828 = vsel %vm1725, %v3790, %v3520
      %v3830 = vsel %vm1725, %v3792, %v3522
      %v3832 = vsel %vm1725, %v3794, %v3524
      %v3834 = vsel %vm1725, %v3796, %v3526
      %v3836 = vsel %vm1725, %v3798, %v3528
      %v3837 = vld [vmem:[%s3] sm:$0xf]
      %v3838 = vld [vmem:[%s3 + $0x4] sm:$0xf]
      %v3839 = vld [vmem:[%s3 + $0x8] sm:$0xf]
      %v3840 = vld [vmem:[%s3 + $0xc] sm:$0xf]
      %v3841 = vld [vmem:[%s3 + $0x10] sm:$0xf]
      %v3842 = vld [vmem:[%s3 + $0x14] sm:$0xf]
      %v3843 = vld [vmem:[%s3 + $0x18] sm:$0xf]
      %v3844 = vld [vmem:[%s3 + $0x1c] sm:$0xf]
      %v3845 = vld [vmem:[%s3 + $0x20] sm:$0xf]
      %v3846 = vld [vmem:[%s3 + $0x24] sm:$0xf]
      %v3847 = vld [vmem:[%s3 + $0x28] sm:$0xf]
      %v3848 = vld [vmem:[%s3 + $0x2c] sm:$0xf]
      %v3849 = vld [vmem:[%s3 + $0x30] sm:$0xf]
      %v3850 = vld [vmem:[%s3 + $0x34] sm:$0xf]
      %v3851 = vld [vmem:[%s3 + $0x38] sm:$0xf]
      %v3852 = vld [vmem:[%s3 + $0x3c] sm:$0xf]
      %v3853 = vld [vmem:[%s3 + $0x40] sm:$0xf]
      %v3854 = vld [vmem:[%s3 + $0x44] sm:$0xf]
      %v3855 = vld [vmem:[%s4] sm:$0x1]
      %v3857 = vlaneseq
      %v3858 = vshrl.u32 %v3857, 7
      %v3859 = vsub.s32 0, %v3858
      %v3860 = vrot.slane %v3855, %v3859
      %vm3862 = vsmask.f32 5376
      %v3863 = vshrl.u32 %v3800, 16
      %v3865 = vrot.slane %v3863, 2
      %v3866 = vshll.u32 %v3800, 16
      %v3868 = vrot.slane %v3866, 3
      %v3869 = vor.u32 %v3865, %v3868
      %v3870 = vshrl.u32 %v3802, 16
      %v3872 = vrot.slane %v3870, 2
      %v3873 = vshll.u32 %v3802, 16
      %v3875 = vrot.slane %v3873, 3
      %v3876 = vor.u32 %v3872, %v3875
      %v3877 = vsel %vm3862, %v3869, %v3876
      %v3879 = vshrl.u32 %v3533, 16
      %v3881 = vrot.slane %v3879, 2
      %v3882 = vshll.u32 %v3533, 16
      %v3884 = vrot.slane %v3882, 3
      %v3885 = vor.u32 %v3881, %v3884
      %v3887 = vshrl.u32 %v3535, 16
      %v3889 = vrot.slane %v3887, 2
      %v3890 = vshll.u32 %v3535, 16
      %v3892 = vrot.slane %v3890, 3
      %v3893 = vor.u32 %v3889, %v3892
      %v3894 = vsel %vm3862, %v3885, %v3893
      %v3895 = vshrl.u32 %v3804, 16
      %v3897 = vrot.slane %v3895, 2
      %v3898 = vshll.u32 %v3804, 16
      %v3900 = vrot.slane %v3898, 3
      %v3901 = vor.u32 %v3897, %v3900
      %v3902 = vsel %vm3862, %v3876, %v3901
      %v3904 = vshrl.u32 %v3537, 16
      %v3906 = vrot.slane %v3904, 2
      %v3907 = vshll.u32 %v3537, 16
      %v3909 = vrot.slane %v3907, 3
      %v3910 = vor.u32 %v3906, %v3909
      %v3911 = vsel %vm3862, %v3893, %v3910
      %v3912 = vshrl.u32 %v3806, 16
      %v3914 = vrot.slane %v3912, 2
      %v3915 = vshll.u32 %v3806, 16
      %v3917 = vrot.slane %v3915, 3
      %v3918 = vor.u32 %v3914, %v3917
      %v3919 = vsel %vm3862, %v3901, %v3918
      %v3921 = vshrl.u32 %v3539, 16
      %v3923 = vrot.slane %v3921, 2
      %v3924 = vshll.u32 %v3539, 16
      %v3926 = vrot.slane %v3924, 3
      %v3927 = vor.u32 %v3923, %v3926
      %v3928 = vsel %vm3862, %v3910, %v3927
      %v3929 = vshrl.u32 %v3808, 16
      %v3931 = vrot.slane %v3929, 2
      %v3932 = vshll.u32 %v3808, 16
      %v3934 = vrot.slane %v3932, 3
      %v3935 = vor.u32 %v3931, %v3934
      %v3936 = vsel %vm3862, %v3918, %v3935
      %v3938 = vshrl.u32 %v3541, 16
      %v3940 = vrot.slane %v3938, 2
      %v3941 = vshll.u32 %v3541, 16
      %v3943 = vrot.slane %v3941, 3
      %v3944 = vor.u32 %v3940, %v3943
      %v3945 = vsel %vm3862, %v3927, %v3944
      %v3946 = vshrl.u32 %v3810, 16
      %v3948 = vrot.slane %v3946, 2
      %v3949 = vshll.u32 %v3810, 16
      %v3951 = vrot.slane %v3949, 3
      %v3952 = vor.u32 %v3948, %v3951
      %v3953 = vsel %vm3862, %v3935, %v3952
      %v3955 = vshrl.u32 %v3543, 16
      %v3957 = vrot.slane %v3955, 2
      %v3958 = vshll.u32 %v3543, 16
      %v3960 = vrot.slane %v3958, 3
      %v3961 = vor.u32 %v3957, %v3960
      %v3962 = vsel %vm3862, %v3944, %v3961
      %v3963 = vshrl.u32 %v3812, 16
      %v3965 = vrot.slane %v3963, 2
      %v3966 = vshll.u32 %v3812, 16
      %v3968 = vrot.slane %v3966, 3
      %v3969 = vor.u32 %v3965, %v3968
      %v3970 = vsel %vm3862, %v3952, %v3969
      %v3972 = vshrl.u32 %v3545, 16
      %v3974 = vrot.slane %v3972, 2
      %v3975 = vshll.u32 %v3545, 16
      %v3977 = vrot.slane %v3975, 3
      %v3978 = vor.u32 %v3974, %v3977
      %v3979 = vsel %vm3862, %v3961, %v3978
      %v3980 = vshrl.u32 %v3814, 16
      %v3982 = vrot.slane %v3980, 2
      %v3983 = vshll.u32 %v3814, 16
      %v3985 = vrot.slane %v3983, 3
      %v3986 = vor.u32 %v3982, %v3985
      %v3987 = vsel %vm3862, %v3969, %v3986
      %v3989 = vshrl.u32 %v3547, 16
      %v3991 = vrot.slane %v3989, 2
      %v3992 = vshll.u32 %v3547, 16
      %v3994 = vrot.slane %v3992, 3
      %v3995 = vor.u32 %v3991, %v3994
      %v3996 = vsel %vm3862, %v3978, %v3995
      %v3997 = vshrl.u32 %v3816, 16
      %v3999 = vrot.slane %v3997, 2
      %v4000 = vshll.u32 %v3816, 16
      %v4002 = vrot.slane %v4000, 3
      %v4003 = vor.u32 %v3999, %v4002
      %v4004 = vsel %vm3862, %v3986, %v4003
      %v4006 = vshrl.u32 %v3549, 16
      %v4008 = vrot.slane %v4006, 2
      %v4009 = vshll.u32 %v3549, 16
      %v4011 = vrot.slane %v4009, 3
      %v4012 = vor.u32 %v4008, %v4011
      %v4013 = vsel %vm3862, %v3995, %v4012
      %v4014 = vshrl.u32 %v3818, 16
      %v4016 = vrot.slane %v4014, 2
      %v4017 = vshll.u32 %v3818, 16
      %v4019 = vrot.slane %v4017, 3
      %v4020 = vor.u32 %v4016, %v4019
      %v4021 = vsel %vm3862, %v4003, %v4020
      %v4023 = vshrl.u32 %v3551, 16
      %v4025 = vrot.slane %v4023, 2
      %v4026 = vshll.u32 %v3551, 16
      %v4028 = vrot.slane %v4026, 3
      %v4029 = vor.u32 %v4025, %v4028
      %v4030 = vsel %vm3862, %v4012, %v4029
      %v4031 = vshrl.u32 %v3820, 16
      %v4033 = vrot.slane %v4031, 2
      %v4034 = vshll.u32 %v3820, 16
      %v4036 = vrot.slane %v4034, 3
      %v4037 = vor.u32 %v4033, %v4036
      %v4038 = vsel %vm3862, %v4020, %v4037
      %v4040 = vshrl.u32 %v3553, 16
      %v4042 = vrot.slane %v4040, 2
      %v4043 = vshll.u32 %v3553, 16
      %v4045 = vrot.slane %v4043, 3
      %v4046 = vor.u32 %v4042, %v4045
      %v4047 = vsel %vm3862, %v4029, %v4046
      %v4048 = vshrl.u32 %v3822, 16
      %v4050 = vrot.slane %v4048, 2
      %v4051 = vshll.u32 %v3822, 16
      %v4053 = vrot.slane %v4051, 3
      %v4054 = vor.u32 %v4050, %v4053
      %v4055 = vsel %vm3862, %v4037, %v4054
      %v4057 = vshrl.u32 %v3555, 16
      %v4059 = vrot.slane %v4057, 2
      %v4060 = vshll.u32 %v3555, 16
      %v4062 = vrot.slane %v4060, 3
      %v4063 = vor.u32 %v4059, %v4062
      %v4064 = vsel %vm3862, %v4046, %v4063
      %v4065 = vshrl.u32 %v3824, 16
      %v4067 = vrot.slane %v4065, 2
      %v4068 = vshll.u32 %v3824, 16
      %v4070 = vrot.slane %v4068, 3
      %v4071 = vor.u32 %v4067, %v4070
      %v4072 = vsel %vm3862, %v4054, %v4071
      %v4074 = vshrl.u32 %v3557, 16
      %v4076 = vrot.slane %v4074, 2
      %v4077 = vshll.u32 %v3557, 16
      %v4079 = vrot.slane %v4077, 3
      %v4080 = vor.u32 %v4076, %v4079
      %v4081 = vsel %vm3862, %v4063, %v4080
      %v4082 = vshrl.u32 %v3826, 16
      %v4084 = vrot.slane %v4082, 2
      %v4085 = vshll.u32 %v3826, 16
      %v4087 = vrot.slane %v4085, 3
      %v4088 = vor.u32 %v4084, %v4087
      %v4089 = vsel %vm3862, %v4071, %v4088
      %v4091 = vshrl.u32 %v3559, 16
      %v4093 = vrot.slane %v4091, 2
      %v4094 = vshll.u32 %v3559, 16
      %v4096 = vrot.slane %v4094, 3
      %v4097 = vor.u32 %v4093, %v4096
      %v4098 = vsel %vm3862, %v4080, %v4097
      %v4099 = vshrl.u32 %v3828, 16
      %v4101 = vrot.slane %v4099, 2
      %v4102 = vshll.u32 %v3828, 16
      %v4104 = vrot.slane %v4102, 3
      %v4105 = vor.u32 %v4101, %v4104
      %v4106 = vsel %vm3862, %v4088, %v4105
      %v4108 = vshrl.u32 %v3561, 16
      %v4110 = vrot.slane %v4108, 2
      %v4111 = vshll.u32 %v3561, 16
      %v4113 = vrot.slane %v4111, 3
      %v4114 = vor.u32 %v4110, %v4113
      %v4115 = vsel %vm3862, %v4097, %v4114
      %v4116 = vshrl.u32 %v3830, 16
      %v4118 = vrot.slane %v4116, 2
      %v4119 = vshll.u32 %v3830, 16
      %v4121 = vrot.slane %v4119, 3
      %v4122 = vor.u32 %v4118, %v4121
      %v4123 = vsel %vm3862, %v4105, %v4122
      %v4125 = vshrl.u32 %v3563, 16
      %v4127 = vrot.slane %v4125, 2
      %v4128 = vshll.u32 %v3563, 16
      %v4130 = vrot.slane %v4128, 3
      %v4131 = vor.u32 %v4127, %v4130
      %v4132 = vsel %vm3862, %v4114, %v4131
      %v4133 = vshrl.u32 %v3832, 16
      %v4135 = vrot.slane %v4133, 2
      %v4136 = vshll.u32 %v3832, 16
      %v4138 = vrot.slane %v4136, 3
      %v4139 = vor.u32 %v4135, %v4138
      %v4140 = vsel %vm3862, %v4122, %v4139
      %v4142 = vshrl.u32 %v3565, 16
      %v4144 = vrot.slane %v4142, 2
      %v4145 = vshll.u32 %v3565, 16
      %v4147 = vrot.slane %v4145, 3
      %v4148 = vor.u32 %v4144, %v4147
      %v4149 = vsel %vm3862, %v4131, %v4148
      %v4150 = vshrl.u32 %v3834, 16
      %v4152 = vrot.slane %v4150, 2
      %v4153 = vshll.u32 %v3834, 16
      %v4155 = vrot.slane %v4153, 3
      %v4156 = vor.u32 %v4152, %v4155
      %v4157 = vsel %vm3862, %v4139, %v4156
      %v4159 = vshrl.u32 %v3567, 16
      %v4161 = vrot.slane %v4159, 2
      %v4162 = vshll.u32 %v3567, 16
      %v4164 = vrot.slane %v4162, 3
      %v4165 = vor.u32 %v4161, %v4164
      %v4166 = vsel %vm3862, %v4148, %v4165
      %v4167 = vshrl.u32 %v3836, 16
      %v4169 = vrot.slane %v4167, 2
      %v4170 = vshll.u32 %v3836, 16
      %v4172 = vrot.slane %v4170, 3
      %v4173 = vor.u32 %v4169, %v4172
      %v4174 = vsel %vm3862, %v4156, %v4173
      %v4176 = vshrl.u32 %v3569, 16
      %v4178 = vrot.slane %v4176, 2
      %v4179 = vshll.u32 %v3569, 16
      %v4181 = vrot.slane %v4179, 3
      %v4182 = vor.u32 %v4178, %v4181
      %v4183 = vsel %vm3862, %v4165, %v4182
      %v4220 = vunpack.c.l.b16 %v3837
      %v4221 = vunpack.c.l.b16 %v3838
      %v4222 = vunpack.c.l.b16 %v3839
      %v4223 = vunpack.c.l.b16 %v3840
      %v4224 = vunpack.c.l.b16 %v3841
      %v4225 = vunpack.c.l.b16 %v3842
      %v4226 = vunpack.c.l.b16 %v3843
      %v4227 = vunpack.c.l.b16 %v3844
      %v4228 = vunpack.c.l.b16 %v3845
      %v4229 = vunpack.c.l.b16 %v3846
      %v4230 = vunpack.c.l.b16 %v3847
      %v4231 = vunpack.c.l.b16 %v3848
      %v4232 = vunpack.c.l.b16 %v3849
      %v4233 = vunpack.c.l.b16 %v3850
      %v4234 = vunpack.c.l.b16 %v3851
      %v4235 = vunpack.c.l.b16 %v3852
      %v4236 = vunpack.c.l.b16 %v3853
      %v4237 = vunpack.c.l.b16 %v3854
      %v4238 = vpack.c.b16 %v4221, %v4220
      %v4239 = vpack.c.b16 %v4223, %v4222
      %v4240 = vpack.c.b16 %v4225, %v4224
      %v4241 = vpack.c.b16 %v4227, %v4226
      %v4242 = vpack.c.b16 %v4229, %v4228
      %v4243 = vpack.c.b16 %v4231, %v4230
      %v4244 = vpack.c.b16 %v4233, %v4232
      %v4245 = vpack.c.b16 %v4235, %v4234
      %v4246 = vpack.c.b16 %v4237, %v4236
      %v4257 = vsel %vm1503, %v3894, 0
      %v4260 = vsel %vm1503, %v3911, 0
      %v4263 = vsel %vm1503, %v3928, 0
      %v4266 = vsel %vm1503, %v3945, 0
      %v4269 = vsel %vm1503, %v3962, 0
      %v4272 = vsel %vm1503, %v3979, 0
      %v4275 = vsel %vm1503, %v3996, 0
      %v4278 = vsel %vm1503, %v4013, 0
      %v4281 = vsel %vm1503, %v4030, 0
      %v4284 = vsel %vm1503, %v4047, 0
      %v4287 = vsel %vm1503, %v4064, 0
      %v4290 = vsel %vm1503, %v4081, 0
      %v4293 = vsel %vm1503, %v4098, 0
      %v4296 = vsel %vm1503, %v4115, 0
      %v4299 = vsel %vm1503, %v4132, 0
      %v4302 = vsel %vm1503, %v4149, 0
      %v4305 = vsel %vm1503, %v4166, 0
      %v4308 = vsel %vm1503, %v4183, 0
      %4310 = vmatprep.subr.bf16.mxu0 0
      %4311 = vmatpush1.bf16.msra.mxu0 %v4238
      %4312 = vmatprep.subr.bf16.mxu0 0
      %4313 = vmatpush1.bf16.msra.mxu0 %v4239
      %4314 = vmatprep.subr.bf16.mxu0 0
      %4315 = vmatpush1.bf16.msra.mxu0 %v4240
      %4316 = vmatprep.subr.bf16.mxu0 0
      %4317 = vmatpush1.bf16.msra.mxu0 %v4241
      %4318 = vmatprep.subr.bf16.mxu0 0
      %4319 = vmatpush1.bf16.msra.mxu0 %v4242
      %4320 = vmatprep.subr.bf16.mxu0 0
      %4321 = vmatpush1.bf16.msra.mxu0 %v4243
      %4322 = vmatprep.subr.bf16.mxu0 0
      %4323 = vmatpush1.bf16.msra.mxu0 %v4244
      %4324 = vmatprep.subr.bf16.mxu0 0
      %4325 = vmatpush1.bf16.msra.mxu0 %v4245
      %4326 = vmatprep.subr.bf16.mxu0 0
      %4327 = vmatpush1.bf16.msra.mxu0 %v4246
      %4328 = vmatprep.subr.bf16.mxu0 0
      %4329 = vmatpush1.bf16.msra.mxu0 0
      %4330 = vmatprep.subr.bf16.mxu0 0
      %4331 = vmatpush1.bf16.msra.mxu0 0
      %4332 = vmatprep.subr.bf16.mxu0 0
      %4333 = vmatpush1.bf16.msra.mxu0 0
      %4334 = vmatprep.subr.bf16.mxu0 0
      %4335 = vmatpush1.bf16.msra.mxu0 0
      %4336 = vmatprep.subr.bf16.mxu0 0
      %4337 = vmatpush1.bf16.msra.mxu0 0
      %4338 = vmatprep.subr.bf16.mxu0 0
      %4339 = vmatpush1.bf16.msra.mxu0 0
      %4340 = vmatprep.subr.bf16.mxu0 0
      %4341 = vmatpush1.bf16.msra.mxu0 0
      %4342 = vmatprep.mubr.bf16.mxu0 %v4257
      %4343 = vmatmul.mubr.bf16.gmra.mrb[0].mxu0 %v3877
      %v4344 = vpop.f32.mrb[0].mxu0
      %v4345 = vadd.f32 %v3860, %v4344
      %v4346 = vpop.f32.mrb[0].mxu0
      %v4347 = vpop.f32.mrb[0].mxu0
      %v4348 = vadd.f32 %v3860, %v4347
      %v4349 = vpop.f32.mrb[0].mxu0
      %4350 = vmatprep.mubr.bf16.mxu0 %v4260
      %4351 = vmatmul.mubr.bf16.gmra.mrb[0].mxu0 %v3902
      %v4352 = vpop.f32.mrb[0].mxu0
      %v4353 = vadd.f32 %v3860, %v4352
      %v4354 = vpop.f32.mrb[0].mxu0
      %v4355 = vpop.f32.mrb[0].mxu0
      %v4356 = vadd.f32 %v3860, %v4355
      %v4357 = vpop.f32.mrb[0].mxu0
      %4358 = vmatprep.mubr.bf16.mxu0 %v4263
      %4359 = vmatmul.mubr.bf16.gmra.mrb[0].mxu0 %v3919
      %v4360 = vpop.f32.mrb[0].mxu0
      %v4361 = vadd.f32 %v3860, %v4360
      %v4362 = vpop.f32.mrb[0].mxu0
      %v4363 = vpop.f32.mrb[0].mxu0
      %v4364 = vadd.f32 %v3860, %v4363
      %v4365 = vpop.f32.mrb[0].mxu0
      %4366 = vmatprep.mubr.bf16.mxu0 %v4266
      %4367 = vmatmul.mubr.bf16.gmra.mrb[0].mxu0 %v3936
      %v4368 = vpop.f32.mrb[0].mxu0
      %v4369 = vadd.f32 %v3860, %v4368
      %v4370 = vpop.f32.mrb[0].mxu0
      %v4371 = vpop.f32.mrb[0].mxu0
      %v4372 = vadd.f32 %v3860, %v4371
      %v4373 = vpop.f32.mrb[0].mxu0
      %4374 = vmatprep.mubr.bf16.mxu0 %v4269
      %4375 = vmatmul.mubr.bf16.gmra.mrb[0].mxu0 %v3953
      %v4376 = vpop.f32.mrb[0].mxu0
      %v4377 = vadd.f32 %v3860, %v4376
      %v4378 = vpop.f32.mrb[0].mxu0
      %v4379 = vpop.f32.mrb[0].mxu0
      %v4380 = vadd.f32 %v3860, %v4379
      %v4381 = vpop.f32.mrb[0].mxu0
      %4382 = vmatprep.mubr.bf16.mxu0 %v4272
      %4383 = vmatmul.mubr.bf16.gmra.mrb[0].mxu0 %v3970
      %v4384 = vpop.f32.mrb[0].mxu0
      %v4385 = vadd.f32 %v3860, %v4384
      %v4386 = vpop.f32.mrb[0].mxu0
      %v4387 = vpop.f32.mrb[0].mxu0
      %v4388 = vadd.f32 %v3860, %v4387
      %v4389 = vpop.f32.mrb[0].mxu0
      %4390 = vmatprep.mubr.bf16.mxu0 %v4275
      %4391 = vmatmul.mubr.bf16.gmra.mrb[0].mxu0 %v3987
      %v4392 = vpop.f32.mrb[0].mxu0
      %v4393 = vadd.f32 %v3860, %v4392
      %v4394 = vpop.f32.mrb[0].mxu0
      %v4395 = vpop.f32.mrb[0].mxu0
      %v4396 = vadd.f32 %v3860, %v4395
      %v4397 = vpop.f32.mrb[0].mxu0
      %4398 = vmatprep.mubr.bf16.mxu0 %v4278
      %4399 = vmatmul.mubr.bf16.gmra.mrb[0].mxu0 %v4004
      %v4400 = vpop.f32.mrb[0].mxu0
      %v4401 = vadd.f32 %v3860, %v4400
      %v4402 = vpop.f32.mrb[0].mxu0
      %v4403 = vpop.f32.mrb[0].mxu0
      %v4404 = vadd.f32 %v3860, %v4403
      %v4405 = vpop.f32.mrb[0].mxu0
      %4406 = vmatprep.mubr.bf16.mxu0 %v4281
      %4407 = vmatmul.mubr.bf16.gmra.mrb[0].mxu0 %v4021
      %v4408 = vpop.f32.mrb[0].mxu0
      %v4409 = vadd.f32 %v3860, %v4408
      %v4410 = vpop.f32.mrb[0].mxu0
      %v4411 = vpop.f32.mrb[0].mxu0
      %v4412 = vadd.f32 %v3860, %v4411
      %v4413 = vpop.f32.mrb[0].mxu0
      %4414 = vmatprep.mubr.bf16.mxu0 %v4284
      %4415 = vmatmul.mubr.bf16.gmra.mrb[0].mxu0 %v4038
      %v4416 = vpop.f32.mrb[0].mxu0
      %v4417 = vadd.f32 %v3860, %v4416
      %v4418 = vpop.f32.mrb[0].mxu0
      %v4419 = vpop.f32.mrb[0].mxu0
      %v4420 = vadd.f32 %v3860, %v4419
      %v4421 = vpop.f32.mrb[0].mxu0
      %4422 = vmatprep.mubr.bf16.mxu0 %v4287
      %4423 = vmatmul.mubr.bf16.gmra.mrb[0].mxu0 %v4055
      %v4424 = vpop.f32.mrb[0].mxu0
      %v4425 = vadd.f32 %v3860, %v4424
      %v4426 = vpop.f32.mrb[0].mxu0
      %v4427 = vpop.f32.mrb[0].mxu0
      %v4428 = vadd.f32 %v3860, %v4427
      %v4429 = vpop.f32.mrb[0].mxu0
      %4430 = vmatprep.mubr.bf16.mxu0 %v4290
      %4431 = vmatmul.mubr.bf16.gmra.mrb[0].mxu0 %v4072
      %v4432 = vpop.f32.mrb[0].mxu0
      %v4433 = vadd.f32 %v3860, %v4432
      %v4434 = vpop.f32.mrb[0].mxu0
      %v4435 = vpop.f32.mrb[0].mxu0
      %v4436 = vadd.f32 %v3860, %v4435
      %v4437 = vpop.f32.mrb[0].mxu0
      %4438 = vmatprep.mubr.bf16.mxu0 %v4293
      %4439 = vmatmul.mubr.bf16.gmra.mrb[0].mxu0 %v4089
      %v4440 = vpop.f32.mrb[0].mxu0
      %v4441 = vadd.f32 %v3860, %v4440
      %v4442 = vpop.f32.mrb[0].mxu0
      %v4443 = vpop.f32.mrb[0].mxu0
      %v4444 = vadd.f32 %v3860, %v4443
      %v4445 = vpop.f32.mrb[0].mxu0
      %4446 = vmatprep.mubr.bf16.mxu0 %v4296
      %4447 = vmatmul.mubr.bf16.gmra.mrb[0].mxu0 %v4106
      %v4448 = vpop.f32.mrb[0].mxu0
      %v4449 = vadd.f32 %v3860, %v4448
      %v4450 = vpop.f32.mrb[0].mxu0
      %v4451 = vpop.f32.mrb[0].mxu0
      %v4452 = vadd.f32 %v3860, %v4451
      %v4453 = vpop.f32.mrb[0].mxu0
      %4454 = vmatprep.mubr.bf16.mxu0 %v4299
      %4455 = vmatmul.mubr.bf16.gmra.mrb[0].mxu0 %v4123
      %v4456 = vpop.f32.mrb[0].mxu0
      %v4457 = vadd.f32 %v3860, %v4456
      %v4458 = vpop.f32.mrb[0].mxu0
      %v4459 = vpop.f32.mrb[0].mxu0
      %v4460 = vadd.f32 %v3860, %v4459
      %v4461 = vpop.f32.mrb[0].mxu0
      %4462 = vmatprep.mubr.bf16.mxu0 %v4302
      %4463 = vmatmul.mubr.bf16.gmra.mrb[0].mxu0 %v4140
      %v4464 = vpop.f32.mrb[0].mxu0
      %v4465 = vadd.f32 %v3860, %v4464
      %v4466 = vpop.f32.mrb[0].mxu0
      %v4467 = vpop.f32.mrb[0].mxu0
      %v4468 = vadd.f32 %v3860, %v4467
      %v4469 = vpop.f32.mrb[0].mxu0
      %4470 = vmatprep.mubr.bf16.mxu0 %v4305
      %4471 = vmatmul.mubr.bf16.gmra.mrb[0].mxu0 %v4157
      %v4472 = vpop.f32.mrb[0].mxu0
      %v4473 = vadd.f32 %v3860, %v4472
      %v4474 = vpop.f32.mrb[0].mxu0
      %v4475 = vpop.f32.mrb[0].mxu0
      %v4476 = vadd.f32 %v3860, %v4475
      %v4477 = vpop.f32.mrb[0].mxu0
      %4478 = vmatprep.mubr.bf16.mxu0 %v4308
      %4479 = vmatmul.mubr.bf16.gmra.mrb[0].mxu0 %v4174
      %v4480 = vpop.f32.mrb[0].mxu0
      %v4481 = vadd.f32 %v3860, %v4480
      %v4482 = vpop.f32.mrb[0].mxu0
      %v4483 = vpop.f32.mrb[0].mxu0
      %v4484 = vadd.f32 %v3860, %v4483
      %v4485 = vpop.f32.mrb[0].mxu0
      %4486 = vdwg.mxu0
      %v4487 = vld [vmem:[%s7] sm:$0xff]
      %v4488 = vld [vmem:[%s7 + $0x8] sm:$0xff]
      %v4489 = vld [vmem:[%s7 + $0x10] sm:$0xff]
      %v4490 = vld [vmem:[%s7 + $0x18] sm:$0xff]
      %v4491 = vld [vmem:[%s7 + $0x20] sm:$0xff]
      %v4492 = vld [vmem:[%s7 + $0x28] sm:$0xff]
      %v4493 = vld [vmem:[%s7 + $0x30] sm:$0xff]
      %v4494 = vld [vmem:[%s7 + $0x38] sm:$0xff]
      %v4495 = vld [vmem:[%s7 + $0x40] sm:$0xff]
      %v4496 = vld [vmem:[%s7 + $0x48] sm:$0xff]
      %v4497 = vld [vmem:[%s7 + $0x50] sm:$0xff]
      %v4498 = vld [vmem:[%s7 + $0x58] sm:$0xff]
      %v4499 = vld [vmem:[%s7 + $0x60] sm:$0xff]
      %v4500 = vld [vmem:[%s7 + $0x68] sm:$0xff]
      %v4501 = vld [vmem:[%s7 + $0x70] sm:$0xff]
      %v4502 = vld [vmem:[%s7 + $0x78] sm:$0xff]
      %v4503 = vld [vmem:[%s7 + $0x80] sm:$0xff]
      %v4504 = vld [vmem:[%s7 + $0x88] sm:$0xff]
      %v4505 = vld [vmem:[%s7 + $0x90] sm:$0xff]
      %v4506 = vld [vmem:[%s7 + $0x98] sm:$0xff]
      %v4507 = vld [vmem:[%s7 + $0xa0] sm:$0xff]
      %v4508 = vld [vmem:[%s7 + $0xa8] sm:$0xff]
      %v4509 = vld [vmem:[%s7 + $0xb0] sm:$0xff]
      %v4510 = vld [vmem:[%s7 + $0xb8] sm:$0xff]
      %v4511 = vld [vmem:[%s7 + $0xc0] sm:$0xff]
      %v4512 = vld [vmem:[%s7 + $0xc8] sm:$0xff]
      %v4513 = vld [vmem:[%s7 + $0xd0] sm:$0xff]
      %v4514 = vld [vmem:[%s7 + $0xd8] sm:$0xff]
      %v4515 = vld [vmem:[%s7 + $0xe0] sm:$0xff]
      %v4516 = vld [vmem:[%s7 + $0xe8] sm:$0xff]
      %v4517 = vld [vmem:[%s7 + $0xf0] sm:$0xff]
      %v4518 = vld [vmem:[%s7 + $0xf8] sm:$0xff]
      %v4519 = vld [vmem:[%s7 + $0x100] sm:$0xff]
      %v4520 = vld [vmem:[%s7 + $0x108] sm:$0xff]
      %v4521 = vld [vmem:[%s7 + $0x110] sm:$0xff]
      %v4522 = vld [vmem:[%s7 + $0x118] sm:$0xff]
      %4524 = vset.pattern.permute.xlu0 0
      %4525 = vperm.xlu0 %4524, %v4487
      %v4526 = vpop.permute.xlu0 %4525
      %4529 = vset.pattern.permute.xlu0 0
      %4530 = vperm.xlu0 %4529, %v4488
      %v4531 = vpop.permute.xlu0 %4530
      %4534 = vset.pattern.permute.xlu0 0
      %4535 = vperm.xlu0 %4534, %v4489
      %v4536 = vpop.permute.xlu0 %4535
      %4539 = vset.pattern.permute.xlu0 0
      %4540 = vperm.xlu0 %4539, %v4490
      %v4541 = vpop.permute.xlu0 %4540
      %4544 = vset.pattern.permute.xlu0 0
      %4545 = vperm.xlu0 %4544, %v4491
      %v4546 = vpop.permute.xlu0 %4545
      %4549 = vset.pattern.permute.xlu0 0
      %4550 = vperm.xlu0 %4549, %v4492
      %v4551 = vpop.permute.xlu0 %4550
      %4554 = vset.pattern.permute.xlu0 0
      %4555 = vperm.xlu0 %4554, %v4493
      %v4556 = vpop.permute.xlu0 %4555
      %4559 = vset.pattern.permute.xlu0 0
      %4560 = vperm.xlu0 %4559, %v4494
      %v4561 = vpop.permute.xlu0 %4560
      %4564 = vset.pattern.permute.xlu0 0
      %4565 = vperm.xlu0 %4564, %v4495
      %v4566 = vpop.permute.xlu0 %4565
      %4569 = vset.pattern.permute.xlu0 0
      %4570 = vperm.xlu0 %4569, %v4496
      %v4571 = vpop.permute.xlu0 %4570
      %4574 = vset.pattern.permute.xlu0 0
      %4575 = vperm.xlu0 %4574, %v4497
      %v4576 = vpop.permute.xlu0 %4575
      %4579 = vset.pattern.permute.xlu0 0
      %4580 = vperm.xlu0 %4579, %v4498
      %v4581 = vpop.permute.xlu0 %4580
      %4584 = vset.pattern.permute.xlu0 0
      %4585 = vperm.xlu0 %4584, %v4499
      %v4586 = vpop.permute.xlu0 %4585
      %4589 = vset.pattern.permute.xlu0 0
      %4590 = vperm.xlu0 %4589, %v4500
      %v4591 = vpop.permute.xlu0 %4590
      %4594 = vset.pattern.permute.xlu0 0
      %4595 = vperm.xlu0 %4594, %v4501
      %v4596 = vpop.permute.xlu0 %4595
      %4599 = vset.pattern.permute.xlu0 0
      %4600 = vperm.xlu0 %4599, %v4502
      %v4601 = vpop.permute.xlu0 %4600
      %4604 = vset.pattern.permute.xlu0 0
      %4605 = vperm.xlu0 %4604, %v4503
      %v4606 = vpop.permute.xlu0 %4605
      %4609 = vset.pattern.permute.xlu0 0
      %4610 = vperm.xlu0 %4609, %v4504
      %v4611 = vpop.permute.xlu0 %4610
      %4614 = vset.pattern.permute.xlu0 0
      %4615 = vperm.xlu0 %4614, %v4505
      %v4616 = vpop.permute.xlu0 %4615
      %4619 = vset.pattern.permute.xlu0 0
      %4620 = vperm.xlu0 %4619, %v4506
      %v4621 = vpop.permute.xlu0 %4620
      %4624 = vset.pattern.permute.xlu0 0
      %4625 = vperm.xlu0 %4624, %v4507
      %v4626 = vpop.permute.xlu0 %4625
      %4629 = vset.pattern.permute.xlu0 0
      %4630 = vperm.xlu0 %4629, %v4508
      %v4631 = vpop.permute.xlu0 %4630
      %4634 = vset.pattern.permute.xlu0 0
      %4635 = vperm.xlu0 %4634, %v4509
      %v4636 = vpop.permute.xlu0 %4635
      %4639 = vset.pattern.permute.xlu0 0
      %4640 = vperm.xlu0 %4639, %v4510
      %v4641 = vpop.permute.xlu0 %4640
      %4644 = vset.pattern.permute.xlu0 0
      %4645 = vperm.xlu0 %4644, %v4511
      %v4646 = vpop.permute.xlu0 %4645
      %4649 = vset.pattern.permute.xlu0 0
      %4650 = vperm.xlu0 %4649, %v4512
      %v4651 = vpop.permute.xlu0 %4650
      %4654 = vset.pattern.permute.xlu0 0
      %4655 = vperm.xlu0 %4654, %v4513
      %v4656 = vpop.permute.xlu0 %4655
      %4659 = vset.pattern.permute.xlu0 0
      %4660 = vperm.xlu0 %4659, %v4514
      %v4661 = vpop.permute.xlu0 %4660
      %4664 = vset.pattern.permute.xlu0 0
      %4665 = vperm.xlu0 %4664, %v4515
      %v4666 = vpop.permute.xlu0 %4665
      %4669 = vset.pattern.permute.xlu0 0
      %4670 = vperm.xlu0 %4669, %v4516
      %v4671 = vpop.permute.xlu0 %4670
      %4674 = vset.pattern.permute.xlu0 0
      %4675 = vperm.xlu0 %4674, %v4517
      %v4676 = vpop.permute.xlu0 %4675
      %4679 = vset.pattern.permute.xlu0 0
      %4680 = vperm.xlu0 %4679, %v4518
      %v4681 = vpop.permute.xlu0 %4680
      %4684 = vset.pattern.permute.xlu0 0
      %4685 = vperm.xlu0 %4684, %v4519
      %v4686 = vpop.permute.xlu0 %4685
      %4689 = vset.pattern.permute.xlu0 0
      %4690 = vperm.xlu0 %4689, %v4520
      %v4691 = vpop.permute.xlu0 %4690
      %4694 = vset.pattern.permute.xlu0 0
      %4695 = vperm.xlu0 %4694, %v4521
      %v4696 = vpop.permute.xlu0 %4695
      %4699 = vset.pattern.permute.xlu0 0
      %4700 = vperm.xlu0 %4699, %v4522
      %v4701 = vpop.permute.xlu0 %4700
      %v4703 = vmul.f32 %v4345, %v4526
      %v4704 = vmul.f32 %v4348, %v4531
      %v4705 = vmul.f32 %v4353, %v4536
      %v4706 = vmul.f32 %v4356, %v4541
      %v4707 = vmul.f32 %v4361, %v4546
      %v4708 = vmul.f32 %v4364, %v4551
      %v4709 = vmul.f32 %v4369, %v4556
      %v4710 = vmul.f32 %v4372, %v4561
      %v4711 = vmul.f32 %v4377, %v4566
      %v4712 = vmul.f32 %v4380, %v4571
      %v4713 = vmul.f32 %v4385, %v4576
      %v4714 = vmul.f32 %v4388, %v4581
      %v4715 = vmul.f32 %v4393, %v4586
      %v4716 = vmul.f32 %v4396, %v4591
      %v4717 = vmul.f32 %v4401, %v4596
      %v4718 = vmul.f32 %v4404, %v4601
      %v4719 = vmul.f32 %v4409, %v4606
      %v4720 = vmul.f32 %v4412, %v4611
      %v4721 = vmul.f32 %v4417, %v4616
      %v4722 = vmul.f32 %v4420, %v4621
      %v4723 = vmul.f32 %v4425, %v4626
      %v4724 = vmul.f32 %v4428, %v4631
      %v4725 = vmul.f32 %v4433, %v4636
      %v4726 = vmul.f32 %v4436, %v4641
      %v4727 = vmul.f32 %v4441, %v4646
      %v4728 = vmul.f32 %v4444, %v4651
      %v4729 = vmul.f32 %v4449, %v4656
      %v4730 = vmul.f32 %v4452, %v4661
      %v4731 = vmul.f32 %v4457, %v4666
      %v4732 = vmul.f32 %v4460, %v4671
      %v4733 = vmul.f32 %v4465, %v4676
      %v4734 = vmul.f32 %v4468, %v4681
      %v4735 = vmul.f32 %v4473, %v4686
      %v4736 = vmul.f32 %v4476, %v4691
      %v4737 = vmul.f32 %v4481, %v4696
      %v4738 = vmul.f32 %v4484, %v4701
      %4775 = vrot.lane.b32.xlu0 %v4703, 124
      %v4776 = vpop.permute.xlu0 %4775
      %4777 = vrot.lane.b32.xlu0 %v4704, 124
      %v4778 = vpop.permute.xlu0 %4777
      %4779 = vrot.lane.b32.xlu0 %v4705, 124
      %v4780 = vpop.permute.xlu0 %4779
      %4781 = vrot.lane.b32.xlu0 %v4706, 124
      %v4782 = vpop.permute.xlu0 %4781
      %4783 = vrot.lane.b32.xlu0 %v4707, 124
      %v4784 = vpop.permute.xlu0 %4783
      %4785 = vrot.lane.b32.xlu0 %v4708, 124
      %v4786 = vpop.permute.xlu0 %4785
      %4787 = vrot.lane.b32.xlu0 %v4709, 124
      %v4788 = vpop.permute.xlu0 %4787
      %4789 = vrot.lane.b32.xlu0 %v4710, 124
      %v4790 = vpop.permute.xlu0 %4789
      %4791 = vrot.lane.b32.xlu0 %v4711, 124
      %v4792 = vpop.permute.xlu0 %4791
      %4793 = vrot.lane.b32.xlu0 %v4712, 124
      %v4794 = vpop.permute.xlu0 %4793
      %4795 = vrot.lane.b32.xlu0 %v4713, 124
      %v4796 = vpop.permute.xlu0 %4795
      %4797 = vrot.lane.b32.xlu0 %v4714, 124
      %v4798 = vpop.permute.xlu0 %4797
      %4799 = vrot.lane.b32.xlu0 %v4715, 124
      %v4800 = vpop.permute.xlu0 %4799
      %4801 = vrot.lane.b32.xlu0 %v4716, 124
      %v4802 = vpop.permute.xlu0 %4801
      %4803 = vrot.lane.b32.xlu0 %v4717, 124
      %v4804 = vpop.permute.xlu0 %4803
      %4805 = vrot.lane.b32.xlu0 %v4718, 124
      %v4806 = vpop.permute.xlu0 %4805
      %4807 = vrot.lane.b32.xlu0 %v4719, 124
      %v4808 = vpop.permute.xlu0 %4807
      %4809 = vrot.lane.b32.xlu0 %v4720, 124
      %v4810 = vpop.permute.xlu0 %4809
      %4811 = vrot.lane.b32.xlu0 %v4721, 124
      %v4812 = vpop.permute.xlu0 %4811
      %4813 = vrot.lane.b32.xlu0 %v4722, 124
      %v4814 = vpop.permute.xlu0 %4813
      %4815 = vrot.lane.b32.xlu0 %v4723, 124
      %v4816 = vpop.permute.xlu0 %4815
      %4817 = vrot.lane.b32.xlu0 %v4724, 124
      %v4818 = vpop.permute.xlu0 %4817
      %4819 = vrot.lane.b32.xlu0 %v4725, 124
      %v4820 = vpop.permute.xlu0 %4819
      %4821 = vrot.lane.b32.xlu0 %v4726, 124
      %v4822 = vpop.permute.xlu0 %4821
      %4823 = vrot.lane.b32.xlu0 %v4727, 124
      %v4824 = vpop.permute.xlu0 %4823
      %4825 = vrot.lane.b32.xlu0 %v4728, 124
      %v4826 = vpop.permute.xlu0 %4825
      %4827 = vrot.lane.b32.xlu0 %v4729, 124
      %v4828 = vpop.permute.xlu0 %4827
      %4829 = vrot.lane.b32.xlu0 %v4730, 124
      %v4830 = vpop.permute.xlu0 %4829
      %4831 = vrot.lane.b32.xlu0 %v4731, 124
      %v4832 = vpop.permute.xlu0 %4831
      %4833 = vrot.lane.b32.xlu0 %v4732, 124
      %v4834 = vpop.permute.xlu0 %4833
      %4835 = vrot.lane.b32.xlu0 %v4733, 124
      %v4836 = vpop.permute.xlu0 %4835
      %4837 = vrot.lane.b32.xlu0 %v4734, 124
      %v4838 = vpop.permute.xlu0 %4837
      %4839 = vrot.lane.b32.xlu0 %v4735, 124
      %v4840 = vpop.permute.xlu0 %4839
      %4841 = vrot.lane.b32.xlu0 %v4736, 124
      %v4842 = vpop.permute.xlu0 %4841
      %4843 = vrot.lane.b32.xlu0 %v4737, 124
      %v4844 = vpop.permute.xlu0 %4843
      %4845 = vrot.lane.b32.xlu0 %v4738, 124
      %v4846 = vpop.permute.xlu0 %4845
      %v4883 = vadd.f32 %v4703, %v4776
      %v4884 = vadd.f32 %v4704, %v4778
      %v4885 = vadd.f32 %v4705, %v4780
      %v4886 = vadd.f32 %v4706, %v4782
      %v4887 = vadd.f32 %v4707, %v4784
      %v4888 = vadd.f32 %v4708, %v4786
      %v4889 = vadd.f32 %v4709, %v4788
      %v4890 = vadd.f32 %v4710, %v4790
      %v4891 = vadd.f32 %v4711, %v4792
      %v4892 = vadd.f32 %v4712, %v4794
      %v4893 = vadd.f32 %v4713, %v4796
      %v4894 = vadd.f32 %v4714, %v4798
      %v4895 = vadd.f32 %v4715, %v4800
      %v4896 = vadd.f32 %v4716, %v4802
      %v4897 = vadd.f32 %v4717, %v4804
      %v4898 = vadd.f32 %v4718, %v4806
      %v4899 = vadd.f32 %v4719, %v4808
      %v4900 = vadd.f32 %v4720, %v4810
      %v4901 = vadd.f32 %v4721, %v4812
      %v4902 = vadd.f32 %v4722, %v4814
      %v4903 = vadd.f32 %v4723, %v4816
      %v4904 = vadd.f32 %v4724, %v4818
      %v4905 = vadd.f32 %v4725, %v4820
      %v4906 = vadd.f32 %v4726, %v4822
      %v4907 = vadd.f32 %v4727, %v4824
      %v4908 = vadd.f32 %v4728, %v4826
      %v4909 = vadd.f32 %v4729, %v4828
      %v4910 = vadd.f32 %v4730, %v4830
      %v4911 = vadd.f32 %v4731, %v4832
      %v4912 = vadd.f32 %v4732, %v4834
      %v4913 = vadd.f32 %v4733, %v4836
      %v4914 = vadd.f32 %v4734, %v4838
      %v4915 = vadd.f32 %v4735, %v4840
      %v4916 = vadd.f32 %v4736, %v4842
      %v4917 = vadd.f32 %v4737, %v4844
      %v4918 = vadd.f32 %v4738, %v4846
      %4919 = vrot.lane.b32.xlu0 %v4703, 120
      %v4920 = vpop.permute.xlu0 %4919
      %4921 = vrot.lane.b32.xlu0 %v4704, 120
      %v4922 = vpop.permute.xlu0 %4921
      %4923 = vrot.lane.b32.xlu0 %v4705, 120
      %v4924 = vpop.permute.xlu0 %4923
      %4925 = vrot.lane.b32.xlu0 %v4706, 120
      %v4926 = vpop.permute.xlu0 %4925
      %4927 = vrot.lane.b32.xlu0 %v4707, 120
      %v4928 = vpop.permute.xlu0 %4927
      %4929 = vrot.lane.b32.xlu0 %v4708, 120
      %v4930 = vpop.permute.xlu0 %4929
      %4931 = vrot.lane.b32.xlu0 %v4709, 120
      %v4932 = vpop.permute.xlu0 %4931
      %4933 = vrot.lane.b32.xlu0 %v4710, 120
      %v4934 = vpop.permute.xlu0 %4933
      %4935 = vrot.lane.b32.xlu0 %v4711, 120
      %v4936 = vpop.permute.xlu0 %4935
      %4937 = vrot.lane.b32.xlu0 %v4712, 120
      %v4938 = vpop.permute.xlu0 %4937
      %4939 = vrot.lane.b32.xlu0 %v4713, 120
      %v4940 = vpop.permute.xlu0 %4939
      %4941 = vrot.lane.b32.xlu0 %v4714, 120
      %v4942 = vpop.permute.xlu0 %4941
      %4943 = vrot.lane.b32.xlu0 %v4715, 120
      %v4944 = vpop.permute.xlu0 %4943
      %4945 = vrot.lane.b32.xlu0 %v4716, 120
      %v4946 = vpop.permute.xlu0 %4945
      %4947 = vrot.lane.b32.xlu0 %v4717, 120
      %v4948 = vpop.permute.xlu0 %4947
      %4949 = vrot.lane.b32.xlu0 %v4718, 120
      %v4950 = vpop.permute.xlu0 %4949
      %4951 = vrot.lane.b32.xlu0 %v4719, 120
      %v4952 = vpop.permute.xlu0 %4951
      %4953 = vrot.lane.b32.xlu0 %v4720, 120
      %v4954 = vpop.permute.xlu0 %4953
      %4955 = vrot.lane.b32.xlu0 %v4721, 120
      %v4956 = vpop.permute.xlu0 %4955
      %4957 = vrot.lane.b32.xlu0 %v4722, 120
      %v4958 = vpop.permute.xlu0 %4957
      %4959 = vrot.lane.b32.xlu0 %v4723, 120
      %v4960 = vpop.permute.xlu0 %4959
      %4961 = vrot.lane.b32.xlu0 %v4724, 120
      %v4962 = vpop.permute.xlu0 %4961
      %4963 = vrot.lane.b32.xlu0 %v4725, 120
      %v4964 = vpop.permute.xlu0 %4963
      %4965 = vrot.lane.b32.xlu0 %v4726, 120
      %v4966 = vpop.permute.xlu0 %4965
      %4967 = vrot.lane.b32.xlu0 %v4727, 120
      %v4968 = vpop.permute.xlu0 %4967
      %4969 = vrot.lane.b32.xlu0 %v4728, 120
      %v4970 = vpop.permute.xlu0 %4969
      %4971 = vrot.lane.b32.xlu0 %v4729, 120
      %v4972 = vpop.permute.xlu0 %4971
      %4973 = vrot.lane.b32.xlu0 %v4730, 120
      %v4974 = vpop.permute.xlu0 %4973
      %4975 = vrot.lane.b32.xlu0 %v4731, 120
      %v4976 = vpop.permute.xlu0 %4975
      %4977 = vrot.lane.b32.xlu0 %v4732, 120
      %v4978 = vpop.permute.xlu0 %4977
      %4979 = vrot.lane.b32.xlu0 %v4733, 120
      %v4980 = vpop.permute.xlu0 %4979
      %4981 = vrot.lane.b32.xlu0 %v4734, 120
      %v4982 = vpop.permute.xlu0 %4981
      %4983 = vrot.lane.b32.xlu0 %v4735, 120
      %v4984 = vpop.permute.xlu0 %4983
      %4985 = vrot.lane.b32.xlu0 %v4736, 120
      %v4986 = vpop.permute.xlu0 %4985
      %4987 = vrot.lane.b32.xlu0 %v4737, 120
      %v4988 = vpop.permute.xlu0 %4987
      %4989 = vrot.lane.b32.xlu0 %v4738, 120
      %v4990 = vpop.permute.xlu0 %4989
      %v5027 = vadd.f32 %v4883, %v4920
      %v5028 = vadd.f32 %v4884, %v4922
      %v5029 = vadd.f32 %v4885, %v4924
      %v5030 = vadd.f32 %v4886, %v4926
      %v5031 = vadd.f32 %v4887, %v4928
      %v5032 = vadd.f32 %v4888, %v4930
      %v5033 = vadd.f32 %v4889, %v4932
      %v5034 = vadd.f32 %v4890, %v4934
      %v5035 = vadd.f32 %v4891, %v4936
      %v5036 = vadd.f32 %v4892, %v4938
      %v5037 = vadd.f32 %v4893, %v4940
      %v5038 = vadd.f32 %v4894, %v4942
      %v5039 = vadd.f32 %v4895, %v4944
      %v5040 = vadd.f32 %v4896, %v4946
      %v5041 = vadd.f32 %v4897, %v4948
      %v5042 = vadd.f32 %v4898, %v4950
      %v5043 = vadd.f32 %v4899, %v4952
      %v5044 = vadd.f32 %v4900, %v4954
      %v5045 = vadd.f32 %v4901, %v4956
      %v5046 = vadd.f32 %v4902, %v4958
      %v5047 = vadd.f32 %v4903, %v4960
      %v5048 = vadd.f32 %v4904, %v4962
      %v5049 = vadd.f32 %v4905, %v4964
      %v5050 = vadd.f32 %v4906, %v4966
      %v5051 = vadd.f32 %v4907, %v4968
      %v5052 = vadd.f32 %v4908, %v4970
      %v5053 = vadd.f32 %v4909, %v4972
      %v5054 = vadd.f32 %v4910, %v4974
      %v5055 = vadd.f32 %v4911, %v4976
      %v5056 = vadd.f32 %v4912, %v4978
      %v5057 = vadd.f32 %v4913, %v4980
      %v5058 = vadd.f32 %v4914, %v4982
      %v5059 = vadd.f32 %v4915, %v4984
      %v5060 = vadd.f32 %v4916, %v4986
      %v5061 = vadd.f32 %v4917, %v4988
      %v5062 = vadd.f32 %v4918, %v4990
      %5063 = vrot.lane.b32.xlu0 %v4703, 116
      %v5064 = vpop.permute.xlu0 %5063
      %5065 = vrot.lane.b32.xlu0 %v4704, 116
      %v5066 = vpop.permute.xlu0 %5065
      %5067 = vrot.lane.b32.xlu0 %v4705, 116
      %v5068 = vpop.permute.xlu0 %5067
      %5069 = vrot.lane.b32.xlu0 %v4706, 116
      %v5070 = vpop.permute.xlu0 %5069
      %5071 = vrot.lane.b32.xlu0 %v4707, 116
      %v5072 = vpop.permute.xlu0 %5071
      %5073 = vrot.lane.b32.xlu0 %v4708, 116
      %v5074 = vpop.permute.xlu0 %5073
      %5075 = vrot.lane.b32.xlu0 %v4709, 116
      %v5076 = vpop.permute.xlu0 %5075
      %5077 = vrot.lane.b32.xlu0 %v4710, 116
      %v5078 = vpop.permute.xlu0 %5077
      %5079 = vrot.lane.b32.xlu0 %v4711, 116
      %v5080 = vpop.permute.xlu0 %5079
      %5081 = vrot.lane.b32.xlu0 %v4712, 116
      %v5082 = vpop.permute.xlu0 %5081
      %5083 = vrot.lane.b32.xlu0 %v4713, 116
      %v5084 = vpop.permute.xlu0 %5083
      %5085 = vrot.lane.b32.xlu0 %v4714, 116
      %v5086 = vpop.permute.xlu0 %5085
      %5087 = vrot.lane.b32.xlu0 %v4715, 116
      %v5088 = vpop.permute.xlu0 %5087
      %5089 = vrot.lane.b32.xlu0 %v4716, 116
      %v5090 = vpop.permute.xlu0 %5089
      %5091 = vrot.lane.b32.xlu0 %v4717, 116
      %v5092 = vpop.permute.xlu0 %5091
      %5093 = vrot.lane.b32.xlu0 %v4718, 116
      %v5094 = vpop.permute.xlu0 %5093
      %5095 = vrot.lane.b32.xlu0 %v4719, 116
      %v5096 = vpop.permute.xlu0 %5095
      %5097 = vrot.lane.b32.xlu0 %v4720, 116
      %v5098 = vpop.permute.xlu0 %5097
      %5099 = vrot.lane.b32.xlu0 %v4721, 116
      %v5100 = vpop.permute.xlu0 %5099
      %5101 = vrot.lane.b32.xlu0 %v4722, 116
      %v5102 = vpop.permute.xlu0 %5101
      %5103 = vrot.lane.b32.xlu0 %v4723, 116
      %v5104 = vpop.permute.xlu0 %5103
      %5105 = vrot.lane.b32.xlu0 %v4724, 116
      %v5106 = vpop.permute.xlu0 %5105
      %5107 = vrot.lane.b32.xlu0 %v4725, 116
      %v5108 = vpop.permute.xlu0 %5107
      %5109 = vrot.lane.b32.xlu0 %v4726, 116
      %v5110 = vpop.permute.xlu0 %5109
      %5111 = vrot.lane.b32.xlu0 %v4727, 116
      %v5112 = vpop.permute.xlu0 %5111
      %5113 = vrot.lane.b32.xlu0 %v4728, 116
      %v5114 = vpop.permute.xlu0 %5113
      %5115 = vrot.lane.b32.xlu0 %v4729, 116
      %v5116 = vpop.permute.xlu0 %5115
      %5117 = vrot.lane.b32.xlu0 %v4730, 116
      %v5118 = vpop.permute.xlu0 %5117
      %5119 = vrot.lane.b32.xlu0 %v4731, 116
      %v5120 = vpop.permute.xlu0 %5119
      %5121 = vrot.lane.b32.xlu0 %v4732, 116
      %v5122 = vpop.permute.xlu0 %5121
      %5123 = vrot.lane.b32.xlu0 %v4733, 116
      %v5124 = vpop.permute.xlu0 %5123
      %5125 = vrot.lane.b32.xlu0 %v4734, 116
      %v5126 = vpop.permute.xlu0 %5125
      %5127 = vrot.lane.b32.xlu0 %v4735, 116
      %v5128 = vpop.permute.xlu0 %5127
      %5129 = vrot.lane.b32.xlu0 %v4736, 116
      %v5130 = vpop.permute.xlu0 %5129
      %5131 = vrot.lane.b32.xlu0 %v4737, 116
      %v5132 = vpop.permute.xlu0 %5131
      %5133 = vrot.lane.b32.xlu0 %v4738, 116
      %v5134 = vpop.permute.xlu0 %5133
      %v5171 = vadd.f32 %v5027, %v5064
      %v5172 = vadd.f32 %v5028, %v5066
      %v5173 = vadd.f32 %v5029, %v5068
      %v5174 = vadd.f32 %v5030, %v5070
      %v5175 = vadd.f32 %v5031, %v5072
      %v5176 = vadd.f32 %v5032, %v5074
      %v5177 = vadd.f32 %v5033, %v5076
      %v5178 = vadd.f32 %v5034, %v5078
      %v5179 = vadd.f32 %v5035, %v5080
      %v5180 = vadd.f32 %v5036, %v5082
      %v5181 = vadd.f32 %v5037, %v5084
      %v5182 = vadd.f32 %v5038, %v5086
      %v5183 = vadd.f32 %v5039, %v5088
      %v5184 = vadd.f32 %v5040, %v5090
      %v5185 = vadd.f32 %v5041, %v5092
      %v5186 = vadd.f32 %v5042, %v5094
      %v5187 = vadd.f32 %v5043, %v5096
      %v5188 = vadd.f32 %v5044, %v5098
      %v5189 = vadd.f32 %v5045, %v5100
      %v5190 = vadd.f32 %v5046, %v5102
      %v5191 = vadd.f32 %v5047, %v5104
      %v5192 = vadd.f32 %v5048, %v5106
      %v5193 = vadd.f32 %v5049, %v5108
      %v5194 = vadd.f32 %v5050, %v5110
      %v5195 = vadd.f32 %v5051, %v5112
      %v5196 = vadd.f32 %v5052, %v5114
      %v5197 = vadd.f32 %v5053, %v5116
      %v5198 = vadd.f32 %v5054, %v5118
      %v5199 = vadd.f32 %v5055, %v5120
      %v5200 = vadd.f32 %v5056, %v5122
      %v5201 = vadd.f32 %v5057, %v5124
      %v5202 = vadd.f32 %v5058, %v5126
      %v5203 = vadd.f32 %v5059, %v5128
      %v5204 = vadd.f32 %v5060, %v5130
      %v5205 = vadd.f32 %v5061, %v5132
      %v5206 = vadd.f32 %v5062, %v5134
      %v5207 = vmax.f32 %v4703, 0.0
      %v5208 = vmax.f32 %v4704, 0.0
      %v5209 = vmax.f32 %v4705, 0.0
      %v5210 = vmax.f32 %v4706, 0.0
      %v5211 = vmax.f32 %v4707, 0.0
      %v5212 = vmax.f32 %v4708, 0.0
      %v5213 = vmax.f32 %v4709, 0.0
      %v5214 = vmax.f32 %v4710, 0.0
      %v5215 = vmax.f32 %v4711, 0.0
      %v5216 = vmax.f32 %v4712, 0.0
      %v5217 = vmax.f32 %v4713, 0.0
      %v5218 = vmax.f32 %v4714, 0.0
      %v5219 = vmax.f32 %v4715, 0.0
      %v5220 = vmax.f32 %v4716, 0.0
      %v5221 = vmax.f32 %v4717, 0.0
      %v5222 = vmax.f32 %v4718, 0.0
      %v5223 = vmax.f32 %v4719, 0.0
      %v5224 = vmax.f32 %v4720, 0.0
      %v5225 = vmax.f32 %v4721, 0.0
      %v5226 = vmax.f32 %v4722, 0.0
      %v5227 = vmax.f32 %v4723, 0.0
      %v5228 = vmax.f32 %v4724, 0.0
      %v5229 = vmax.f32 %v4725, 0.0
      %v5230 = vmax.f32 %v4726, 0.0
      %v5231 = vmax.f32 %v4727, 0.0
      %v5232 = vmax.f32 %v4728, 0.0
      %v5233 = vmax.f32 %v4729, 0.0
      %v5234 = vmax.f32 %v4730, 0.0
      %v5235 = vmax.f32 %v4731, 0.0
      %v5236 = vmax.f32 %v4732, 0.0
      %v5237 = vmax.f32 %v4733, 0.0
      %v5238 = vmax.f32 %v4734, 0.0
      %v5239 = vmax.f32 %v4735, 0.0
      %v5240 = vmax.f32 %v4736, 0.0
      %v5241 = vmax.f32 %v4737, 0.0
      %v5242 = vmax.f32 %v4738, 0.0
      %v5243 = vpack.c.bf16 %v5208, %v5207
      %v5244 = vpack.c.bf16 %v5210, %v5209
      %v5245 = vpack.c.bf16 %v5212, %v5211
      %v5246 = vpack.c.bf16 %v5214, %v5213
      %v5247 = vpack.c.bf16 %v5216, %v5215
      %v5248 = vpack.c.bf16 %v5218, %v5217
      %v5249 = vpack.c.bf16 %v5220, %v5219
      %v5250 = vpack.c.bf16 %v5222, %v5221
      %v5251 = vpack.c.bf16 %v5224, %v5223
      %v5252 = vpack.c.bf16 %v5226, %v5225
      %v5253 = vpack.c.bf16 %v5228, %v5227
      %v5254 = vpack.c.bf16 %v5230, %v5229
      %v5255 = vpack.c.bf16 %v5232, %v5231
      %v5256 = vpack.c.bf16 %v5234, %v5233
      %v5257 = vpack.c.bf16 %v5236, %v5235
      %v5258 = vpack.c.bf16 %v5238, %v5237
      %v5259 = vpack.c.bf16 %v5240, %v5239
      %v5260 = vpack.c.bf16 %v5242, %v5241
      %v5279 = vunpack.c.l.b16 %v5243
      %v5280 = vunpack.c.h.b16 %v5243
      %v5281 = vunpack.c.l.b16 %v5244
      %v5282 = vunpack.c.h.b16 %v5244
      %v5283 = vunpack.c.l.b16 %v5245
      %v5284 = vunpack.c.h.b16 %v5245
      %v5285 = vunpack.c.l.b16 %v5246
      %v5286 = vunpack.c.h.b16 %v5246
      %v5287 = vunpack.c.l.b16 %v5247
      %v5288 = vunpack.c.h.b16 %v5247
      %v5289 = vunpack.c.l.b16 %v5248
      %v5290 = vunpack.c.h.b16 %v5248
      %v5291 = vunpack.c.l.b16 %v5249
      %v5292 = vunpack.c.h.b16 %v5249
      %v5293 = vunpack.c.l.b16 %v5250
      %v5294 = vunpack.c.h.b16 %v5250
      %v5295 = vunpack.c.l.b16 %v5251
      %v5296 = vunpack.c.h.b16 %v5251
      %v5297 = vunpack.c.l.b16 %v5252
      %v5298 = vunpack.c.h.b16 %v5252
      %v5299 = vunpack.c.l.b16 %v5253
      %v5300 = vunpack.c.h.b16 %v5253
      %v5301 = vunpack.c.l.b16 %v5254
      %v5302 = vunpack.c.h.b16 %v5254
      %v5303 = vunpack.c.l.b16 %v5255
      %v5304 = vunpack.c.h.b16 %v5255
      %v5305 = vunpack.c.l.b16 %v5256
      %v5306 = vunpack.c.h.b16 %v5256
      %v5307 = vunpack.c.l.b16 %v5257
      %v5308 = vunpack.c.h.b16 %v5257
      %v5309 = vunpack.c.l.b16 %v5258
      %v5310 = vunpack.c.h.b16 %v5258
      %v5311 = vunpack.c.l.b16 %v5259
      %v5312 = vunpack.c.h.b16 %v5259
      %v5313 = vunpack.c.l.b16 %v5260
      %v5314 = vunpack.c.h.b16 %v5260
      %v5315 = vpack.c.b16 %v5279, %v5279
      %v5316 = vpack.c.b16 %v5280, %v5280
      %v5317 = vpack.c.b16 %v5281, %v5281
      %v5318 = vpack.c.b16 %v5282, %v5282
      %v5319 = vpack.c.b16 %v5283, %v5283
      %v5320 = vpack.c.b16 %v5284, %v5284
      %v5321 = vpack.c.b16 %v5285, %v5285
      %v5322 = vpack.c.b16 %v5286, %v5286
      %v5323 = vpack.c.b16 %v5287, %v5287
      %v5324 = vpack.c.b16 %v5288, %v5288
      %v5325 = vpack.c.b16 %v5289, %v5289
      %v5326 = vpack.c.b16 %v5290, %v5290
      %v5327 = vpack.c.b16 %v5291, %v5291
      %v5328 = vpack.c.b16 %v5292, %v5292
      %v5329 = vpack.c.b16 %v5293, %v5293
      %v5330 = vpack.c.b16 %v5294, %v5294
      %v5331 = vpack.c.b16 %v5295, %v5295
      %v5332 = vpack.c.b16 %v5296, %v5296
      %v5333 = vpack.c.b16 %v5297, %v5297
      %v5334 = vpack.c.b16 %v5298, %v5298
      %v5335 = vpack.c.b16 %v5299, %v5299
      %v5336 = vpack.c.b16 %v5300, %v5300
      %v5337 = vpack.c.b16 %v5301, %v5301
      %v5338 = vpack.c.b16 %v5302, %v5302
      %v5339 = vpack.c.b16 %v5303, %v5303
      %v5340 = vpack.c.b16 %v5304, %v5304
      %v5341 = vpack.c.b16 %v5305, %v5305
      %v5342 = vpack.c.b16 %v5306, %v5306
      %v5343 = vpack.c.b16 %v5307, %v5307
      %v5344 = vpack.c.b16 %v5308, %v5308
      %v5345 = vpack.c.b16 %v5309, %v5309
      %v5346 = vpack.c.b16 %v5310, %v5310
      %v5347 = vpack.c.b16 %v5311, %v5311
      %v5348 = vpack.c.b16 %v5312, %v5312
      %v5349 = vpack.c.b16 %v5313, %v5313
      %v5350 = vpack.c.b16 %v5314, %v5314
      %5387 = vst.msk [vmem:[#allocation2 + $0x10] sm:$0xf] %vm2396, %v5315
      %5388 = vst.msk [vmem:[#allocation2 + $0x14] sm:$0xf] %vm2396, %v5316
      %5389 = vst.msk [vmem:[#allocation2 + $0x18] sm:$0xf] %vm2396, %v5317
      %5390 = vst.msk [vmem:[#allocation2 + $0x1c] sm:$0xf] %vm2396, %v5318
      %5391 = vst.msk [vmem:[#allocation2 + $0x20] sm:$0xf] %vm2396, %v5319
      %5392 = vst.msk [vmem:[#allocation2 + $0x24] sm:$0xf] %vm2396, %v5320
      %5393 = vst.msk [vmem:[#allocation2 + $0x28] sm:$0xf] %vm2396, %v5321
      %5394 = vst.msk [vmem:[#allocation2 + $0x2c] sm:$0xf] %vm2396, %v5322
      %5395 = vst.msk [vmem:[#allocation2 + $0x30] sm:$0xf] %vm2396, %v5323
      %5396 = vst.msk [vmem:[#allocation2 + $0x34] sm:$0xf] %vm2396, %v5324
      %5397 = vst.msk [vmem:[#allocation2 + $0x38] sm:$0xf] %vm2396, %v5325
      %5398 = vst.msk [vmem:[#allocation2 + $0x3c] sm:$0xf] %vm2396, %v5326
      %5399 = vst.msk [vmem:[#allocation2 + $0x40] sm:$0xf] %vm2396, %v5327
      %5400 = vst.msk [vmem:[#allocation2 + $0x44] sm:$0xf] %vm2396, %v5328
      %5401 = vst.msk [vmem:[#allocation2 + $0x48] sm:$0xf] %vm2396, %v5329
      %5402 = vst.msk [vmem:[#allocation2 + $0x4c] sm:$0xf] %vm2396, %v5330
      %5403 = vst.msk [vmem:[#allocation2 + $0x50] sm:$0xf] %vm2396, %v5331
      %5404 = vst.msk [vmem:[#allocation2 + $0x54] sm:$0xf] %vm2396, %v5332
      %5405 = vst.msk [vmem:[#allocation2 + $0x58] sm:$0xf] %vm2396, %v5333
      %5406 = vst.msk [vmem:[#allocation2 + $0x5c] sm:$0xf] %vm2396, %v5334
      %5407 = vst.msk [vmem:[#allocation2 + $0x60] sm:$0xf] %vm2396, %v5335
      %5408 = vst.msk [vmem:[#allocation2 + $0x64] sm:$0xf] %vm2396, %v5336
      %5409 = vst.msk [vmem:[#allocation2 + $0x68] sm:$0xf] %vm2396, %v5337
      %5410 = vst.msk [vmem:[#allocation2 + $0x6c] sm:$0xf] %vm2396, %v5338
      %5411 = vst.msk [vmem:[#allocation2 + $0x70] sm:$0xf] %vm2396, %v5339
      %5412 = vst.msk [vmem:[#allocation2 + $0x74] sm:$0xf] %vm2396, %v5340
      %5413 = vst.msk [vmem:[#allocation2 + $0x78] sm:$0xf] %vm2396, %v5341
      %5414 = vst.msk [vmem:[#allocation2 + $0x7c] sm:$0xf] %vm2396, %v5342
      %5415 = vst.msk [vmem:[#allocation2 + $0x80] sm:$0xf] %vm2396, %v5343
      %5416 = vst.msk [vmem:[#allocation2 + $0x84] sm:$0xf] %vm2396, %v5344
      %5417 = vst.msk [vmem:[#allocation2 + $0x88] sm:$0xf] %vm2396, %v5345
      %5418 = vst.msk [vmem:[#allocation2 + $0x8c] sm:$0xf] %vm2396, %v5346
      %5419 = vst.msk [vmem:[#allocation2 + $0x90] sm:$0xf] %vm2396, %v5347
      %5420 = vst.msk [vmem:[#allocation2 + $0x94] sm:$0xf] %vm2396, %v5348
      %5421 = vst.msk [vmem:[#allocation2 + $0x98] sm:$0xf] %vm2396, %v5349
      %5422 = vst.msk [vmem:[#allocation2 + $0x9c] sm:$0xf] %vm2396, %v5350
      %v5423 = vld [vmem:[#allocation2 + $0x4] sm:$0xc]
      %v5424 = vld [vmem:[#allocation2 + $0x8] sm:$0xf]
      %v5425 = vld [vmem:[#allocation2 + $0xc] sm:$0xf]
      %v5426 = vld [vmem:[#allocation2 + $0x10] sm:$0xf]
      %v5427 = vld [vmem:[#allocation2 + $0x14] sm:$0xf]
      %v5428 = vld [vmem:[#allocation2 + $0x18] sm:$0xf]
      %v5429 = vld [vmem:[#allocation2 + $0x1c] sm:$0xf]
      %v5430 = vld [vmem:[#allocation2 + $0x20] sm:$0xf]
      %v5431 = vld [vmem:[#allocation2 + $0x24] sm:$0xf]
      %v5432 = vld [vmem:[#allocation2 + $0x28] sm:$0xf]
      %v5433 = vld [vmem:[#allocation2 + $0x2c] sm:$0xf]
      %v5434 = vld [vmem:[#allocation2 + $0x30] sm:$0xf]
      %v5435 = vld [vmem:[#allocation2 + $0x34] sm:$0xf]
      %v5436 = vld [vmem:[#allocation2 + $0x38] sm:$0xf]
      %v5437 = vld [vmem:[#allocation2 + $0x3c] sm:$0xf]
      %v5438 = vld [vmem:[#allocation2 + $0x40] sm:$0xf]
      %v5439 = vld [vmem:[#allocation2 + $0x44] sm:$0xf]
      %v5440 = vld [vmem:[#allocation2 + $0x48] sm:$0xf]
      %v5441 = vld [vmem:[#allocation2 + $0x4c] sm:$0xf]
      %v5442 = vld [vmem:[#allocation2 + $0x50] sm:$0xf]
      %v5443 = vld [vmem:[#allocation2 + $0x54] sm:$0xf]
      %v5444 = vld [vmem:[#allocation2 + $0x58] sm:$0xf]
      %v5445 = vld [vmem:[#allocation2 + $0x5c] sm:$0xf]
      %v5446 = vld [vmem:[#allocation2 + $0x60] sm:$0xf]
      %v5447 = vld [vmem:[#allocation2 + $0x64] sm:$0xf]
      %v5448 = vld [vmem:[#allocation2 + $0x68] sm:$0xf]
      %v5449 = vld [vmem:[#allocation2 + $0x6c] sm:$0xf]
      %v5450 = vld [vmem:[#allocation2 + $0x70] sm:$0xf]
      %v5451 = vld [vmem:[#allocation2 + $0x74] sm:$0xf]
      %v5452 = vld [vmem:[#allocation2 + $0x78] sm:$0xf]
      %v5453 = vld [vmem:[#allocation2 + $0x7c] sm:$0xf]
      %v5454 = vld [vmem:[#allocation2 + $0x80] sm:$0xf]
      %v5455 = vld [vmem:[#allocation2 + $0x84] sm:$0xf]
      %v5456 = vld [vmem:[#allocation2 + $0x88] sm:$0xf]
      %v5457 = vld [vmem:[#allocation2 + $0x8c] sm:$0xf]
      %v5458 = vld [vmem:[#allocation2 + $0x90] sm:$0xf]
      %v5459 = vld [vmem:[#allocation2 + $0x94] sm:$0x7]
      %v5460 = vld [vmem:[#allocation2 + $0x4] sm:$0x8]
      %v5461 = vld [vmem:[#allocation2 + $0x94] sm:$0xf]
      %v5462 = vld [vmem:[#allocation2 + $0xc] sm:$0x8]
      %v5463 = vld [vmem:[#allocation2 + $0x98] sm:$0xf]
      %v5464 = vld [vmem:[#allocation2 + $0x9c] sm:$0xf]
      %v5465 = vld [vmem:[#allocation2 + $0xa0] sm:$0x1]
      %v5466 = vld [vmem:[#allocation2 + $0xa0] sm:$0xf]
      %v5467 = vld [vmem:[#allocation2 + $0xa4] sm:$0xf]
      %v5468 = vld [vmem:[#allocation2 + $0xa8] sm:$0x1]
      %v5469 = vld [vmem:[#allocation2 + $0x18] sm:$0xe]
      %v5470 = vld [vmem:[#allocation2 + $0xa8] sm:$0x3]
      %v5508 = vunpack.c.l.b16 %v5423
      %v5509 = vunpack.c.l.b16 %v5424
      %v5510 = vunpack.c.l.b16 %v5425
      %v5511 = vunpack.c.l.b16 %v5426
      %v5512 = vunpack.c.l.b16 %v5427
      %v5513 = vunpack.c.l.b16 %v5428
      %v5514 = vunpack.c.l.b16 %v5429
      %v5515 = vunpack.c.l.b16 %v5430
      %v5516 = vunpack.c.l.b16 %v5431
      %v5517 = vunpack.c.l.b16 %v5432
      %v5518 = vunpack.c.l.b16 %v5433
      %v5519 = vunpack.c.l.b16 %v5434
      %v5520 = vunpack.c.l.b16 %v5435
      %v5521 = vunpack.c.l.b16 %v5436
      %v5522 = vunpack.c.l.b16 %v5437
      %v5523 = vunpack.c.l.b16 %v5438
      %v5524 = vunpack.c.l.b16 %v5439
      %v5525 = vunpack.c.l.b16 %v5440
      %v5526 = vunpack.c.l.b16 %v5441
      %v5527 = vunpack.c.l.b16 %v5442
      %v5528 = vunpack.c.l.b16 %v5443
      %v5529 = vunpack.c.l.b16 %v5444
      %v5530 = vunpack.c.l.b16 %v5445
      %v5531 = vunpack.c.l.b16 %v5446
      %v5532 = vunpack.c.l.b16 %v5447
      %v5533 = vunpack.c.l.b16 %v5448
      %v5534 = vunpack.c.l.b16 %v5449
      %v5535 = vunpack.c.l.b16 %v5450
      %v5536 = vunpack.c.l.b16 %v5451
      %v5537 = vunpack.c.l.b16 %v5452
      %v5538 = vunpack.c.l.b16 %v5453
      %v5539 = vunpack.c.l.b16 %v5454
      %v5540 = vunpack.c.l.b16 %v5455
      %v5541 = vunpack.c.l.b16 %v5456
      %v5542 = vunpack.c.l.b16 %v5457
      %v5543 = vunpack.c.l.b16 %v5458
      %v5544 = vunpack.c.l.b16 %v5459
      %v5545 = vpack.c.b16 %v5509, %v5508
      %v5546 = vpack.c.b16 %v5511, %v5510
      %v5547 = vpack.c.b16 %v5513, %v5512
      %v5548 = vpack.c.b16 %v5515, %v5514
      %v5549 = vpack.c.b16 %v5517, %v5516
      %v5550 = vpack.c.b16 %v5519, %v5518
      %v5551 = vpack.c.b16 %v5521, %v5520
      %v5552 = vpack.c.b16 %v5523, %v5522
      %v5553 = vpack.c.b16 %v5525, %v5524
      %v5554 = vpack.c.b16 %v5527, %v5526
      %v5555 = vpack.c.b16 %v5529, %v5528
      %v5556 = vpack.c.b16 %v5531, %v5530
      %v5557 = vpack.c.b16 %v5533, %v5532
      %v5558 = vpack.c.b16 %v5535, %v5534
      %v5559 = vpack.c.b16 %v5537, %v5536
      %v5560 = vpack.c.b16 %v5539, %v5538
      %v5561 = vpack.c.b16 %v5541, %v5540
      %v5562 = vpack.c.b16 %v5543, %v5542
      %v5563 = vpack.c.b16 %v5544, %v5544
      %v5565 = vunpack.c.l.b16 %v5460
      %v5566 = vpack.c.b16 %v5509, %v5565
      %v5568 = vshrl.u32 %v5566, 16
      %v5570 = vshll.u32 %v5566, 16
      %v5572 = vrot.slane %v5570, 1
      %v5573 = vor.u32 %v5568, %v5572
      %v5575 = vshll.u32 %v5546, 16
      %v5577 = vrot.slane %v5575, 1
      %v5578 = vsel %vm2728, %v5573, %v5577
      %v5579 = vshrl.u32 %v5546, 16
      %v5581 = vor.u32 %v5579, %v5577
      %v5583 = vshll.u32 %v5547, 16
      %v5585 = vrot.slane %v5583, 1
      %v5586 = vsel %vm2728, %v5581, %v5585
      %v5587 = vshrl.u32 %v5547, 16
      %v5589 = vor.u32 %v5587, %v5585
      %v5591 = vshll.u32 %v5548, 16
      %v5593 = vrot.slane %v5591, 1
      %v5594 = vsel %vm2728, %v5589, %v5593
      %v5595 = vshrl.u32 %v5548, 16
      %v5597 = vor.u32 %v5595, %v5593
      %v5599 = vshll.u32 %v5549, 16
      %v5601 = vrot.slane %v5599, 1
      %v5602 = vsel %vm2728, %v5597, %v5601
      %v5603 = vshrl.u32 %v5549, 16
      %v5605 = vor.u32 %v5603, %v5601
      %v5607 = vshll.u32 %v5550, 16
      %v5609 = vrot.slane %v5607, 1
      %v5610 = vsel %vm2728, %v5605, %v5609
      %v5611 = vshrl.u32 %v5550, 16
      %v5613 = vor.u32 %v5611, %v5609
      %v5615 = vshll.u32 %v5551, 16
      %v5617 = vrot.slane %v5615, 1
      %v5618 = vsel %vm2728, %v5613, %v5617
      %v5619 = vshrl.u32 %v5551, 16
      %v5621 = vor.u32 %v5619, %v5617
      %v5623 = vshll.u32 %v5552, 16
      %v5625 = vrot.slane %v5623, 1
      %v5626 = vsel %vm2728, %v5621, %v5625
      %v5627 = vshrl.u32 %v5552, 16
      %v5629 = vor.u32 %v5627, %v5625
      %v5631 = vshll.u32 %v5553, 16
      %v5633 = vrot.slane %v5631, 1
      %v5634 = vsel %vm2728, %v5629, %v5633
      %v5635 = vshrl.u32 %v5553, 16
      %v5637 = vor.u32 %v5635, %v5633
      %v5639 = vshll.u32 %v5554, 16
      %v5641 = vrot.slane %v5639, 1
      %v5642 = vsel %vm2728, %v5637, %v5641
      %v5643 = vshrl.u32 %v5554, 16
      %v5645 = vor.u32 %v5643, %v5641
      %v5647 = vshll.u32 %v5555, 16
      %v5649 = vrot.slane %v5647, 1
      %v5650 = vsel %vm2728, %v5645, %v5649
      %v5651 = vshrl.u32 %v5555, 16
      %v5653 = vor.u32 %v5651, %v5649
      %v5655 = vshll.u32 %v5556, 16
      %v5657 = vrot.slane %v5655, 1
      %v5658 = vsel %vm2728, %v5653, %v5657
      %v5659 = vshrl.u32 %v5556, 16
      %v5661 = vor.u32 %v5659, %v5657
      %v5663 = vshll.u32 %v5557, 16
      %v5665 = vrot.slane %v5663, 1
      %v5666 = vsel %vm2728, %v5661, %v5665
      %v5667 = vshrl.u32 %v5557, 16
      %v5669 = vor.u32 %v5667, %v5665
      %v5671 = vshll.u32 %v5558, 16
      %v5673 = vrot.slane %v5671, 1
      %v5674 = vsel %vm2728, %v5669, %v5673
      %v5675 = vshrl.u32 %v5558, 16
      %v5677 = vor.u32 %v5675, %v5673
      %v5679 = vshll.u32 %v5559, 16
      %v5681 = vrot.slane %v5679, 1
      %v5682 = vsel %vm2728, %v5677, %v5681
      %v5683 = vshrl.u32 %v5559, 16
      %v5685 = vor.u32 %v5683, %v5681
      %v5687 = vshll.u32 %v5560, 16
      %v5689 = vrot.slane %v5687, 1
      %v5690 = vsel %vm2728, %v5685, %v5689
      %v5691 = vshrl.u32 %v5560, 16
      %v5693 = vor.u32 %v5691, %v5689
      %v5695 = vshll.u32 %v5561, 16
      %v5697 = vrot.slane %v5695, 1
      %v5698 = vsel %vm2728, %v5693, %v5697
      %v5699 = vshrl.u32 %v5561, 16
      %v5701 = vor.u32 %v5699, %v5697
      %v5703 = vshll.u32 %v5562, 16
      %v5705 = vrot.slane %v5703, 1
      %v5706 = vsel %vm2728, %v5701, %v5705
      %v5707 = vshrl.u32 %v5562, 16
      %v5709 = vor.u32 %v5707, %v5705
      %v5711 = vshll.u32 %v5563, 16
      %v5713 = vrot.slane %v5711, 1
      %v5714 = vsel %vm2728, %v5709, %v5713
      %v5715 = vshrl.u32 %v5563, 16
      %v5717 = vor.u32 %v5715, %v5713
      %5718 = vrot.lane.b32.xlu0 %v5578, 16
      %v5719 = vpop.permute.xlu0 %5718
      %5720 = vrot.lane.b32.xlu0 %v5586, 16
      %v5721 = vpop.permute.xlu0 %5720
      %5722 = vrot.lane.b32.xlu0 %v5594, 16
      %v5723 = vpop.permute.xlu0 %5722
      %5724 = vrot.lane.b32.xlu0 %v5602, 16
      %v5725 = vpop.permute.xlu0 %5724
      %5726 = vrot.lane.b32.xlu0 %v5610, 16
      %v5727 = vpop.permute.xlu0 %5726
      %5728 = vrot.lane.b32.xlu0 %v5618, 16
      %v5729 = vpop.permute.xlu0 %5728
      %5730 = vrot.lane.b32.xlu0 %v5626, 16
      %v5731 = vpop.permute.xlu0 %5730
      %5732 = vrot.lane.b32.xlu0 %v5634, 16
      %v5733 = vpop.permute.xlu0 %5732
      %5734 = vrot.lane.b32.xlu0 %v5642, 16
      %v5735 = vpop.permute.xlu0 %5734
      %5736 = vrot.lane.b32.xlu0 %v5650, 16
      %v5737 = vpop.permute.xlu0 %5736
      %5738 = vrot.lane.b32.xlu0 %v5658, 16
      %v5739 = vpop.permute.xlu0 %5738
      %5740 = vrot.lane.b32.xlu0 %v5666, 16
      %v5741 = vpop.permute.xlu0 %5740
      %5742 = vrot.lane.b32.xlu0 %v5674, 16
      %v5743 = vpop.permute.xlu0 %5742
      %5744 = vrot.lane.b32.xlu0 %v5682, 16
      %v5745 = vpop.permute.xlu0 %5744
      %5746 = vrot.lane.b32.xlu0 %v5690, 16
      %v5747 = vpop.permute.xlu0 %5746
      %5748 = vrot.lane.b32.xlu0 %v5698, 16
      %v5749 = vpop.permute.xlu0 %5748
      %5750 = vrot.lane.b32.xlu0 %v5706, 16
      %v5751 = vpop.permute.xlu0 %5750
      %5752 = vrot.lane.b32.xlu0 %v5714, 16
      %v5753 = vpop.permute.xlu0 %5752
      %5754 = vrot.lane.b32.xlu0 %v5717, 16
      %v5755 = vpop.permute.xlu0 %5754
      %v5757 = vunpack.c.l.b16 %v5461
      %v5758 = vpack.c.b16 %v5757, %v5757
      %v5759 = vrot.slane %v5566, 1
      %v5760 = vrot.slane %v5546, 1
      %v5761 = vsel %vm2921, %v5759, %v5760
      %v5762 = vrot.slane %v5547, 1
      %v5763 = vsel %vm2921, %v5760, %v5762
      %v5764 = vrot.slane %v5548, 1
      %v5765 = vsel %vm2921, %v5762, %v5764
      %v5766 = vrot.slane %v5549, 1
      %v5767 = vsel %vm2921, %v5764, %v5766
      %v5768 = vrot.slane %v5550, 1
      %v5769 = vsel %vm2921, %v5766, %v5768
      %v5770 = vrot.slane %v5551, 1
      %v5771 = vsel %vm2921, %v5768, %v5770
      %v5772 = vrot.slane %v5552, 1
      %v5773 = vsel %vm2921, %v5770, %v5772
      %v5774 = vrot.slane %v5553, 1
      %v5775 = vsel %vm2921, %v5772, %v5774
      %v5776 = vrot.slane %v5554, 1
      %v5777 = vsel %vm2921, %v5774, %v5776
      %v5778 = vrot.slane %v5555, 1
      %v5779 = vsel %vm2921, %v5776, %v5778
      %v5780 = vrot.slane %v5556, 1
      %v5781 = vsel %vm2921, %v5778, %v5780
      %v5782 = vrot.slane %v5557, 1
      %v5783 = vsel %vm2921, %v5780, %v5782
      %v5784 = vrot.slane %v5558, 1
      %v5785 = vsel %vm2921, %v5782, %v5784
      %v5786 = vrot.slane %v5559, 1
      %v5787 = vsel %vm2921, %v5784, %v5786
      %v5788 = vrot.slane %v5560, 1
      %v5789 = vsel %vm2921, %v5786, %v5788
      %v5790 = vrot.slane %v5561, 1
      %v5791 = vsel %vm2921, %v5788, %v5790
      %v5792 = vrot.slane %v5562, 1
      %v5793 = vsel %vm2921, %v5790, %v5792
      %v5794 = vrot.slane %v5758, 1
      %v5795 = vsel %vm2921, %v5792, %v5794
      %5796 = vrot.lane.b32.xlu0 %v5761, 32
      %v5797 = vpop.permute.xlu0 %5796
      %5798 = vrot.lane.b32.xlu0 %v5763, 32
      %v5799 = vpop.permute.xlu0 %5798
      %5800 = vrot.lane.b32.xlu0 %v5765, 32
      %v5801 = vpop.permute.xlu0 %5800
      %5802 = vrot.lane.b32.xlu0 %v5767, 32
      %v5803 = vpop.permute.xlu0 %5802
      %5804 = vrot.lane.b32.xlu0 %v5769, 32
      %v5805 = vpop.permute.xlu0 %5804
      %5806 = vrot.lane.b32.xlu0 %v5771, 32
      %v5807 = vpop.permute.xlu0 %5806
      %5808 = vrot.lane.b32.xlu0 %v5773, 32
      %v5809 = vpop.permute.xlu0 %5808
      %5810 = vrot.lane.b32.xlu0 %v5775, 32
      %v5811 = vpop.permute.xlu0 %5810
      %5812 = vrot.lane.b32.xlu0 %v5777, 32
      %v5813 = vpop.permute.xlu0 %5812
      %5814 = vrot.lane.b32.xlu0 %v5779, 32
      %v5815 = vpop.permute.xlu0 %5814
      %5816 = vrot.lane.b32.xlu0 %v5781, 32
      %v5817 = vpop.permute.xlu0 %5816
      %5818 = vrot.lane.b32.xlu0 %v5783, 32
      %v5819 = vpop.permute.xlu0 %5818
      %5820 = vrot.lane.b32.xlu0 %v5785, 32
      %v5821 = vpop.permute.xlu0 %5820
      %5822 = vrot.lane.b32.xlu0 %v5787, 32
      %v5823 = vpop.permute.xlu0 %5822
      %5824 = vrot.lane.b32.xlu0 %v5789, 32
      %v5825 = vpop.permute.xlu0 %5824
      %5826 = vrot.lane.b32.xlu0 %v5791, 32
      %v5827 = vpop.permute.xlu0 %5826
      %5828 = vrot.lane.b32.xlu0 %v5793, 32
      %v5829 = vpop.permute.xlu0 %5828
      %5830 = vrot.lane.b32.xlu0 %v5795, 32
      %v5831 = vpop.permute.xlu0 %5830
      %5832 = vrot.lane.b32.xlu0 %v5794, 32
      %v5833 = vpop.permute.xlu0 %5832
      %v5837 = vunpack.c.l.b16 %v5462
      %v5838 = vunpack.c.l.b16 %v5463
      %v5839 = vunpack.c.l.b16 %v5464
      %v5840 = vpack.c.b16 %v5511, %v5837
      %v5841 = vpack.c.b16 %v5838, %v5757
      %v5842 = vpack.c.b16 %v5839, %v5839
      %v5843 = vrot.slane %v5840, 1
      %v5844 = vsel %vm2921, %v5843, %v5762
      %v5845 = vrot.slane %v5841, 1
      %v5846 = vsel %vm2921, %v5792, %v5845
      %v5847 = vrot.slane %v5842, 1
      %v5848 = vsel %vm2921, %v5845, %v5847
      %5849 = vrot.lane.b32.xlu0 %v5844, 48
      %v5850 = vpop.permute.xlu0 %5849
      %5851 = vrot.lane.b32.xlu0 %v5765, 48
      %v5852 = vpop.permute.xlu0 %5851
      %5853 = vrot.lane.b32.xlu0 %v5767, 48
      %v5854 = vpop.permute.xlu0 %5853
      %5855 = vrot.lane.b32.xlu0 %v5769, 48
      %v5856 = vpop.permute.xlu0 %5855
      %5857 = vrot.lane.b32.xlu0 %v5771, 48
      %v5858 = vpop.permute.xlu0 %5857
      %5859 = vrot.lane.b32.xlu0 %v5773, 48
      %v5860 = vpop.permute.xlu0 %5859
      %5861 = vrot.lane.b32.xlu0 %v5775, 48
      %v5862 = vpop.permute.xlu0 %5861
      %5863 = vrot.lane.b32.xlu0 %v5777, 48
      %v5864 = vpop.permute.xlu0 %5863
      %5865 = vrot.lane.b32.xlu0 %v5779, 48
      %v5866 = vpop.permute.xlu0 %5865
      %5867 = vrot.lane.b32.xlu0 %v5781, 48
      %v5868 = vpop.permute.xlu0 %5867
      %5869 = vrot.lane.b32.xlu0 %v5783, 48
      %v5870 = vpop.permute.xlu0 %5869
      %5871 = vrot.lane.b32.xlu0 %v5785, 48
      %v5872 = vpop.permute.xlu0 %5871
      %5873 = vrot.lane.b32.xlu0 %v5787, 48
      %v5874 = vpop.permute.xlu0 %5873
      %5875 = vrot.lane.b32.xlu0 %v5789, 48
      %v5876 = vpop.permute.xlu0 %5875
      %5877 = vrot.lane.b32.xlu0 %v5791, 48
      %v5878 = vpop.permute.xlu0 %5877
      %5879 = vrot.lane.b32.xlu0 %v5793, 48
      %v5880 = vpop.permute.xlu0 %5879
      %5881 = vrot.lane.b32.xlu0 %v5846, 48
      %v5882 = vpop.permute.xlu0 %5881
      %5883 = vrot.lane.b32.xlu0 %v5848, 48
      %v5884 = vpop.permute.xlu0 %5883
      %5885 = vrot.lane.b32.xlu0 %v5847, 48
      %v5886 = vpop.permute.xlu0 %5885
      %v5887 = vpack.c.b16 %v5512, %v5511
      %v5888 = vpack.c.b16 %v5514, %v5513
      %v5889 = vpack.c.b16 %v5516, %v5515
      %v5890 = vpack.c.b16 %v5518, %v5517
      %v5891 = vpack.c.b16 %v5520, %v5519
      %v5892 = vpack.c.b16 %v5522, %v5521
      %v5893 = vpack.c.b16 %v5524, %v5523
      %v5894 = vpack.c.b16 %v5526, %v5525
      %v5895 = vpack.c.b16 %v5528, %v5527
      %v5896 = vpack.c.b16 %v5530, %v5529
      %v5897 = vpack.c.b16 %v5532, %v5531
      %v5898 = vpack.c.b16 %v5534, %v5533
      %v5899 = vpack.c.b16 %v5536, %v5535
      %v5900 = vpack.c.b16 %v5538, %v5537
      %v5901 = vpack.c.b16 %v5540, %v5539
      %v5902 = vpack.c.b16 %v5542, %v5541
      %v5903 = vpack.c.b16 %v5757, %v5543
      %v5904 = vpack.c.b16 %v5839, %v5838
      %v5906 = vshrl.u32 %v5887, 16
      %v5908 = vrot.slane %v5906, 5
      %v5909 = vshll.u32 %v5887, 16
      %v5911 = vrot.slane %v5909, 6
      %v5912 = vor.u32 %v5908, %v5911
      %v5914 = vshrl.u32 %v5888, 16
      %v5916 = vrot.slane %v5914, 5
      %v5917 = vshll.u32 %v5888, 16
      %v5919 = vrot.slane %v5917, 6
      %v5920 = vor.u32 %v5916, %v5919
      %v5921 = vsel %vm3068, %v5912, %v5920
      %v5923 = vshrl.u32 %v5889, 16
      %v5925 = vrot.slane %v5923, 5
      %v5926 = vshll.u32 %v5889, 16
      %v5928 = vrot.slane %v5926, 6
      %v5929 = vor.u32 %v5925, %v5928
      %v5930 = vsel %vm3068, %v5920, %v5929
      %v5932 = vshrl.u32 %v5890, 16
      %v5934 = vrot.slane %v5932, 5
      %v5935 = vshll.u32 %v5890, 16
      %v5937 = vrot.slane %v5935, 6
      %v5938 = vor.u32 %v5934, %v5937
      %v5939 = vsel %vm3068, %v5929, %v5938
      %v5941 = vshrl.u32 %v5891, 16
      %v5943 = vrot.slane %v5941, 5
      %v5944 = vshll.u32 %v5891, 16
      %v5946 = vrot.slane %v5944, 6
      %v5947 = vor.u32 %v5943, %v5946
      %v5948 = vsel %vm3068, %v5938, %v5947
      %v5950 = vshrl.u32 %v5892, 16
      %v5952 = vrot.slane %v5950, 5
      %v5953 = vshll.u32 %v5892, 16
      %v5955 = vrot.slane %v5953, 6
      %v5956 = vor.u32 %v5952, %v5955
      %v5957 = vsel %vm3068, %v5947, %v5956
      %v5959 = vshrl.u32 %v5893, 16
      %v5961 = vrot.slane %v5959, 5
      %v5962 = vshll.u32 %v5893, 16
      %v5964 = vrot.slane %v5962, 6
      %v5965 = vor.u32 %v5961, %v5964
      %v5966 = vsel %vm3068, %v5956, %v5965
      %v5968 = vshrl.u32 %v5894, 16
      %v5970 = vrot.slane %v5968, 5
      %v5971 = vshll.u32 %v5894, 16
      %v5973 = vrot.slane %v5971, 6
      %v5974 = vor.u32 %v5970, %v5973
      %v5975 = vsel %vm3068, %v5965, %v5974
      %v5977 = vshrl.u32 %v5895, 16
      %v5979 = vrot.slane %v5977, 5
      %v5980 = vshll.u32 %v5895, 16
      %v5982 = vrot.slane %v5980, 6
      %v5983 = vor.u32 %v5979, %v5982
      %v5984 = vsel %vm3068, %v5974, %v5983
      %v5986 = vshrl.u32 %v5896, 16
      %v5988 = vrot.slane %v5986, 5
      %v5989 = vshll.u32 %v5896, 16
      %v5991 = vrot.slane %v5989, 6
      %v5992 = vor.u32 %v5988, %v5991
      %v5993 = vsel %vm3068, %v5983, %v5992
      %v5995 = vshrl.u32 %v5897, 16
      %v5997 = vrot.slane %v5995, 5
      %v5998 = vshll.u32 %v5897, 16
      %v6000 = vrot.slane %v5998, 6
      %v6001 = vor.u32 %v5997, %v6000
      %v6002 = vsel %vm3068, %v5992, %v6001
      %v6004 = vshrl.u32 %v5898, 16
      %v6006 = vrot.slane %v6004, 5
      %v6007 = vshll.u32 %v5898, 16
      %v6009 = vrot.slane %v6007, 6
      %v6010 = vor.u32 %v6006, %v6009
      %v6011 = vsel %vm3068, %v6001, %v6010
      %v6013 = vshrl.u32 %v5899, 16
      %v6015 = vrot.slane %v6013, 5
      %v6016 = vshll.u32 %v5899, 16
      %v6018 = vrot.slane %v6016, 6
      %v6019 = vor.u32 %v6015, %v6018
      %v6020 = vsel %vm3068, %v6010, %v6019
      %v6022 = vshrl.u32 %v5900, 16
      %v6024 = vrot.slane %v6022, 5
      %v6025 = vshll.u32 %v5900, 16
      %v6027 = vrot.slane %v6025, 6
      %v6028 = vor.u32 %v6024, %v6027
      %v6029 = vsel %vm3068, %v6019, %v6028
      %v6031 = vshrl.u32 %v5901, 16
      %v6033 = vrot.slane %v6031, 5
      %v6034 = vshll.u32 %v5901, 16
      %v6036 = vrot.slane %v6034, 6
      %v6037 = vor.u32 %v6033, %v6036
      %v6038 = vsel %vm3068, %v6028, %v6037
      %v6040 = vshrl.u32 %v5902, 16
      %v6042 = vrot.slane %v6040, 5
      %v6043 = vshll.u32 %v5902, 16
      %v6045 = vrot.slane %v6043, 6
      %v6046 = vor.u32 %v6042, %v6045
      %v6047 = vsel %vm3068, %v6037, %v6046
      %v6049 = vshrl.u32 %v5903, 16
      %v6051 = vrot.slane %v6049, 5
      %v6052 = vshll.u32 %v5903, 16
      %v6054 = vrot.slane %v6052, 6
      %v6055 = vor.u32 %v6051, %v6054
      %v6056 = vsel %vm3068, %v6046, %v6055
      %v6058 = vshrl.u32 %v5904, 16
      %v6060 = vrot.slane %v6058, 5
      %v6061 = vshll.u32 %v5904, 16
      %v6063 = vrot.slane %v6061, 6
      %v6064 = vor.u32 %v6060, %v6063
      %v6065 = vsel %vm3068, %v6055, %v6064
      %6066 = vrot.lane.b32.xlu0 %v5912, 64
      %v6067 = vpop.permute.xlu0 %6066
      %6068 = vrot.lane.b32.xlu0 %v5921, 64
      %v6069 = vpop.permute.xlu0 %6068
      %6070 = vrot.lane.b32.xlu0 %v5930, 64
      %v6071 = vpop.permute.xlu0 %6070
      %6072 = vrot.lane.b32.xlu0 %v5939, 64
      %v6073 = vpop.permute.xlu0 %6072
      %6074 = vrot.lane.b32.xlu0 %v5948, 64
      %v6075 = vpop.permute.xlu0 %6074
      %6076 = vrot.lane.b32.xlu0 %v5957, 64
      %v6077 = vpop.permute.xlu0 %6076
      %6078 = vrot.lane.b32.xlu0 %v5966, 64
      %v6079 = vpop.permute.xlu0 %6078
      %6080 = vrot.lane.b32.xlu0 %v5975, 64
      %v6081 = vpop.permute.xlu0 %6080
      %6082 = vrot.lane.b32.xlu0 %v5984, 64
      %v6083 = vpop.permute.xlu0 %6082
      %6084 = vrot.lane.b32.xlu0 %v5993, 64
      %v6085 = vpop.permute.xlu0 %6084
      %6086 = vrot.lane.b32.xlu0 %v6002, 64
      %v6087 = vpop.permute.xlu0 %6086
      %6088 = vrot.lane.b32.xlu0 %v6011, 64
      %v6089 = vpop.permute.xlu0 %6088
      %6090 = vrot.lane.b32.xlu0 %v6020, 64
      %v6091 = vpop.permute.xlu0 %6090
      %6092 = vrot.lane.b32.xlu0 %v6029, 64
      %v6093 = vpop.permute.xlu0 %6092
      %6094 = vrot.lane.b32.xlu0 %v6038, 64
      %v6095 = vpop.permute.xlu0 %6094
      %6096 = vrot.lane.b32.xlu0 %v6047, 64
      %v6097 = vpop.permute.xlu0 %6096
      %6098 = vrot.lane.b32.xlu0 %v6056, 64
      %v6099 = vpop.permute.xlu0 %6098
      %6100 = vrot.lane.b32.xlu0 %v6065, 64
      %v6101 = vpop.permute.xlu0 %6100
      %6102 = vrot.lane.b32.xlu0 %v6064, 64
      %v6103 = vpop.permute.xlu0 %6102
      %v6105 = vunpack.c.l.b16 %v5465
      %v6106 = vpack.c.b16 %v6105, %v6105
      %v6107 = vrot.slane %v5887, 6
      %v6108 = vrot.slane %v5888, 6
      %v6109 = vsel %vm3271, %v6107, %v6108
      %v6110 = vrot.slane %v5889, 6
      %v6111 = vsel %vm3271, %v6108, %v6110
      %v6112 = vrot.slane %v5890, 6
      %v6113 = vsel %vm3271, %v6110, %v6112
      %v6114 = vrot.slane %v5891, 6
      %v6115 = vsel %vm3271, %v6112, %v6114
      %v6116 = vrot.slane %v5892, 6
      %v6117 = vsel %vm3271, %v6114, %v6116
      %v6118 = vrot.slane %v5893, 6
      %v6119 = vsel %vm3271, %v6116, %v6118
      %v6120 = vrot.slane %v5894, 6
      %v6121 = vsel %vm3271, %v6118, %v6120
      %v6122 = vrot.slane %v5895, 6
      %v6123 = vsel %vm3271, %v6120, %v6122
      %v6124 = vrot.slane %v5896, 6
      %v6125 = vsel %vm3271, %v6122, %v6124
      %v6126 = vrot.slane %v5897, 6
      %v6127 = vsel %vm3271, %v6124, %v6126
      %v6128 = vrot.slane %v5898, 6
      %v6129 = vsel %vm3271, %v6126, %v6128
      %v6130 = vrot.slane %v5899, 6
      %v6131 = vsel %vm3271, %v6128, %v6130
      %v6132 = vrot.slane %v5900, 6
      %v6133 = vsel %vm3271, %v6130, %v6132
      %v6134 = vrot.slane %v5901, 6
      %v6135 = vsel %vm3271, %v6132, %v6134
      %v6136 = vrot.slane %v5902, 6
      %v6137 = vsel %vm3271, %v6134, %v6136
      %v6138 = vrot.slane %v5903, 6
      %v6139 = vsel %vm3271, %v6136, %v6138
      %v6140 = vrot.slane %v5904, 6
      %v6141 = vsel %vm3271, %v6138, %v6140
      %v6142 = vrot.slane %v6106, 6
      %v6143 = vsel %vm3271, %v6140, %v6142
      %6144 = vrot.lane.b32.xlu0 %v6107, 80
      %v6145 = vpop.permute.xlu0 %6144
      %6146 = vrot.lane.b32.xlu0 %v6109, 80
      %v6147 = vpop.permute.xlu0 %6146
      %6148 = vrot.lane.b32.xlu0 %v6111, 80
      %v6149 = vpop.permute.xlu0 %6148
      %6150 = vrot.lane.b32.xlu0 %v6113, 80
      %v6151 = vpop.permute.xlu0 %6150
      %6152 = vrot.lane.b32.xlu0 %v6115, 80
      %v6153 = vpop.permute.xlu0 %6152
      %6154 = vrot.lane.b32.xlu0 %v6117, 80
      %v6155 = vpop.permute.xlu0 %6154
      %6156 = vrot.lane.b32.xlu0 %v6119, 80
      %v6157 = vpop.permute.xlu0 %6156
      %6158 = vrot.lane.b32.xlu0 %v6121, 80
      %v6159 = vpop.permute.xlu0 %6158
      %6160 = vrot.lane.b32.xlu0 %v6123, 80
      %v6161 = vpop.permute.xlu0 %6160
      %6162 = vrot.lane.b32.xlu0 %v6125, 80
      %v6163 = vpop.permute.xlu0 %6162
      %6164 = vrot.lane.b32.xlu0 %v6127, 80
      %v6165 = vpop.permute.xlu0 %6164
      %6166 = vrot.lane.b32.xlu0 %v6129, 80
      %v6167 = vpop.permute.xlu0 %6166
      %6168 = vrot.lane.b32.xlu0 %v6131, 80
      %v6169 = vpop.permute.xlu0 %6168
      %6170 = vrot.lane.b32.xlu0 %v6133, 80
      %v6171 = vpop.permute.xlu0 %6170
      %6172 = vrot.lane.b32.xlu0 %v6135, 80
      %v6173 = vpop.permute.xlu0 %6172
      %6174 = vrot.lane.b32.xlu0 %v6137, 80
      %v6175 = vpop.permute.xlu0 %6174
      %6176 = vrot.lane.b32.xlu0 %v6139, 80
      %v6177 = vpop.permute.xlu0 %6176
      %6178 = vrot.lane.b32.xlu0 %v6141, 80
      %v6179 = vpop.permute.xlu0 %6178
      %6180 = vrot.lane.b32.xlu0 %v6143, 80
      %v6181 = vpop.permute.xlu0 %6180
      %v6185 = vunpack.c.l.b16 %v5466
      %v6186 = vunpack.c.l.b16 %v5467
      %v6187 = vunpack.c.l.b16 %v5468
      %v6188 = vpack.c.b16 %v6186, %v6185
      %v6189 = vpack.c.b16 %v6187, %v6187
      %v6190 = vrot.slane %v6188, 6
      %v6191 = vsel %vm3271, %v6140, %v6190
      %v6192 = vrot.slane %v6189, 6
      %v6193 = vsel %vm3271, %v6190, %v6192
      %6194 = vrot.lane.b32.xlu0 %v6108, 96
      %v6195 = vpop.permute.xlu0 %6194
      %6196 = vrot.lane.b32.xlu0 %v6111, 96
      %v6197 = vpop.permute.xlu0 %6196
      %6198 = vrot.lane.b32.xlu0 %v6113, 96
      %v6199 = vpop.permute.xlu0 %6198
      %6200 = vrot.lane.b32.xlu0 %v6115, 96
      %v6201 = vpop.permute.xlu0 %6200
      %6202 = vrot.lane.b32.xlu0 %v6117, 96
      %v6203 = vpop.permute.xlu0 %6202
      %6204 = vrot.lane.b32.xlu0 %v6119, 96
      %v6205 = vpop.permute.xlu0 %6204
      %6206 = vrot.lane.b32.xlu0 %v6121, 96
      %v6207 = vpop.permute.xlu0 %6206
      %6208 = vrot.lane.b32.xlu0 %v6123, 96
      %v6209 = vpop.permute.xlu0 %6208
      %6210 = vrot.lane.b32.xlu0 %v6125, 96
      %v6211 = vpop.permute.xlu0 %6210
      %6212 = vrot.lane.b32.xlu0 %v6127, 96
      %v6213 = vpop.permute.xlu0 %6212
      %6214 = vrot.lane.b32.xlu0 %v6129, 96
      %v6215 = vpop.permute.xlu0 %6214
      %6216 = vrot.lane.b32.xlu0 %v6131, 96
      %v6217 = vpop.permute.xlu0 %6216
      %6218 = vrot.lane.b32.xlu0 %v6133, 96
      %v6219 = vpop.permute.xlu0 %6218
      %6220 = vrot.lane.b32.xlu0 %v6135, 96
      %v6221 = vpop.permute.xlu0 %6220
      %6222 = vrot.lane.b32.xlu0 %v6137, 96
      %v6223 = vpop.permute.xlu0 %6222
      %6224 = vrot.lane.b32.xlu0 %v6139, 96
      %v6225 = vpop.permute.xlu0 %6224
      %6226 = vrot.lane.b32.xlu0 %v6141, 96
      %v6227 = vpop.permute.xlu0 %6226
      %6228 = vrot.lane.b32.xlu0 %v6191, 96
      %v6229 = vpop.permute.xlu0 %6228
      %6230 = vrot.lane.b32.xlu0 %v6193, 96
      %v6231 = vpop.permute.xlu0 %6230
      %v6233 = vunpack.c.l.b16 %v5469
      %v6234 = vpack.c.b16 %v5514, %v6233
      %v6236 = vshrl.u32 %v6234, 16
      %v6238 = vrot.slane %v6236, 6
      %v6239 = vshll.u32 %v6234, 16
      %v6241 = vrot.slane %v6239, 7
      %v6242 = vor.u32 %v6238, %v6241
      %v6243 = vrot.slane %v5923, 6
      %v6244 = vrot.slane %v5926, 7
      %v6245 = vor.u32 %v6243, %v6244
      %v6246 = vsel %vm3400, %v6242, %v6245
      %v6247 = vrot.slane %v5932, 6
      %v6248 = vrot.slane %v5935, 7
      %v6249 = vor.u32 %v6247, %v6248
      %v6250 = vsel %vm3400, %v6245, %v6249
      %v6251 = vrot.slane %v5941, 6
      %v6252 = vrot.slane %v5944, 7
      %v6253 = vor.u32 %v6251, %v6252
      %v6254 = vsel %vm3400, %v6249, %v6253
      %v6255 = vrot.slane %v5950, 6
      %v6256 = vrot.slane %v5953, 7
      %v6257 = vor.u32 %v6255, %v6256
      %v6258 = vsel %vm3400, %v6253, %v6257
      %v6259 = vrot.slane %v5959, 6
      %v6260 = vrot.slane %v5962, 7
      %v6261 = vor.u32 %v6259, %v6260
      %v6262 = vsel %vm3400, %v6257, %v6261
      %v6263 = vrot.slane %v5968, 6
      %v6264 = vrot.slane %v5971, 7
      %v6265 = vor.u32 %v6263, %v6264
      %v6266 = vsel %vm3400, %v6261, %v6265
      %v6267 = vrot.slane %v5977, 6
      %v6268 = vrot.slane %v5980, 7
      %v6269 = vor.u32 %v6267, %v6268
      %v6270 = vsel %vm3400, %v6265, %v6269
      %v6271 = vrot.slane %v5986, 6
      %v6272 = vrot.slane %v5989, 7
      %v6273 = vor.u32 %v6271, %v6272
      %v6274 = vsel %vm3400, %v6269, %v6273
      %v6275 = vrot.slane %v5995, 6
      %v6276 = vrot.slane %v5998, 7
      %v6277 = vor.u32 %v6275, %v6276
      %v6278 = vsel %vm3400, %v6273, %v6277
      %v6279 = vrot.slane %v6004, 6
      %v6280 = vrot.slane %v6007, 7
      %v6281 = vor.u32 %v6279, %v6280
      %v6282 = vsel %vm3400, %v6277, %v6281
      %v6283 = vrot.slane %v6013, 6
      %v6284 = vrot.slane %v6016, 7
      %v6285 = vor.u32 %v6283, %v6284
      %v6286 = vsel %vm3400, %v6281, %v6285
      %v6287 = vrot.slane %v6022, 6
      %v6288 = vrot.slane %v6025, 7
      %v6289 = vor.u32 %v6287, %v6288
      %v6290 = vsel %vm3400, %v6285, %v6289
      %v6291 = vrot.slane %v6031, 6
      %v6292 = vrot.slane %v6034, 7
      %v6293 = vor.u32 %v6291, %v6292
      %v6294 = vsel %vm3400, %v6289, %v6293
      %v6295 = vrot.slane %v6040, 6
      %v6296 = vrot.slane %v6043, 7
      %v6297 = vor.u32 %v6295, %v6296
      %v6298 = vsel %vm3400, %v6293, %v6297
      %v6299 = vrot.slane %v6049, 6
      %v6300 = vrot.slane %v6052, 7
      %v6301 = vor.u32 %v6299, %v6300
      %v6302 = vsel %vm3400, %v6297, %v6301
      %v6303 = vrot.slane %v6058, 6
      %v6304 = vrot.slane %v6061, 7
      %v6305 = vor.u32 %v6303, %v6304
      %v6306 = vsel %vm3400, %v6301, %v6305
      %v6308 = vshrl.u32 %v6188, 16
      %v6310 = vrot.slane %v6308, 6
      %v6311 = vshll.u32 %v6188, 16
      %v6313 = vrot.slane %v6311, 7
      %v6314 = vor.u32 %v6310, %v6313
      %v6315 = vsel %vm3400, %v6305, %v6314
      %v6317 = vshrl.u32 %v6189, 16
      %v6319 = vrot.slane %v6317, 6
      %v6320 = vshll.u32 %v6189, 16
      %v6322 = vrot.slane %v6320, 7
      %v6323 = vor.u32 %v6319, %v6322
      %v6324 = vsel %vm3400, %v6314, %v6323
      %6325 = vrot.lane.b32.xlu0 %v6242, 112
      %v6326 = vpop.permute.xlu0 %6325
      %6327 = vrot.lane.b32.xlu0 %v6246, 112
      %v6328 = vpop.permute.xlu0 %6327
      %6329 = vrot.lane.b32.xlu0 %v6250, 112
      %v6330 = vpop.permute.xlu0 %6329
      %6331 = vrot.lane.b32.xlu0 %v6254, 112
      %v6332 = vpop.permute.xlu0 %6331
      %6333 = vrot.lane.b32.xlu0 %v6258, 112
      %v6334 = vpop.permute.xlu0 %6333
      %6335 = vrot.lane.b32.xlu0 %v6262, 112
      %v6336 = vpop.permute.xlu0 %6335
      %6337 = vrot.lane.b32.xlu0 %v6266, 112
      %v6338 = vpop.permute.xlu0 %6337
      %6339 = vrot.lane.b32.xlu0 %v6270, 112
      %v6340 = vpop.permute.xlu0 %6339
      %6341 = vrot.lane.b32.xlu0 %v6274, 112
      %v6342 = vpop.permute.xlu0 %6341
      %6343 = vrot.lane.b32.xlu0 %v6278, 112
      %v6344 = vpop.permute.xlu0 %6343
      %6345 = vrot.lane.b32.xlu0 %v6282, 112
      %v6346 = vpop.permute.xlu0 %6345
      %6347 = vrot.lane.b32.xlu0 %v6286, 112
      %v6348 = vpop.permute.xlu0 %6347
      %6349 = vrot.lane.b32.xlu0 %v6290, 112
      %v6350 = vpop.permute.xlu0 %6349
      %6351 = vrot.lane.b32.xlu0 %v6294, 112
      %v6352 = vpop.permute.xlu0 %6351
      %6353 = vrot.lane.b32.xlu0 %v6298, 112
      %v6354 = vpop.permute.xlu0 %6353
      %6355 = vrot.lane.b32.xlu0 %v6302, 112
      %v6356 = vpop.permute.xlu0 %6355
      %6357 = vrot.lane.b32.xlu0 %v6306, 112
      %v6358 = vpop.permute.xlu0 %6357
      %6359 = vrot.lane.b32.xlu0 %v6315, 112
      %v6360 = vpop.permute.xlu0 %6359
      %6361 = vrot.lane.b32.xlu0 %v6324, 112
      %v6362 = vpop.permute.xlu0 %6361
      %v6364 = vunpack.c.l.b16 %v5470
      %v6365 = vpack.c.b16 %v6364, %v6364
      %v6366 = vrot.slane %v6234, 7
      %v6367 = vrot.slane %v5889, 7
      %v6368 = vsel %vm3532, %v6366, %v6367
      %v6369 = vrot.slane %v5890, 7
      %v6370 = vsel %vm3532, %v6367, %v6369
      %v6371 = vrot.slane %v5891, 7
      %v6372 = vsel %vm3532, %v6369, %v6371
      %v6373 = vrot.slane %v5892, 7
      %v6374 = vsel %vm3532, %v6371, %v6373
      %v6375 = vrot.slane %v5893, 7
      %v6376 = vsel %vm3532, %v6373, %v6375
      %v6377 = vrot.slane %v5894, 7
      %v6378 = vsel %vm3532, %v6375, %v6377
      %v6379 = vrot.slane %v5895, 7
      %v6380 = vsel %vm3532, %v6377, %v6379
      %v6381 = vrot.slane %v5896, 7
      %v6382 = vsel %vm3532, %v6379, %v6381
      %v6383 = vrot.slane %v5897, 7
      %v6384 = vsel %vm3532, %v6381, %v6383
      %v6385 = vrot.slane %v5898, 7
      %v6386 = vsel %vm3532, %v6383, %v6385
      %v6387 = vrot.slane %v5899, 7
      %v6388 = vsel %vm3532, %v6385, %v6387
      %v6389 = vrot.slane %v5900, 7
      %v6390 = vsel %vm3532, %v6387, %v6389
      %v6391 = vrot.slane %v5901, 7
      %v6392 = vsel %vm3532, %v6389, %v6391
      %v6393 = vrot.slane %v5902, 7
      %v6394 = vsel %vm3532, %v6391, %v6393
      %v6395 = vrot.slane %v5903, 7
      %v6396 = vsel %vm3532, %v6393, %v6395
      %v6397 = vrot.slane %v5904, 7
      %v6398 = vsel %vm3532, %v6395, %v6397
      %v6399 = vrot.slane %v6188, 7
      %v6400 = vsel %vm3532, %v6397, %v6399
      %v6401 = vrot.slane %v6365, 7
      %v6402 = vsel %vm3532, %v6399, %v6401
      %v6405 = vsel %vm1503, %v5545, %v5719
      %v6407 = vsel %vm1503, %v5546, %v5721
      %v6409 = vsel %vm1503, %v5547, %v5723
      %v6411 = vsel %vm1503, %v5548, %v5725
      %v6413 = vsel %vm1503, %v5549, %v5727
      %v6415 = vsel %vm1503, %v5550, %v5729
      %v6417 = vsel %vm1503, %v5551, %v5731
      %v6419 = vsel %vm1503, %v5552, %v5733
      %v6421 = vsel %vm1503, %v5553, %v5735
      %v6423 = vsel %vm1503, %v5554, %v5737
      %v6425 = vsel %vm1503, %v5555, %v5739
      %v6427 = vsel %vm1503, %v5556, %v5741
      %v6429 = vsel %vm1503, %v5557, %v5743
      %v6431 = vsel %vm1503, %v5558, %v5745
      %v6433 = vsel %vm1503, %v5559, %v5747
      %v6435 = vsel %vm1503, %v5560, %v5749
      %v6437 = vsel %vm1503, %v5561, %v5751
      %v6439 = vsel %vm1503, %v5562, %v5753
      %v6441 = vsel %vm1503, %v5563, %v5755
      %v6443 = vsel %vm1540, %v6405, %v5797
      %v6445 = vsel %vm1540, %v6407, %v5799
      %v6447 = vsel %vm1540, %v6409, %v5801
      %v6449 = vsel %vm1540, %v6411, %v5803
      %v6451 = vsel %vm1540, %v6413, %v5805
      %v6453 = vsel %vm1540, %v6415, %v5807
      %v6455 = vsel %vm1540, %v6417, %v5809
      %v6457 = vsel %vm1540, %v6419, %v5811
      %v6459 = vsel %vm1540, %v6421, %v5813
      %v6461 = vsel %vm1540, %v6423, %v5815
      %v6463 = vsel %vm1540, %v6425, %v5817
      %v6465 = vsel %vm1540, %v6427, %v5819
      %v6467 = vsel %vm1540, %v6429, %v5821
      %v6469 = vsel %vm1540, %v6431, %v5823
      %v6471 = vsel %vm1540, %v6433, %v5825
      %v6473 = vsel %vm1540, %v6435, %v5827
      %v6475 = vsel %vm1540, %v6437, %v5829
      %v6477 = vsel %vm1540, %v6439, %v5831
      %v6479 = vsel %vm1540, %v6441, %v5833
      %v6481 = vsel %vm1577, %v6443, %v5850
      %v6483 = vsel %vm1577, %v6445, %v5852
      %v6485 = vsel %vm1577, %v6447, %v5854
      %v6487 = vsel %vm1577, %v6449, %v5856
      %v6489 = vsel %vm1577, %v6451, %v5858
      %v6491 = vsel %vm1577, %v6453, %v5860
      %v6493 = vsel %vm1577, %v6455, %v5862
      %v6495 = vsel %vm1577, %v6457, %v5864
      %v6497 = vsel %vm1577, %v6459, %v5866
      %v6499 = vsel %vm1577, %v6461, %v5868
      %v6501 = vsel %vm1577, %v6463, %v5870
      %v6503 = vsel %vm1577, %v6465, %v5872
      %v6505 = vsel %vm1577, %v6467, %v5874
      %v6507 = vsel %vm1577, %v6469, %v5876
      %v6509 = vsel %vm1577, %v6471, %v5878
      %v6511 = vsel %vm1577, %v6473, %v5880
      %v6513 = vsel %vm1577, %v6475, %v5882
      %v6515 = vsel %vm1577, %v6477, %v5884
      %v6517 = vsel %vm1577, %v6479, %v5886
      %v6519 = vsel %vm1614, %v6481, %v6067
      %v6521 = vsel %vm1614, %v6483, %v6069
      %v6523 = vsel %vm1614, %v6485, %v6071
      %v6525 = vsel %vm1614, %v6487, %v6073
      %v6527 = vsel %vm1614, %v6489, %v6075
      %v6529 = vsel %vm1614, %v6491, %v6077
      %v6531 = vsel %vm1614, %v6493, %v6079
      %v6533 = vsel %vm1614, %v6495, %v6081
      %v6535 = vsel %vm1614, %v6497, %v6083
      %v6537 = vsel %vm1614, %v6499, %v6085
      %v6539 = vsel %vm1614, %v6501, %v6087
      %v6541 = vsel %vm1614, %v6503, %v6089
      %v6543 = vsel %vm1614, %v6505, %v6091
      %v6545 = vsel %vm1614, %v6507, %v6093
      %v6547 = vsel %vm1614, %v6509, %v6095
      %v6549 = vsel %vm1614, %v6511, %v6097
      %v6551 = vsel %vm1614, %v6513, %v6099
      %v6553 = vsel %vm1614, %v6515, %v6101
      %v6555 = vsel %vm1614, %v6517, %v6103
      %v6557 = vsel %vm1651, %v6519, %v6145
      %v6559 = vsel %vm1651, %v6521, %v6147
      %v6561 = vsel %vm1651, %v6523, %v6149
      %v6563 = vsel %vm1651, %v6525, %v6151
      %v6565 = vsel %vm1651, %v6527, %v6153
      %v6567 = vsel %vm1651, %v6529, %v6155
      %v6569 = vsel %vm1651, %v6531, %v6157
      %v6571 = vsel %vm1651, %v6533, %v6159
      %v6573 = vsel %vm1651, %v6535, %v6161
      %v6575 = vsel %vm1651, %v6537, %v6163
      %v6577 = vsel %vm1651, %v6539, %v6165
      %v6579 = vsel %vm1651, %v6541, %v6167
      %v6581 = vsel %vm1651, %v6543, %v6169
      %v6583 = vsel %vm1651, %v6545, %v6171
      %v6585 = vsel %vm1651, %v6547, %v6173
      %v6587 = vsel %vm1651, %v6549, %v6175
      %v6589 = vsel %vm1651, %v6551, %v6177
      %v6591 = vsel %vm1651, %v6553, %v6179
      %v6593 = vsel %vm1651, %v6555, %v6181
      %v6595 = vsel %vm1688, %v6557, %v6195
      %v6597 = vsel %vm1688, %v6559, %v6197
      %v6599 = vsel %vm1688, %v6561, %v6199
      %v6601 = vsel %vm1688, %v6563, %v6201
      %v6603 = vsel %vm1688, %v6565, %v6203
      %v6605 = vsel %vm1688, %v6567, %v6205
      %v6607 = vsel %vm1688, %v6569, %v6207
      %v6609 = vsel %vm1688, %v6571, %v6209
      %v6611 = vsel %vm1688, %v6573, %v6211
      %v6613 = vsel %vm1688, %v6575, %v6213
      %v6615 = vsel %vm1688, %v6577, %v6215
      %v6617 = vsel %vm1688, %v6579, %v6217
      %v6619 = vsel %vm1688, %v6581, %v6219
      %v6621 = vsel %vm1688, %v6583, %v6221
      %v6623 = vsel %vm1688, %v6585, %v6223
      %v6625 = vsel %vm1688, %v6587, %v6225
      %v6627 = vsel %vm1688, %v6589, %v6227
      %v6629 = vsel %vm1688, %v6591, %v6229
      %v6631 = vsel %vm1688, %v6593, %v6231
      %v6633 = vsel %vm1725, %v6595, %v6326
      %v6635 = vsel %vm1725, %v6597, %v6328
      %v6637 = vsel %vm1725, %v6599, %v6330
      %v6639 = vsel %vm1725, %v6601, %v6332
      %v6641 = vsel %vm1725, %v6603, %v6334
      %v6643 = vsel %vm1725, %v6605, %v6336
      %v6645 = vsel %vm1725, %v6607, %v6338
      %v6647 = vsel %vm1725, %v6609, %v6340
      %v6649 = vsel %vm1725, %v6611, %v6342
      %v6651 = vsel %vm1725, %v6613, %v6344
      %v6653 = vsel %vm1725, %v6615, %v6346
      %v6655 = vsel %vm1725, %v6617, %v6348
      %v6657 = vsel %vm1725, %v6619, %v6350
      %v6659 = vsel %vm1725, %v6621, %v6352
      %v6661 = vsel %vm1725, %v6623, %v6354
      %v6663 = vsel %vm1725, %v6625, %v6356
      %v6665 = vsel %vm1725, %v6627, %v6358
      %v6667 = vsel %vm1725, %v6629, %v6360
      %v6669 = vsel %vm1725, %v6631, %v6362
      %v6670 = vld [vmem:[%s5] sm:$0xf]
      %v6671 = vld [vmem:[%s5 + $0x4] sm:$0xf]
      %v6672 = vld [vmem:[%s5 + $0x8] sm:$0xf]
      %v6673 = vld [vmem:[%s5 + $0xc] sm:$0xf]
      %v6674 = vld [vmem:[%s5 + $0x10] sm:$0xf]
      %v6675 = vld [vmem:[%s5 + $0x14] sm:$0xf]
      %v6676 = vld [vmem:[%s5 + $0x18] sm:$0xf]
      %v6677 = vld [vmem:[%s5 + $0x1c] sm:$0xf]
      %v6678 = vld [vmem:[%s5 + $0x20] sm:$0xf]
      %v6679 = vld [vmem:[%s5 + $0x24] sm:$0xf]
      %v6680 = vld [vmem:[%s5 + $0x28] sm:$0xf]
      %v6681 = vld [vmem:[%s5 + $0x2c] sm:$0xf]
      %v6682 = vld [vmem:[%s5 + $0x30] sm:$0xf]
      %v6683 = vld [vmem:[%s5 + $0x34] sm:$0xf]
      %v6684 = vld [vmem:[%s5 + $0x38] sm:$0xf]
      %v6685 = vld [vmem:[%s5 + $0x3c] sm:$0xf]
      %v6686 = vld [vmem:[%s5 + $0x40] sm:$0xf]
      %v6687 = vld [vmem:[%s5 + $0x44] sm:$0xf]
      %v6688 = vld [vmem:[%s6] sm:$0x1]
      %v6690 = vlaneseq
      %v6691 = vshrl.u32 %v6690, 7
      %v6692 = vsub.s32 0, %v6691
      %v6693 = vrot.slane %v6688, %v6692
      %v6695 = vshrl.u32 %v6633, 16
      %v6697 = vrot.slane %v6695, 2
      %v6698 = vshll.u32 %v6633, 16
      %v6700 = vrot.slane %v6698, 3
      %v6701 = vor.u32 %v6697, %v6700
      %v6702 = vshrl.u32 %v6635, 16
      %v6704 = vrot.slane %v6702, 2
      %v6705 = vshll.u32 %v6635, 16
      %v6707 = vrot.slane %v6705, 3
      %v6708 = vor.u32 %v6704, %v6707
      %v6709 = vsel %vm3862, %v6701, %v6708
      %v6711 = vshrl.u32 %v6366, 16
      %v6713 = vrot.slane %v6711, 2
      %v6714 = vshll.u32 %v6366, 16
      %v6716 = vrot.slane %v6714, 3
      %v6717 = vor.u32 %v6713, %v6716
      %v6719 = vshrl.u32 %v6368, 16
      %v6721 = vrot.slane %v6719, 2
      %v6722 = vshll.u32 %v6368, 16
      %v6724 = vrot.slane %v6722, 3
      %v6725 = vor.u32 %v6721, %v6724
      %v6726 = vsel %vm3862, %v6717, %v6725
      %v6727 = vshrl.u32 %v6637, 16
      %v6729 = vrot.slane %v6727, 2
      %v6730 = vshll.u32 %v6637, 16
      %v6732 = vrot.slane %v6730, 3
      %v6733 = vor.u32 %v6729, %v6732
      %v6734 = vsel %vm3862, %v6708, %v6733
      %v6736 = vshrl.u32 %v6370, 16
      %v6738 = vrot.slane %v6736, 2
      %v6739 = vshll.u32 %v6370, 16
      %v6741 = vrot.slane %v6739, 3
      %v6742 = vor.u32 %v6738, %v6741
      %v6743 = vsel %vm3862, %v6725, %v6742
      %v6744 = vshrl.u32 %v6639, 16
      %v6746 = vrot.slane %v6744, 2
      %v6747 = vshll.u32 %v6639, 16
      %v6749 = vrot.slane %v6747, 3
      %v6750 = vor.u32 %v6746, %v6749
      %v6751 = vsel %vm3862, %v6733, %v6750
      %v6753 = vshrl.u32 %v6372, 16
      %v6755 = vrot.slane %v6753, 2
      %v6756 = vshll.u32 %v6372, 16
      %v6758 = vrot.slane %v6756, 3
      %v6759 = vor.u32 %v6755, %v6758
      %v6760 = vsel %vm3862, %v6742, %v6759
      %v6761 = vshrl.u32 %v6641, 16
      %v6763 = vrot.slane %v6761, 2
      %v6764 = vshll.u32 %v6641, 16
      %v6766 = vrot.slane %v6764, 3
      %v6767 = vor.u32 %v6763, %v6766
      %v6768 = vsel %vm3862, %v6750, %v6767
      %v6770 = vshrl.u32 %v6374, 16
      %v6772 = vrot.slane %v6770, 2
      %v6773 = vshll.u32 %v6374, 16
      %v6775 = vrot.slane %v6773, 3
      %v6776 = vor.u32 %v6772, %v6775
      %v6777 = vsel %vm3862, %v6759, %v6776
      %v6778 = vshrl.u32 %v6643, 16
      %v6780 = vrot.slane %v6778, 2
      %v6781 = vshll.u32 %v6643, 16
      %v6783 = vrot.slane %v6781, 3
      %v6784 = vor.u32 %v6780, %v6783
      %v6785 = vsel %vm3862, %v6767, %v6784
      %v6787 = vshrl.u32 %v6376, 16
      %v6789 = vrot.slane %v6787, 2
      %v6790 = vshll.u32 %v6376, 16
      %v6792 = vrot.slane %v6790, 3
      %v6793 = vor.u32 %v6789, %v6792
      %v6794 = vsel %vm3862, %v6776, %v6793
      %v6795 = vshrl.u32 %v6645, 16
      %v6797 = vrot.slane %v6795, 2
      %v6798 = vshll.u32 %v6645, 16
      %v6800 = vrot.slane %v6798, 3
      %v6801 = vor.u32 %v6797, %v6800
      %v6802 = vsel %vm3862, %v6784, %v6801
      %v6804 = vshrl.u32 %v6378, 16
      %v6806 = vrot.slane %v6804, 2
      %v6807 = vshll.u32 %v6378, 16
      %v6809 = vrot.slane %v6807, 3
      %v6810 = vor.u32 %v6806, %v6809
      %v6811 = vsel %vm3862, %v6793, %v6810
      %v6812 = vshrl.u32 %v6647, 16
      %v6814 = vrot.slane %v6812, 2
      %v6815 = vshll.u32 %v6647, 16
      %v6817 = vrot.slane %v6815, 3
      %v6818 = vor.u32 %v6814, %v6817
      %v6819 = vsel %vm3862, %v6801, %v6818
      %v6821 = vshrl.u32 %v6380, 16
      %v6823 = vrot.slane %v6821, 2
      %v6824 = vshll.u32 %v6380, 16
      %v6826 = vrot.slane %v6824, 3
      %v6827 = vor.u32 %v6823, %v6826
      %v6828 = vsel %vm3862, %v6810, %v6827
      %v6829 = vshrl.u32 %v6649, 16
      %v6831 = vrot.slane %v6829, 2
      %v6832 = vshll.u32 %v6649, 16
      %v6834 = vrot.slane %v6832, 3
      %v6835 = vor.u32 %v6831, %v6834
      %v6836 = vsel %vm3862, %v6818, %v6835
      %v6838 = vshrl.u32 %v6382, 16
      %v6840 = vrot.slane %v6838, 2
      %v6841 = vshll.u32 %v6382, 16
      %v6843 = vrot.slane %v6841, 3
      %v6844 = vor.u32 %v6840, %v6843
      %v6845 = vsel %vm3862, %v6827, %v6844
      %v6846 = vshrl.u32 %v6651, 16
      %v6848 = vrot.slane %v6846, 2
      %v6849 = vshll.u32 %v6651, 16
      %v6851 = vrot.slane %v6849, 3
      %v6852 = vor.u32 %v6848, %v6851
      %v6853 = vsel %vm3862, %v6835, %v6852
      %v6855 = vshrl.u32 %v6384, 16
      %v6857 = vrot.slane %v6855, 2
      %v6858 = vshll.u32 %v6384, 16
      %v6860 = vrot.slane %v6858, 3
      %v6861 = vor.u32 %v6857, %v6860
      %v6862 = vsel %vm3862, %v6844, %v6861
      %v6863 = vshrl.u32 %v6653, 16
      %v6865 = vrot.slane %v6863, 2
      %v6866 = vshll.u32 %v6653, 16
      %v6868 = vrot.slane %v6866, 3
      %v6869 = vor.u32 %v6865, %v6868
      %v6870 = vsel %vm3862, %v6852, %v6869
      %v6872 = vshrl.u32 %v6386, 16
      %v6874 = vrot.slane %v6872, 2
      %v6875 = vshll.u32 %v6386, 16
      %v6877 = vrot.slane %v6875, 3
      %v6878 = vor.u32 %v6874, %v6877
      %v6879 = vsel %vm3862, %v6861, %v6878
      %v6880 = vshrl.u32 %v6655, 16
      %v6882 = vrot.slane %v6880, 2
      %v6883 = vshll.u32 %v6655, 16
      %v6885 = vrot.slane %v6883, 3
      %v6886 = vor.u32 %v6882, %v6885
      %v6887 = vsel %vm3862, %v6869, %v6886
      %v6889 = vshrl.u32 %v6388, 16
      %v6891 = vrot.slane %v6889, 2
      %v6892 = vshll.u32 %v6388, 16
      %v6894 = vrot.slane %v6892, 3
      %v6895 = vor.u32 %v6891, %v6894
      %v6896 = vsel %vm3862, %v6878, %v6895
      %v6897 = vshrl.u32 %v6657, 16
      %v6899 = vrot.slane %v6897, 2
      %v6900 = vshll.u32 %v6657, 16
      %v6902 = vrot.slane %v6900, 3
      %v6903 = vor.u32 %v6899, %v6902
      %v6904 = vsel %vm3862, %v6886, %v6903
      %v6906 = vshrl.u32 %v6390, 16
      %v6908 = vrot.slane %v6906, 2
      %v6909 = vshll.u32 %v6390, 16
      %v6911 = vrot.slane %v6909, 3
      %v6912 = vor.u32 %v6908, %v6911
      %v6913 = vsel %vm3862, %v6895, %v6912
      %v6914 = vshrl.u32 %v6659, 16
      %v6916 = vrot.slane %v6914, 2
      %v6917 = vshll.u32 %v6659, 16
      %v6919 = vrot.slane %v6917, 3
      %v6920 = vor.u32 %v6916, %v6919
      %v6921 = vsel %vm3862, %v6903, %v6920
      %v6923 = vshrl.u32 %v6392, 16
      %v6925 = vrot.slane %v6923, 2
      %v6926 = vshll.u32 %v6392, 16
      %v6928 = vrot.slane %v6926, 3
      %v6929 = vor.u32 %v6925, %v6928
      %v6930 = vsel %vm3862, %v6912, %v6929
      %v6931 = vshrl.u32 %v6661, 16
      %v6933 = vrot.slane %v6931, 2
      %v6934 = vshll.u32 %v6661, 16
      %v6936 = vrot.slane %v6934, 3
      %v6937 = vor.u32 %v6933, %v6936
      %v6938 = vsel %vm3862, %v6920, %v6937
      %v6940 = vshrl.u32 %v6394, 16
      %v6942 = vrot.slane %v6940, 2
      %v6943 = vshll.u32 %v6394, 16
      %v6945 = vrot.slane %v6943, 3
      %v6946 = vor.u32 %v6942, %v6945
      %v6947 = vsel %vm3862, %v6929, %v6946
      %v6948 = vshrl.u32 %v6663, 16
      %v6950 = vrot.slane %v6948, 2
      %v6951 = vshll.u32 %v6663, 16
      %v6953 = vrot.slane %v6951, 3
      %v6954 = vor.u32 %v6950, %v6953
      %v6955 = vsel %vm3862, %v6937, %v6954
      %v6957 = vshrl.u32 %v6396, 16
      %v6959 = vrot.slane %v6957, 2
      %v6960 = vshll.u32 %v6396, 16
      %v6962 = vrot.slane %v6960, 3
      %v6963 = vor.u32 %v6959, %v6962
      %v6964 = vsel %vm3862, %v6946, %v6963
      %v6965 = vshrl.u32 %v6665, 16
      %v6967 = vrot.slane %v6965, 2
      %v6968 = vshll.u32 %v6665, 16
      %v6970 = vrot.slane %v6968, 3
      %v6971 = vor.u32 %v6967, %v6970
      %v6972 = vsel %vm3862, %v6954, %v6971
      %v6974 = vshrl.u32 %v6398, 16
      %v6976 = vrot.slane %v6974, 2
      %v6977 = vshll.u32 %v6398, 16
      %v6979 = vrot.slane %v6977, 3
      %v6980 = vor.u32 %v6976, %v6979
      %v6981 = vsel %vm3862, %v6963, %v6980
      %v6982 = vshrl.u32 %v6667, 16
      %v6984 = vrot.slane %v6982, 2
      %v6985 = vshll.u32 %v6667, 16
      %v6987 = vrot.slane %v6985, 3
      %v6988 = vor.u32 %v6984, %v6987
      %v6989 = vsel %vm3862, %v6971, %v6988
      %v6991 = vshrl.u32 %v6400, 16
      %v6993 = vrot.slane %v6991, 2
      %v6994 = vshll.u32 %v6400, 16
      %v6996 = vrot.slane %v6994, 3
      %v6997 = vor.u32 %v6993, %v6996
      %v6998 = vsel %vm3862, %v6980, %v6997
      %v6999 = vshrl.u32 %v6669, 16
      %v7001 = vrot.slane %v6999, 2
      %v7002 = vshll.u32 %v6669, 16
      %v7004 = vrot.slane %v7002, 3
      %v7005 = vor.u32 %v7001, %v7004
      %v7006 = vsel %vm3862, %v6988, %v7005
      %v7008 = vshrl.u32 %v6402, 16
      %v7010 = vrot.slane %v7008, 2
      %v7011 = vshll.u32 %v6402, 16
      %v7013 = vrot.slane %v7011, 3
      %v7014 = vor.u32 %v7010, %v7013
      %v7015 = vsel %vm3862, %v6997, %v7014
      %v7052 = vunpack.c.l.b16 %v6670
      %v7053 = vunpack.c.l.b16 %v6671
      %v7054 = vunpack.c.l.b16 %v6672
      %v7055 = vunpack.c.l.b16 %v6673
      %v7056 = vunpack.c.l.b16 %v6674
      %v7057 = vunpack.c.l.b16 %v6675
      %v7058 = vunpack.c.l.b16 %v6676
      %v7059 = vunpack.c.l.b16 %v6677
      %v7060 = vunpack.c.l.b16 %v6678
      %v7061 = vunpack.c.l.b16 %v6679
      %v7062 = vunpack.c.l.b16 %v6680
      %v7063 = vunpack.c.l.b16 %v6681
      %v7064 = vunpack.c.l.b16 %v6682
      %v7065 = vunpack.c.l.b16 %v6683
      %v7066 = vunpack.c.l.b16 %v6684
      %v7067 = vunpack.c.l.b16 %v6685
      %v7068 = vunpack.c.l.b16 %v6686
      %v7069 = vunpack.c.l.b16 %v6687
      %v7070 = vpack.c.b16 %v7053, %v7052
      %v7071 = vpack.c.b16 %v7055, %v7054
      %v7072 = vpack.c.b16 %v7057, %v7056
      %v7073 = vpack.c.b16 %v7059, %v7058
      %v7074 = vpack.c.b16 %v7061, %v7060
      %v7075 = vpack.c.b16 %v7063, %v7062
      %v7076 = vpack.c.b16 %v7065, %v7064
      %v7077 = vpack.c.b16 %v7067, %v7066
      %v7078 = vpack.c.b16 %v7069, %v7068
      %v7089 = vsel %vm1503, %v6726, 0
      %v7092 = vsel %vm1503, %v6743, 0
      %v7095 = vsel %vm1503, %v6760, 0
      %v7098 = vsel %vm1503, %v6777, 0
      %v7101 = vsel %vm1503, %v6794, 0
      %v7104 = vsel %vm1503, %v6811, 0
      %v7107 = vsel %vm1503, %v6828, 0
      %v7110 = vsel %vm1503, %v6845, 0
      %v7113 = vsel %vm1503, %v6862, 0
      %v7116 = vsel %vm1503, %v6879, 0
      %v7119 = vsel %vm1503, %v6896, 0
      %v7122 = vsel %vm1503, %v6913, 0
      %v7125 = vsel %vm1503, %v6930, 0
      %v7128 = vsel %vm1503, %v6947, 0
      %v7131 = vsel %vm1503, %v6964, 0
      %v7134 = vsel %vm1503, %v6981, 0
      %v7137 = vsel %vm1503, %v6998, 0
      %v7140 = vsel %vm1503, %v7015, 0
      %7142 = vmatprep.subr.bf16.mxu0 0
      %7143 = vmatpush1.bf16.msra.mxu0 %v7070
      %7144 = vmatprep.subr.bf16.mxu0 0
      %7145 = vmatpush1.bf16.msra.mxu0 %v7071
      %7146 = vmatprep.subr.bf16.mxu0 0
      %7147 = vmatpush1.bf16.msra.mxu0 %v7072
      %7148 = vmatprep.subr.bf16.mxu0 0
      %7149 = vmatpush1.bf16.msra.mxu0 %v7073
      %7150 = vmatprep.subr.bf16.mxu0 0
      %7151 = vmatpush1.bf16.msra.mxu0 %v7074
      %7152 = vmatprep.subr.bf16.mxu0 0
      %7153 = vmatpush1.bf16.msra.mxu0 %v7075
      %7154 = vmatprep.subr.bf16.mxu0 0
      %7155 = vmatpush1.bf16.msra.mxu0 %v7076
      %7156 = vmatprep.subr.bf16.mxu0 0
      %7157 = vmatpush1.bf16.msra.mxu0 %v7077
      %7158 = vmatprep.subr.bf16.mxu0 0
      %7159 = vmatpush1.bf16.msra.mxu0 %v7078
      %7160 = vmatprep.subr.bf16.mxu0 0
      %7161 = vmatpush1.bf16.msra.mxu0 0
      %7162 = vmatprep.subr.bf16.mxu0 0
      %7163 = vmatpush1.bf16.msra.mxu0 0
      %7164 = vmatprep.subr.bf16.mxu0 0
      %7165 = vmatpush1.bf16.msra.mxu0 0
      %7166 = vmatprep.subr.bf16.mxu0 0
      %7167 = vmatpush1.bf16.msra.mxu0 0
      %7168 = vmatprep.subr.bf16.mxu0 0
      %7169 = vmatpush1.bf16.msra.mxu0 0
      %7170 = vmatprep.subr.bf16.mxu0 0
      %7171 = vmatpush1.bf16.msra.mxu0 0
      %7172 = vmatprep.subr.bf16.mxu0 0
      %7173 = vmatpush1.bf16.msra.mxu0 0
      %7174 = vmatprep.mubr.bf16.mxu0 %v7089
      %7175 = vmatmul.mubr.bf16.gmra.mrb[0].mxu0 %v6709
      %v7176 = vpop.f32.mrb[0].mxu0
      %v7177 = vadd.f32 %v6693, %v7176
      %v7178 = vpop.f32.mrb[0].mxu0
      %v7179 = vpop.f32.mrb[0].mxu0
      %v7180 = vadd.f32 %v6693, %v7179
      %v7181 = vpop.f32.mrb[0].mxu0
      %7182 = vmatprep.mubr.bf16.mxu0 %v7092
      %7183 = vmatmul.mubr.bf16.gmra.mrb[0].mxu0 %v6734
      %v7184 = vpop.f32.mrb[0].mxu0
      %v7185 = vadd.f32 %v6693, %v7184
      %v7186 = vpop.f32.mrb[0].mxu0
      %v7187 = vpop.f32.mrb[0].mxu0
      %v7188 = vadd.f32 %v6693, %v7187
      %v7189 = vpop.f32.mrb[0].mxu0
      %7190 = vmatprep.mubr.bf16.mxu0 %v7095
      %7191 = vmatmul.mubr.bf16.gmra.mrb[0].mxu0 %v6751
      %v7192 = vpop.f32.mrb[0].mxu0
      %v7193 = vadd.f32 %v6693, %v7192
      %v7194 = vpop.f32.mrb[0].mxu0
      %v7195 = vpop.f32.mrb[0].mxu0
      %v7196 = vadd.f32 %v6693, %v7195
      %v7197 = vpop.f32.mrb[0].mxu0
      %7198 = vmatprep.mubr.bf16.mxu0 %v7098
      %7199 = vmatmul.mubr.bf16.gmra.mrb[0].mxu0 %v6768
      %v7200 = vpop.f32.mrb[0].mxu0
      %v7201 = vadd.f32 %v6693, %v7200
      %v7202 = vpop.f32.mrb[0].mxu0
      %v7203 = vpop.f32.mrb[0].mxu0
      %v7204 = vadd.f32 %v6693, %v7203
      %v7205 = vpop.f32.mrb[0].mxu0
      %7206 = vmatprep.mubr.bf16.mxu0 %v7101
      %7207 = vmatmul.mubr.bf16.gmra.mrb[0].mxu0 %v6785
      %v7208 = vpop.f32.mrb[0].mxu0
      %v7209 = vadd.f32 %v6693, %v7208
      %v7210 = vpop.f32.mrb[0].mxu0
      %v7211 = vpop.f32.mrb[0].mxu0
      %v7212 = vadd.f32 %v6693, %v7211
      %v7213 = vpop.f32.mrb[0].mxu0
      %7214 = vmatprep.mubr.bf16.mxu0 %v7104
      %7215 = vmatmul.mubr.bf16.gmra.mrb[0].mxu0 %v6802
      %v7216 = vpop.f32.mrb[0].mxu0
      %v7217 = vadd.f32 %v6693, %v7216
      %v7218 = vpop.f32.mrb[0].mxu0
      %v7219 = vpop.f32.mrb[0].mxu0
      %v7220 = vadd.f32 %v6693, %v7219
      %v7221 = vpop.f32.mrb[0].mxu0
      %7222 = vmatprep.mubr.bf16.mxu0 %v7107
      %7223 = vmatmul.mubr.bf16.gmra.mrb[0].mxu0 %v6819
      %v7224 = vpop.f32.mrb[0].mxu0
      %v7225 = vadd.f32 %v6693, %v7224
      %v7226 = vpop.f32.mrb[0].mxu0
      %v7227 = vpop.f32.mrb[0].mxu0
      %v7228 = vadd.f32 %v6693, %v7227
      %v7229 = vpop.f32.mrb[0].mxu0
      %7230 = vmatprep.mubr.bf16.mxu0 %v7110
      %7231 = vmatmul.mubr.bf16.gmra.mrb[0].mxu0 %v6836
      %v7232 = vpop.f32.mrb[0].mxu0
      %v7233 = vadd.f32 %v6693, %v7232
      %v7234 = vpop.f32.mrb[0].mxu0
      %v7235 = vpop.f32.mrb[0].mxu0
      %v7236 = vadd.f32 %v6693, %v7235
      %v7237 = vpop.f32.mrb[0].mxu0
      %7238 = vmatprep.mubr.bf16.mxu0 %v7113
      %7239 = vmatmul.mubr.bf16.gmra.mrb[0].mxu0 %v6853
      %v7240 = vpop.f32.mrb[0].mxu0
      %v7241 = vadd.f32 %v6693, %v7240
      %v7242 = vpop.f32.mrb[0].mxu0
      %v7243 = vpop.f32.mrb[0].mxu0
      %v7244 = vadd.f32 %v6693, %v7243
      %v7245 = vpop.f32.mrb[0].mxu0
      %7246 = vmatprep.mubr.bf16.mxu0 %v7116
      %7247 = vmatmul.mubr.bf16.gmra.mrb[0].mxu0 %v6870
      %v7248 = vpop.f32.mrb[0].mxu0
      %v7249 = vadd.f32 %v6693, %v7248
      %v7250 = vpop.f32.mrb[0].mxu0
      %v7251 = vpop.f32.mrb[0].mxu0
      %v7252 = vadd.f32 %v6693, %v7251
      %v7253 = vpop.f32.mrb[0].mxu0
      %7254 = vmatprep.mubr.bf16.mxu0 %v7119
      %7255 = vmatmul.mubr.bf16.gmra.mrb[0].mxu0 %v6887
      %v7256 = vpop.f32.mrb[0].mxu0
      %v7257 = vadd.f32 %v6693, %v7256
      %v7258 = vpop.f32.mrb[0].mxu0
      %v7259 = vpop.f32.mrb[0].mxu0
      %v7260 = vadd.f32 %v6693, %v7259
      %v7261 = vpop.f32.mrb[0].mxu0
      %7262 = vmatprep.mubr.bf16.mxu0 %v7122
      %7263 = vmatmul.mubr.bf16.gmra.mrb[0].mxu0 %v6904
      %v7264 = vpop.f32.mrb[0].mxu0
      %v7265 = vadd.f32 %v6693, %v7264
      %v7266 = vpop.f32.mrb[0].mxu0
      %v7267 = vpop.f32.mrb[0].mxu0
      %v7268 = vadd.f32 %v6693, %v7267
      %v7269 = vpop.f32.mrb[0].mxu0
      %7270 = vmatprep.mubr.bf16.mxu0 %v7125
      %7271 = vmatmul.mubr.bf16.gmra.mrb[0].mxu0 %v6921
      %v7272 = vpop.f32.mrb[0].mxu0
      %v7273 = vadd.f32 %v6693, %v7272
      %v7274 = vpop.f32.mrb[0].mxu0
      %v7275 = vpop.f32.mrb[0].mxu0
      %v7276 = vadd.f32 %v6693, %v7275
      %v7277 = vpop.f32.mrb[0].mxu0
      %7278 = vmatprep.mubr.bf16.mxu0 %v7128
      %7279 = vmatmul.mubr.bf16.gmra.mrb[0].mxu0 %v6938
      %v7280 = vpop.f32.mrb[0].mxu0
      %v7281 = vadd.f32 %v6693, %v7280
      %v7282 = vpop.f32.mrb[0].mxu0
      %v7283 = vpop.f32.mrb[0].mxu0
      %v7284 = vadd.f32 %v6693, %v7283
      %v7285 = vpop.f32.mrb[0].mxu0
      %7286 = vmatprep.mubr.bf16.mxu0 %v7131
      %7287 = vmatmul.mubr.bf16.gmra.mrb[0].mxu0 %v6955
      %v7288 = vpop.f32.mrb[0].mxu0
      %v7289 = vadd.f32 %v6693, %v7288
      %v7290 = vpop.f32.mrb[0].mxu0
      %v7291 = vpop.f32.mrb[0].mxu0
      %v7292 = vadd.f32 %v6693, %v7291
      %v7293 = vpop.f32.mrb[0].mxu0
      %7294 = vmatprep.mubr.bf16.mxu0 %v7134
      %7295 = vmatmul.mubr.bf16.gmra.mrb[0].mxu0 %v6972
      %v7296 = vpop.f32.mrb[0].mxu0
      %v7297 = vadd.f32 %v6693, %v7296
      %v7298 = vpop.f32.mrb[0].mxu0
      %v7299 = vpop.f32.mrb[0].mxu0
      %v7300 = vadd.f32 %v6693, %v7299
      %v7301 = vpop.f32.mrb[0].mxu0
      %7302 = vmatprep.mubr.bf16.mxu0 %v7137
      %7303 = vmatmul.mubr.bf16.gmra.mrb[0].mxu0 %v6989
      %v7304 = vpop.f32.mrb[0].mxu0
      %v7305 = vadd.f32 %v6693, %v7304
      %v7306 = vpop.f32.mrb[0].mxu0
      %v7307 = vpop.f32.mrb[0].mxu0
      %v7308 = vadd.f32 %v6693, %v7307
      %v7309 = vpop.f32.mrb[0].mxu0
      %7310 = vmatprep.mubr.bf16.mxu0 %v7140
      %7311 = vmatmul.mubr.bf16.gmra.mrb[0].mxu0 %v7006
      %v7312 = vpop.f32.mrb[0].mxu0
      %v7313 = vadd.f32 %v6693, %v7312
      %v7314 = vpop.f32.mrb[0].mxu0
      %v7315 = vpop.f32.mrb[0].mxu0
      %v7316 = vadd.f32 %v6693, %v7315
      %v7317 = vpop.f32.mrb[0].mxu0
      %7318 = vdwg.mxu0
      %v7319 = vld [vmem:[%s300 + $0x20] sm:$0xff]
      %v7320 = vld [vmem:[%s300 + $0x28] sm:$0xff]
      %v7321 = vld [vmem:[%s300 + $0x30] sm:$0xff]
      %v7322 = vld [vmem:[%s300 + $0x38] sm:$0xff]
      %v7323 = vld [vmem:[%s300 + $0x40] sm:$0xff]
      %v7324 = vld [vmem:[%s300 + $0x48] sm:$0xff]
      %v7325 = vld [vmem:[%s300 + $0x50] sm:$0xff]
      %v7326 = vld [vmem:[%s300 + $0x58] sm:$0xff]
      %v7327 = vld [vmem:[%s300 + $0x60] sm:$0xff]
      %v7328 = vld [vmem:[%s300 + $0x68] sm:$0xff]
      %v7329 = vld [vmem:[%s300 + $0x70] sm:$0xff]
      %v7330 = vld [vmem:[%s300 + $0x78] sm:$0xff]
      %v7331 = vld [vmem:[%s300 + $0x80] sm:$0xff]
      %v7332 = vld [vmem:[%s300 + $0x88] sm:$0xff]
      %v7333 = vld [vmem:[%s300 + $0x90] sm:$0xff]
      %v7334 = vld [vmem:[%s300 + $0x98] sm:$0xff]
      %v7335 = vld [vmem:[%s300 + $0xa0] sm:$0xff]
      %v7336 = vld [vmem:[%s300 + $0xa8] sm:$0xff]
      %v7337 = vld [vmem:[%s300 + $0xb0] sm:$0xff]
      %v7338 = vld [vmem:[%s300 + $0xb8] sm:$0xff]
      %v7339 = vld [vmem:[%s300 + $0xc0] sm:$0xff]
      %v7340 = vld [vmem:[%s300 + $0xc8] sm:$0xff]
      %v7341 = vld [vmem:[%s300 + $0xd0] sm:$0xff]
      %v7342 = vld [vmem:[%s300 + $0xd8] sm:$0xff]
      %v7343 = vld [vmem:[%s300 + $0xe0] sm:$0xff]
      %v7344 = vld [vmem:[%s300 + $0xe8] sm:$0xff]
      %v7345 = vld [vmem:[%s300 + $0xf0] sm:$0xff]
      %v7346 = vld [vmem:[%s300 + $0xf8] sm:$0xff]
      %v7347 = vld [vmem:[%s300 + $0x100] sm:$0xff]
      %v7348 = vld [vmem:[%s300 + $0x108] sm:$0xff]
      %v7349 = vld [vmem:[%s300 + $0x110] sm:$0xff]
      %v7350 = vld [vmem:[%s300 + $0x118] sm:$0xff]
      %v7351 = vld [vmem:[%s300 + $0x120] sm:$0xff]
      %v7352 = vld [vmem:[%s300 + $0x128] sm:$0xff]
      %v7353 = vld [vmem:[%s300 + $0x130] sm:$0xff]
      %v7354 = vld [vmem:[%s300 + $0x138] sm:$0xff]
      %7391 = vrot.lane.b32.xlu0 %v7177, 4
      %v7392 = vpop.permute.xlu0 %7391
      %7393 = vrot.lane.b32.xlu0 %v7180, 4
      %v7394 = vpop.permute.xlu0 %7393
      %7395 = vrot.lane.b32.xlu0 %v7185, 4
      %v7396 = vpop.permute.xlu0 %7395
      %7397 = vrot.lane.b32.xlu0 %v7188, 4
      %v7398 = vpop.permute.xlu0 %7397
      %7399 = vrot.lane.b32.xlu0 %v7193, 4
      %v7400 = vpop.permute.xlu0 %7399
      %7401 = vrot.lane.b32.xlu0 %v7196, 4
      %v7402 = vpop.permute.xlu0 %7401
      %7403 = vrot.lane.b32.xlu0 %v7201, 4
      %v7404 = vpop.permute.xlu0 %7403
      %7405 = vrot.lane.b32.xlu0 %v7204, 4
      %v7406 = vpop.permute.xlu0 %7405
      %7407 = vrot.lane.b32.xlu0 %v7209, 4
      %v7408 = vpop.permute.xlu0 %7407
      %7409 = vrot.lane.b32.xlu0 %v7212, 4
      %v7410 = vpop.permute.xlu0 %7409
      %7411 = vrot.lane.b32.xlu0 %v7217, 4
      %v7412 = vpop.permute.xlu0 %7411
      %7413 = vrot.lane.b32.xlu0 %v7220, 4
      %v7414 = vpop.permute.xlu0 %7413
      %7415 = vrot.lane.b32.xlu0 %v7225, 4
      %v7416 = vpop.permute.xlu0 %7415
      %7417 = vrot.lane.b32.xlu0 %v7228, 4
      %v7418 = vpop.permute.xlu0 %7417
      %7419 = vrot.lane.b32.xlu0 %v7233, 4
      %v7420 = vpop.permute.xlu0 %7419
      %7421 = vrot.lane.b32.xlu0 %v7236, 4
      %v7422 = vpop.permute.xlu0 %7421
      %7423 = vrot.lane.b32.xlu0 %v7241, 4
      %v7424 = vpop.permute.xlu0 %7423
      %7425 = vrot.lane.b32.xlu0 %v7244, 4
      %v7426 = vpop.permute.xlu0 %7425
      %7427 = vrot.lane.b32.xlu0 %v7249, 4
      %v7428 = vpop.permute.xlu0 %7427
      %7429 = vrot.lane.b32.xlu0 %v7252, 4
      %v7430 = vpop.permute.xlu0 %7429
      %7431 = vrot.lane.b32.xlu0 %v7257, 4
      %v7432 = vpop.permute.xlu0 %7431
      %7433 = vrot.lane.b32.xlu0 %v7260, 4
      %v7434 = vpop.permute.xlu0 %7433
      %7435 = vrot.lane.b32.xlu0 %v7265, 4
      %v7436 = vpop.permute.xlu0 %7435
      %7437 = vrot.lane.b32.xlu0 %v7268, 4
      %v7438 = vpop.permute.xlu0 %7437
      %7439 = vrot.lane.b32.xlu0 %v7273, 4
      %v7440 = vpop.permute.xlu0 %7439
      %7441 = vrot.lane.b32.xlu0 %v7276, 4
      %v7442 = vpop.permute.xlu0 %7441
      %7443 = vrot.lane.b32.xlu0 %v7281, 4
      %v7444 = vpop.permute.xlu0 %7443
      %7445 = vrot.lane.b32.xlu0 %v7284, 4
      %v7446 = vpop.permute.xlu0 %7445
      %7447 = vrot.lane.b32.xlu0 %v7289, 4
      %v7448 = vpop.permute.xlu0 %7447
      %7449 = vrot.lane.b32.xlu0 %v7292, 4
      %v7450 = vpop.permute.xlu0 %7449
      %7451 = vrot.lane.b32.xlu0 %v7297, 4
      %v7452 = vpop.permute.xlu0 %7451
      %7453 = vrot.lane.b32.xlu0 %v7300, 4
      %v7454 = vpop.permute.xlu0 %7453
      %7455 = vrot.lane.b32.xlu0 %v7305, 4
      %v7456 = vpop.permute.xlu0 %7455
      %7457 = vrot.lane.b32.xlu0 %v7308, 4
      %v7458 = vpop.permute.xlu0 %7457
      %7459 = vrot.lane.b32.xlu0 %v7313, 4
      %v7460 = vpop.permute.xlu0 %7459
      %7461 = vrot.lane.b32.xlu0 %v7316, 4
      %v7462 = vpop.permute.xlu0 %7461
      %vm7499 = vcmask 31744
      %v7500 = vsel %vm7499, %v5171, %v7392
      %v7501 = vsel %vm7499, %v5172, %v7394
      %v7502 = vsel %vm7499, %v5173, %v7396
      %v7503 = vsel %vm7499, %v5174, %v7398
      %v7504 = vsel %vm7499, %v5175, %v7400
      %v7505 = vsel %vm7499, %v5176, %v7402
      %v7506 = vsel %vm7499, %v5177, %v7404
      %v7507 = vsel %vm7499, %v5178, %v7406
      %v7508 = vsel %vm7499, %v5179, %v7408
      %v7509 = vsel %vm7499, %v5180, %v7410
      %v7510 = vsel %vm7499, %v5181, %v7412
      %v7511 = vsel %vm7499, %v5182, %v7414
      %v7512 = vsel %vm7499, %v5183, %v7416
      %v7513 = vsel %vm7499, %v5184, %v7418
      %v7514 = vsel %vm7499, %v5185, %v7420
      %v7515 = vsel %vm7499, %v5186, %v7422
      %v7516 = vsel %vm7499, %v5187, %v7424
      %v7517 = vsel %vm7499, %v5188, %v7426
      %v7518 = vsel %vm7499, %v5189, %v7428
      %v7519 = vsel %vm7499, %v5190, %v7430
      %v7520 = vsel %vm7499, %v5191, %v7432
      %v7521 = vsel %vm7499, %v5192, %v7434
      %v7522 = vsel %vm7499, %v5193, %v7436
      %v7523 = vsel %vm7499, %v5194, %v7438
      %v7524 = vsel %vm7499, %v5195, %v7440
      %v7525 = vsel %vm7499, %v5196, %v7442
      %v7526 = vsel %vm7499, %v5197, %v7444
      %v7527 = vsel %vm7499, %v5198, %v7446
      %v7528 = vsel %vm7499, %v5199, %v7448
      %v7529 = vsel %vm7499, %v5200, %v7450
      %v7530 = vsel %vm7499, %v5201, %v7452
      %v7531 = vsel %vm7499, %v5202, %v7454
      %v7532 = vsel %vm7499, %v5203, %v7456
      %v7533 = vsel %vm7499, %v5204, %v7458
      %v7534 = vsel %vm7499, %v5205, %v7460
      %v7535 = vsel %vm7499, %v5206, %v7462
      %v7536 = vadd.f32 %v7500, %v7319
      %v7537 = vadd.f32 %v7501, %v7320
      %v7538 = vadd.f32 %v7502, %v7321
      %v7539 = vadd.f32 %v7503, %v7322
      %v7540 = vadd.f32 %v7504, %v7323
      %v7541 = vadd.f32 %v7505, %v7324
      %v7542 = vadd.f32 %v7506, %v7325
      %v7543 = vadd.f32 %v7507, %v7326
      %v7544 = vadd.f32 %v7508, %v7327
      %v7545 = vadd.f32 %v7509, %v7328
      %v7546 = vadd.f32 %v7510, %v7329
      %v7547 = vadd.f32 %v7511, %v7330
      %v7548 = vadd.f32 %v7512, %v7331
      %v7549 = vadd.f32 %v7513, %v7332
      %v7550 = vadd.f32 %v7514, %v7333
      %v7551 = vadd.f32 %v7515, %v7334
      %v7552 = vadd.f32 %v7516, %v7335
      %v7553 = vadd.f32 %v7517, %v7336
      %v7554 = vadd.f32 %v7518, %v7337
      %v7555 = vadd.f32 %v7519, %v7338
      %v7556 = vadd.f32 %v7520, %v7339
      %v7557 = vadd.f32 %v7521, %v7340
      %v7558 = vadd.f32 %v7522, %v7341
      %v7559 = vadd.f32 %v7523, %v7342
      %v7560 = vadd.f32 %v7524, %v7343
      %v7561 = vadd.f32 %v7525, %v7344
      %v7562 = vadd.f32 %v7526, %v7345
      %v7563 = vadd.f32 %v7527, %v7346
      %v7564 = vadd.f32 %v7528, %v7347
      %v7565 = vadd.f32 %v7529, %v7348
      %v7566 = vadd.f32 %v7530, %v7349
      %v7567 = vadd.f32 %v7531, %v7350
      %v7568 = vadd.f32 %v7532, %v7351
      %v7569 = vadd.f32 %v7533, %v7352
      %v7570 = vadd.f32 %v7534, %v7353
      %v7571 = vadd.f32 %v7535, %v7354
      %v7572 = vmax.f32 %v7536, 0.0
      %v7573 = vmax.f32 %v7537, 0.0
      %v7574 = vmax.f32 %v7538, 0.0
      %v7575 = vmax.f32 %v7539, 0.0
      %v7576 = vmax.f32 %v7540, 0.0
      %v7577 = vmax.f32 %v7541, 0.0
      %v7578 = vmax.f32 %v7542, 0.0
      %v7579 = vmax.f32 %v7543, 0.0
      %v7580 = vmax.f32 %v7544, 0.0
      %v7581 = vmax.f32 %v7545, 0.0
      %v7582 = vmax.f32 %v7546, 0.0
      %v7583 = vmax.f32 %v7547, 0.0
      %v7584 = vmax.f32 %v7548, 0.0
      %v7585 = vmax.f32 %v7549, 0.0
      %v7586 = vmax.f32 %v7550, 0.0
      %v7587 = vmax.f32 %v7551, 0.0
      %v7588 = vmax.f32 %v7552, 0.0
      %v7589 = vmax.f32 %v7553, 0.0
      %v7590 = vmax.f32 %v7554, 0.0
      %v7591 = vmax.f32 %v7555, 0.0
      %v7592 = vmax.f32 %v7556, 0.0
      %v7593 = vmax.f32 %v7557, 0.0
      %v7594 = vmax.f32 %v7558, 0.0
      %v7595 = vmax.f32 %v7559, 0.0
      %v7596 = vmax.f32 %v7560, 0.0
      %v7597 = vmax.f32 %v7561, 0.0
      %v7598 = vmax.f32 %v7562, 0.0
      %v7599 = vmax.f32 %v7563, 0.0
      %v7600 = vmax.f32 %v7564, 0.0
      %v7601 = vmax.f32 %v7565, 0.0
      %v7602 = vmax.f32 %v7566, 0.0
      %v7603 = vmax.f32 %v7567, 0.0
      %v7604 = vmax.f32 %v7568, 0.0
      %v7605 = vmax.f32 %v7569, 0.0
      %v7606 = vmax.f32 %v7570, 0.0
      %v7607 = vmax.f32 %v7571, 0.0
      %7608 = vst.msk [vmem:[%s305] sm:$0xff] %vm1503, %v7572
      %7609 = vst.msk [vmem:[%s305 + $0x8] sm:$0xff] %vm1503, %v7573
      %7610 = vst.msk [vmem:[%s305 + $0x10] sm:$0xff] %vm1503, %v7574
      %7611 = vst.msk [vmem:[%s305 + $0x18] sm:$0xff] %vm1503, %v7575
      %7612 = vst.msk [vmem:[%s305 + $0x20] sm:$0xff] %vm1503, %v7576
      %7613 = vst.msk [vmem:[%s305 + $0x28] sm:$0xff] %vm1503, %v7577
      %7614 = vst.msk [vmem:[%s305 + $0x30] sm:$0xff] %vm1503, %v7578
      %7615 = vst.msk [vmem:[%s305 + $0x38] sm:$0xff] %vm1503, %v7579
      %7616 = vst.msk [vmem:[%s305 + $0x40] sm:$0xff] %vm1503, %v7580
      %7617 = vst.msk [vmem:[%s305 + $0x48] sm:$0xff] %vm1503, %v7581
      %7618 = vst.msk [vmem:[%s305 + $0x50] sm:$0xff] %vm1503, %v7582
      %7619 = vst.msk [vmem:[%s305 + $0x58] sm:$0xff] %vm1503, %v7583
      %7620 = vst.msk [vmem:[%s305 + $0x60] sm:$0xff] %vm1503, %v7584
      %7621 = vst.msk [vmem:[%s305 + $0x68] sm:$0xff] %vm1503, %v7585
      %7622 = vst.msk [vmem:[%s305 + $0x70] sm:$0xff] %vm1503, %v7586
      %7623 = vst.msk [vmem:[%s305 + $0x78] sm:$0xff] %vm1503, %v7587
      %7624 = vst.msk [vmem:[%s305 + $0x80] sm:$0xff] %vm1503, %v7588
      %7625 = vst.msk [vmem:[%s305 + $0x88] sm:$0xff] %vm1503, %v7589
      %7626 = vst.msk [vmem:[%s305 + $0x90] sm:$0xff] %vm1503, %v7590
      %7627 = vst.msk [vmem:[%s305 + $0x98] sm:$0xff] %vm1503, %v7591
      %7628 = vst.msk [vmem:[%s305 + $0xa0] sm:$0xff] %vm1503, %v7592
      %7629 = vst.msk [vmem:[%s305 + $0xa8] sm:$0xff] %vm1503, %v7593
      %7630 = vst.msk [vmem:[%s305 + $0xb0] sm:$0xff] %vm1503, %v7594
      %7631 = vst.msk [vmem:[%s305 + $0xb8] sm:$0xff] %vm1503, %v7595
      %7632 = vst.msk [vmem:[%s305 + $0xc0] sm:$0xff] %vm1503, %v7596
      %7633 = vst.msk [vmem:[%s305 + $0xc8] sm:$0xff] %vm1503, %v7597
      %7634 = vst.msk [vmem:[%s305 + $0xd0] sm:$0xff] %vm1503, %v7598
      %7635 = vst.msk [vmem:[%s305 + $0xd8] sm:$0xff] %vm1503, %v7599
      %7636 = vst.msk [vmem:[%s305 + $0xe0] sm:$0xff] %vm1503, %v7600
      %7637 = vst.msk [vmem:[%s305 + $0xe8] sm:$0xff] %vm1503, %v7601
      %7638 = vst.msk [vmem:[%s305 + $0xf0] sm:$0xff] %vm1503, %v7602
      %7639 = vst.msk [vmem:[%s305 + $0xf8] sm:$0xff] %vm1503, %v7603
      %7640 = vst.msk [vmem:[%s305 + $0x100] sm:$0xff] %vm1503, %v7604
      %7641 = vst.msk [vmem:[%s305 + $0x108] sm:$0xff] %vm1503, %v7605
      %7642 = vst.msk [vmem:[%s305 + $0x110] sm:$0xff] %vm1503, %v7606
      %7643 = vst.msk [vmem:[%s305 + $0x118] sm:$0xff] %vm1503, %v7607
      %p7644 = scmp.lt.s32.totalorder %s19, 1
      %s7645 = scalar_select %p7644, %s19, 1
      %s7646 = smul.addr %s7645, 36
      %s7647 = smul.addr %s7646, 8
      %s7648 = scalar_lea.vmem %s8, %s7647
      // Predicated region
      $region53: #{um3_forward.1} parent=51 // pred_check
        %p7649 = pneg %p210
      $region54: #{um3_forward.1} parent=51 // pred_check_branch
        %7651 = sbr.rel (%p7649) target = $region56
      $region55: #{um3_forward.1} parent=51 // pred_region
        _
      $region56: #{um3_forward.1} parent=51 // pred_fallthru
        _
    $region52: #{um3_forward.1} parent=5 // pred_fallthru
      _
    %p7652 = scmp.le.s32.totalorder 2, %s14
    // Predicated region
    $region57: #{um3_forward.1} parent=5 // pred_check
      %p7653 = pneg %p7652
    $region58: #{um3_forward.1} parent=5 // pred_check_branch
      %7655 = sbr.rel (%p7653) target = $region60
    $region59: #{um3_forward.1} parent=5 // pred_region
      %s7656 = ssub.s32 %s14, 2
      // Predicated region
      $region61: #{um3_forward.1} parent=59 // pred_check
        %p7657 = pneg %p216
      $region62: #{um3_forward.1} parent=59 // pred_check_branch
        %7659 = sbr.rel (%p7657) target = $region64
      $region63: #{um3_forward.1} parent=59 // pred_region
        %p7660 = scmp.lt.s32.totalorder %s20, 1
        %s7661 = scalar_select %p7660, %s20, 1
        %s7662 = smul.addr %s7661, 36
        %s7663 = smul.addr %s7662, 8
        %s7664 = scalar_lea.vmem %s8, %s7663
      $region64: #{um3_forward.1} parent=59 // pred_fallthru
        _
    $region60: #{um3_forward.1} parent=5 // pred_fallthru
      _
  $region6: #{um3_forward.1} parent=0 // loop_footer
    %s18 = sadd.s32 1, %s14
  $region7: #{um3_forward.1} parent=0 // loop_footer_branch
    %13 = sbr.rel target = $region3
  $region8: #{um3_forward.1} parent=0 // loop_exit
    _

</llo_original>
